<compile_context>
chip_gen: v5e
topology: v5e:2x2
jax: 0.10.0
libtpu: 0.0.40
codegen_flags: <defaults>
</compile_context>

<pallas_src>
import functools
import math

import jax
import jax.numpy as jnp
from jax import lax
from jax.experimental import pallas as pl
from jax.experimental.pallas import tpu as pltpu

LN_EPS = 1e-5  # torch.nn.LayerNorm default eps


# ----------------------------- in-kernel math ------------------------------

def _layernorm(x, gamma, beta):
    mean = jnp.mean(x, axis=-1, keepdims=True)
    var = jnp.mean(jnp.square(x - mean), axis=-1, keepdims=True)
    return (x - mean) * lax.rsqrt(var + LN_EPS) * gamma + beta


def _erf(x):
    # Abramowitz & Stegun 7.1.26 (max abs err ~1.5e-7); only uses exp (EUP).
    a1, a2, a3, a4, a5 = (0.254829592, -0.284496736, 1.421413741,
                          -1.453152027, 1.061405429)
    p = 0.3275911
    s = jnp.where(x >= 0.0, 1.0, -1.0)
    ax = jnp.abs(x)
    t = 1.0 / (1.0 + p * ax)
    poly = ((((a5 * t + a4) * t + a3) * t + a2) * t + a1) * t
    return s * (1.0 - poly * jnp.exp(-ax * ax))


def _gelu_exact(x):
    # torch.nn.GELU() default (erf form).  TODO(synk): if bit-exact erf is not
    # required, the tanh approximation moves the polynomial VALU work to EUP.
    return x * 0.5 * (1.0 + _erf(x * (1.0 / math.sqrt(2.0))))


# -------------------------------- kernels ----------------------------------

def _transformer_kernel(x_ref,
                        ag_ref, ab_ref, wqkv_ref, wo_ref, bo_ref,
                        fg_ref, fb_ref, w1_ref, b1_ref, w2_ref, b2_ref,
                        lng_ref, lnb_ref,
                        o_ref, *, heads, dim_head, compute_dtype):
    """One grid step = one transformer layer applied to one sequence block.

    The output block (same block index for every layer l) carries the f32
    residual stream in VMEM across the depth axis of the grid.
    """
    l = pl.program_id(1)
    cd = compute_dtype
    dh = dim_head

    @pl.when(l == 0)
    def _():
        o_ref[...] = x_ref[...]              # load residual stream from input

    x = o_ref[0]                             # (N, D) f32 residual stream
    n, d = x.shape

    # ---- attention sub-block:  x <- Attention(LN(x)) + x ----
    xn = _layernorm(x, ag_ref[0], ab_ref[0])                  # f32 stats
    xn_h = jnp.broadcast_to(xn.astype(cd), (heads, n, d))     # head batch dim
    # head-major weights -> q/k/v already (H, N, dh); no relayout needed.
    qkv = jnp.einsum("hnd,hde->hne", xn_h, wqkv_ref[0],
                     preferred_element_type=jnp.float32)      # (H, N, 3*dh)
    q = qkv[:, :, 0 * dh:1 * dh].astype(cd)   # scale folded into weights
    k = qkv[:, :, 1 * dh:2 * dh].astype(cd)
    v = qkv[:, :, 2 * dh:3 * dh].astype(cd)

    dots = jnp.einsum("hnd,hmd->hnm", q, k,
                      preferred_element_type=jnp.float32)     # (H, N, N) f32
    dots = dots - jnp.max(dots, axis=-1, keepdims=True)
    e = jnp.exp(dots)
    attn = e * (1.0 / jnp.sum(e, axis=-1, keepdims=True))     # exact softmax

    o = jnp.einsum("hnm,hmd->hnd", attn.astype(cd), v,
                   preferred_element_type=jnp.float32)        # (H, N, dh)
    p = jnp.einsum("hnd,hde->hne", o.astype(cd), wo_ref[0],
                   preferred_element_type=jnp.float32)        # (H, N, D)
    attn_out = p[0]
    for hh in range(1, heads):                # static unroll, leading-dim sum
        attn_out = attn_out + p[hh]
    x = attn_out + bo_ref[0] + x                              # f32 residual

    # ---- feed-forward sub-block:  x <- MLP(LN(x)) + x ----
    xn = _layernorm(x, fg_ref[0], fb_ref[0])
    h = jnp.dot(xn.astype(cd), w1_ref[0],
                preferred_element_type=jnp.float32) + b1_ref[0]
    h = _gelu_exact(h)                                        # f32 GELU
    x = jnp.dot(h.astype(cd), w2_ref[0],
                preferred_element_type=jnp.float32) + b2_ref[0] + x

    o_ref[0] = x.astype(o_ref.dtype)

    @pl.when(l == pl.num_programs(1) - 1)                     # final LayerNorm
    def _():
        o_ref[0] = _layernorm(x, lng_ref[...], lnb_ref[...]).astype(o_ref.dtype)


def _final_norm_kernel(x_ref, g_ref, b_ref, o_ref):
    # only used for depth == 0
    o_ref[0] = _layernorm(x_ref[0], g_ref[...], b_ref[...]).astype(o_ref.dtype)


# ------------------------------- wrappers -----------------------------------

def _vmem_limit_bytes():
    cap = 128 * 1024 * 1024
    try:
        cap = int(getattr(pltpu.get_tpu_info(), "vmem_capacity_bytes", cap))
    except Exception:
        pass
    # leave headroom for compiler scratch; ~48 MiB on v7x, ~96 MiB on v5e/v6e
    return max(32 * 1024 * 1024, min((cap * 3) // 4, 100 * 1024 * 1024))


def _prepare_params(params, *, heads, dim_head, compute_dtype):
    """Stack per-layer params along a leading layer axis, convert attention
    weights to head-major layout, fold the softmax scale into Q and cast the
    matmul weights to the compute dtype (biases / LN params stay f32)."""
    layers = params["layers"]
    depth = len(layers)
    f32 = jnp.float32
    prep = {"depth": depth,
            "lng": params["final"]["ln_g"].astype(f32),
            "lnb": params["final"]["ln_b"].astype(f32)}
    if depth == 0:
        return prep
    scale = dim_head ** -0.5

    def qkv_headmajor(w):                     # (D, 3*H*dh) -> (H, D, 3*dh)
        d_in = w.shape[0]
        w = w.reshape(d_in, 3, heads, dim_head).transpose(2, 0, 1, 3)
        w = w.reshape(heads, d_in, 3 * dim_head)
        wq = w[:, :, :dim_head] * scale       # fold 1/sqrt(dh) into Q columns
        return jnp.concatenate([wq, w[:, :, dim_head:]], axis=-1)

    def wo_headmajor(w):                      # (H*dh, D) -> (H, dh, D)
        return w.reshape(heads, dim_head, w.shape[-1])

    def stack(fn):
        return jnp.stack([fn(lyr) for lyr in layers], axis=0)

    prep.update(
        ag=stack(lambda p: p["attn"]["ln_g"].astype(f32)),
        ab=stack(lambda p: p["attn"]["ln_b"].astype(f32)),
        wqkv=stack(lambda p: qkv_headmajor(p["attn"]["wqkv"])).astype(compute_dtype),
        wo=stack(lambda p: wo_headmajor(p["attn"]["wo"])).astype(compute_dtype),
        bo=stack(lambda p: p["attn"]["bo"].astype(f32)),
        fg=stack(lambda p: p["ff"]["ln_g"].astype(f32)),
        fb=stack(lambda p: p["ff"]["ln_b"].astype(f32)),
        w1=stack(lambda p: p["ff"]["w1"]).astype(compute_dtype),
        b1=stack(lambda p: p["ff"]["b1"].astype(f32)),
        w2=stack(lambda p: p["ff"]["w2"]).astype(compute_dtype),
        b2=stack(lambda p: p["ff"]["b2"].astype(f32)),
    )
    return prep


def _final_norm(x, final_p):
    B, N, D = x.shape
    return pl.pallas_call(
        _final_norm_kernel,
        out_shape=jax.ShapeDtypeStruct((B, N, D), x.dtype),
        grid=(B,),
        in_specs=[pl.BlockSpec((1, N, D), lambda b: (b, 0, 0)),
                  pl.BlockSpec((1, D), lambda b: (0, 0)),
                  pl.BlockSpec((1, D), lambda b: (0, 0))],
        out_specs=pl.BlockSpec((1, N, D), lambda b: (b, 0, 0)),
        compiler_params=pltpu.CompilerParams(
            dimension_semantics=("parallel",),
            vmem_limit_bytes=_vmem_limit_bytes()),
    )(x, final_p["ln_g"].astype(jnp.float32),
      final_p["ln_b"].astype(jnp.float32))


def transformer_forward(x, params, *, heads, dim_head, mlp_dim,
                        compute_dtype=jnp.bfloat16):
    B, N, D = x.shape
    prep = _prepare_params(params, heads=heads, dim_head=dim_head,
                           compute_dtype=compute_dtype)
    depth = prep["depth"]
    if depth == 0:
        return _final_norm(x, params["final"])

    dh = dim_head
    act_spec = pl.BlockSpec((1, N, D), lambda b, l: (b, 0, 0))

    def layer_spec(shape):                    # stacked per-layer parameters
        nd = len(shape)
        return pl.BlockSpec((1,) + shape,
                            lambda b, l, _nd=nd: (l,) + (0,) * _nd)

    def shared_spec(shape):                   # grid-invariant (final LN)
        nd = len(shape)
        return pl.BlockSpec(shape, lambda b, l, _nd=nd: (0,) * _nd)

    kernel = functools.partial(_transformer_kernel, heads=heads,
                               dim_head=dim_head, compute_dtype=compute_dtype)

    return pl.pallas_call(
        kernel,
        out_shape=jax.ShapeDtypeStruct((B, N, D), x.dtype),
        grid=(B, depth),
        in_specs=[
            act_spec,
            layer_spec((1, D)), layer_spec((1, D)),            # attn LN
            layer_spec((heads, D, 3 * dh)),                    # wqkv head-major
            layer_spec((heads, dh, D)), layer_spec((1, D)),    # wo, bo
            layer_spec((1, D)), layer_spec((1, D)),            # ff LN
            layer_spec((D, mlp_dim)), layer_spec((1, mlp_dim)),  # w1, b1
            layer_spec((mlp_dim, D)), layer_spec((1, D)),        # w2, b2
            shared_spec((1, D)), shared_spec((1, D)),          # final LN
        ],
        out_specs=act_spec,
        input_output_aliases={0: 0},
        compiler_params=pltpu.CompilerParams(
            dimension_semantics=("parallel", "arbitrary"),
            vmem_limit_bytes=_vmem_limit_bytes()),
    )(x, prep["ag"], prep["ab"], prep["wqkv"], prep["wo"], prep["bo"],
      prep["fg"], prep["fb"], prep["w1"], prep["b1"], prep["w2"], prep["b2"],
      prep["lng"], prep["lnb"])


# ----------------------------- parameter init --------------------------------

def init_params(key, dim, depth, heads, dim_head, mlp_dim):
    inner = heads * dim_head

    def linear(k, fan_in, fan_out, bias=True):
        kw, kb = jax.random.split(k)
        bound = 1.0 / math.sqrt(fan_in)          # torch.nn.Linear default init
        w = jax.random.uniform(kw, (fan_in, fan_out), jnp.float32, -bound, bound)
        b = (jax.random.uniform(kb, (1, fan_out), jnp.float32, -bound, bound)
             if bias else None)
        return w, b

    ones = lambda: jnp.ones((1, dim), jnp.float32)
    zeros = lambda: jnp.zeros((1, dim), jnp.float32)

    layers = []
    for _ in range(depth):
        key, k1, k2, k3, k4 = jax.random.split(key, 5)
        wqkv, _ = linear(k1, dim, 3 * inner, bias=False)
        wo, bo = linear(k2, inner, dim)
        w1, b1 = linear(k3, dim, mlp_dim)
        w2, b2 = linear(k4, mlp_dim, dim)
        layers.append({
            "attn": {"ln_g": ones(), "ln_b": zeros(),
                     "wqkv": wqkv, "wo": wo, "bo": bo},
            "ff": {"ln_g": ones(), "ln_b": zeros(),
                   "w1": w1, "b1": b1, "w2": w2, "b2": b2},
        })
    return {"layers": layers,
            "final": {"ln_g": ones(), "ln_b": zeros()}}


# ------------------------- pure-JAX reference (check) ------------------------

def reference_forward(x, params, heads, dim_head):
    def ln(t, g, b):
        m = t.mean(-1, keepdims=True)
        v = jnp.square(t - m).mean(-1, keepdims=True)
        return (t - m) / jnp.sqrt(v + LN_EPS) * g + b

    B, N, _ = x.shape
    inner = heads * dim_head
    for layer in params["layers"]:
        a, f = layer["attn"], layer["ff"]
        xn = ln(x, a["ln_g"], a["ln_b"])
        qkv = xn @ a["wqkv"]
        q, k, v = jnp.split(qkv, 3, axis=-1)
        to_h = lambda t: t.reshape(B, N, heads, dim_head).transpose(0, 2, 1, 3)
        q, k, v = map(to_h, (q, k, v))
        dots = jnp.einsum("bhnd,bhmd->bhnm", q, k) * (dim_head ** -0.5)
        attn = jax.nn.softmax(dots, axis=-1)
        o = jnp.einsum("bhnm,bhmd->bhnd", attn, v)
        o = o.transpose(0, 2, 1, 3).reshape(B, N, inner)
        x = o @ a["wo"] + a["bo"] + x
        xn = ln(x, f["ln_g"], f["ln_b"])
        h = jax.nn.gelu(xn @ f["w1"] + f["b1"], approximate=False)
        x = h @ f["w2"] + f["b2"] + x
    return ln(x, params["final"]["ln_g"], params["final"]["ln_b"])


# ---------------------------------- main -------------------------------------

if __name__ == "__main__":
    # small but lane-dense config: N, D, dim_head multiples of 128
    dim, depth, heads, dim_head, mlp_dim = 128, 2, 2, 128, 256
    B, N = 2, 128

    key = jax.random.PRNGKey(0)
    kx, kp = jax.random.split(key)
    x = jax.random.normal(kx, (B, N, dim), jnp.float32)
    params = init_params(kp, dim, depth, heads, dim_head, mlp_dim)

    ref = reference_forward(x, params, heads, dim_head)

    # 1) f32 compute path: structural / numerical check at tight-ish tolerance
    #    (erf polynomial + MXU f32 pass decomposition are the only deviations).
    out_f32 = jax.block_until_ready(
        transformer_forward(x, params, heads=heads, dim_head=dim_head,
                            mlp_dim=mlp_dim, compute_dtype=jnp.float32))
    assert out_f32.shape == (B, N, dim) and out_f32.dtype == jnp.float32
    err_f32 = float(jnp.max(jnp.abs(out_f32 - ref)))
    if not (err_f32 < 1e-2):
        raise AssertionError(f"f32 kernel mismatch vs reference: {err_f32}")

    # 2) bf16 MXU path (production config): bf16 matmul operands, f32
    #    accumulation / LayerNorm / softmax / residual stream.
    out_bf16 = jax.block_until_ready(
        transformer_forward(x, params, heads=heads, dim_head=dim_head,
                            mlp_dim=mlp_dim, compute_dtype=jnp.bfloat16))
    err_bf16 = float(jnp.max(jnp.abs(out_bf16 - ref)))
    if not (err_bf16 < 1e-1):
        raise AssertionError(f"bf16 kernel mismatch vs reference: {err_bf16}")

    print("KERNEL_OK")
</pallas_src>

<mosaic_0001>
module attributes {stable_mosaic.version = 11 : i64} {
  func.func @_transformer_kernel(%arg0: i32, %arg1: i32, %arg2: memref<1x128x128xf32, #tpu.memory_space<vmem>>, %arg3: memref<1x1x128xf32, #tpu.memory_space<vmem>>, %arg4: memref<1x1x128xf32, #tpu.memory_space<vmem>>, %arg5: memref<1x2x128x384xf32, #tpu.memory_space<vmem>>, %arg6: memref<1x2x128x128xf32, #tpu.memory_space<vmem>>, %arg7: memref<1x1x128xf32, #tpu.memory_space<vmem>>, %arg8: memref<1x1x128xf32, #tpu.memory_space<vmem>>, %arg9: memref<1x1x128xf32, #tpu.memory_space<vmem>>, %arg10: memref<1x128x256xf32, #tpu.memory_space<vmem>>, %arg11: memref<1x1x256xf32, #tpu.memory_space<vmem>>, %arg12: memref<1x256x128xf32, #tpu.memory_space<vmem>>, %arg13: memref<1x1x128xf32, #tpu.memory_space<vmem>>, %arg14: memref<1x128xf32, #tpu.memory_space<vmem>>, %arg15: memref<1x128xf32, #tpu.memory_space<vmem>>, %arg16: memref<1x128x128xf32, #tpu.memory_space<vmem>>) attributes {dimension_semantics = [#tpu.dimension_semantics<parallel>, #tpu.dimension_semantics<arbitrary>], iteration_bounds = array<i64: 2, 2>, scalar_prefetch = 0 : i64, scratch_operands = 0 : i64, tpu.core_type = #tpu.core_type<tc>, window_params = [{transform_indices = @transform_0, window_bounds = array<i64: 1, 128, 128>}, {transform_indices = @transform_1, window_bounds = array<i64: 1, 1, 128>}, {transform_indices = @transform_2, window_bounds = array<i64: 1, 1, 128>}, {transform_indices = @transform_3, window_bounds = array<i64: 1, 2, 128, 384>}, {transform_indices = @transform_4, window_bounds = array<i64: 1, 2, 128, 128>}, {transform_indices = @transform_5, window_bounds = array<i64: 1, 1, 128>}, {transform_indices = @transform_6, window_bounds = array<i64: 1, 1, 128>}, {transform_indices = @transform_7, window_bounds = array<i64: 1, 1, 128>}, {transform_indices = @transform_8, window_bounds = array<i64: 1, 128, 256>}, {transform_indices = @transform_9, window_bounds = array<i64: 1, 1, 256>}, {transform_indices = @transform_10, window_bounds = array<i64: 1, 256, 128>}, {transform_indices = @transform_11, window_bounds = array<i64: 1, 1, 128>}, {pipeline_mode = #tpu.pipeline_mode<synchronous>, transform_indices = @transform_12, window_bounds = array<i64: 1, 128>}, {pipeline_mode = #tpu.pipeline_mode<synchronous>, transform_indices = @transform_13, window_bounds = array<i64: 1, 128>}, {transform_indices = @transform_14, window_bounds = array<i64: 1, 128, 128>}]} {
    %c0_i32 = arith.constant 0 : i32
    %0 = arith.cmpi eq, %arg1, %c0_i32 : i32
    %1 = arith.extui %0 : i1 to i32
    %c0_i32_0 = arith.constant 0 : i32
    %2 = arith.cmpi ne, %1, %c0_i32_0 : i32
    scf.if %2 {
      %c0_76 = arith.constant 0 : index
      %c0_77 = arith.constant 0 : index
      %c0_78 = arith.constant 0 : index
      %153 = vector.load %arg2[%c0_76, %c0_77, %c0_78] : memref<1x128x128xf32, #tpu.memory_space<vmem>>, vector<1x128x128xf32>
      %c0_79 = arith.constant 0 : index
      %c0_80 = arith.constant 0 : index
      %c0_81 = arith.constant 0 : index
      %154 = vector.load %arg16[%c0_79, %c0_80, %c0_81] : memref<1x128x128xf32, #tpu.memory_space<vmem>>, vector<1x128x128xf32>
      tpu.vector_store %arg16[%c0_79, %c0_80, %c0_81], %153 {strides = array<i32>} : memref<1x128x128xf32, #tpu.memory_space<vmem>>, vector<1x128x128xf32>,
    } else {
    }
    %c0 = arith.constant 0 : index
    %c0_1 = arith.constant 0 : index
    %c0_2 = arith.constant 0 : index
    %3 = vector.load %arg16[%c0, %c0_1, %c0_2] : memref<1x128x128xf32, #tpu.memory_space<vmem>>, vector<1x128x128xf32>
    %4 = vector.shape_cast %3 : vector<1x128x128xf32> to vector<128x128xf32>
    %c0_3 = arith.constant 0 : index
    %c0_4 = arith.constant 0 : index
    %c0_5 = arith.constant 0 : index
    %5 = vector.load %arg3[%c0_3, %c0_4, %c0_5] : memref<1x1x128xf32, #tpu.memory_space<vmem>>, vector<1x1x128xf32>
    %6 = vector.shape_cast %5 : vector<1x1x128xf32> to vector<1x128xf32>
    %c0_6 = arith.constant 0 : index
    %c0_7 = arith.constant 0 : index
    %c0_8 = arith.constant 0 : index
    %7 = vector.load %arg4[%c0_6, %c0_7, %c0_8] : memref<1x1x128xf32, #tpu.memory_space<vmem>>, vector<1x1x128xf32>
    %8 = vector.shape_cast %7 : vector<1x1x128xf32> to vector<1x128xf32>
    %cst = arith.constant dense<0.000000e+00> : vector<128xf32>
    %9 = vector.multi_reduction <add>, %4, %cst [1] : vector<128x128xf32> to vector<128xf32>
    %10 = vector.shape_cast %9 : vector<128xf32> to vector<128x1xf32>
    %cst_9 = arith.constant 1.280000e+02 : f32
    %11 = vector.broadcast %cst_9 : f32 to vector<128x1xf32>
    %12 = arith.divf %10, %11 : vector<128x1xf32>
    %13 = vector.broadcast %12 : vector<128x1xf32> to vector<128x128xf32>
    %14 = arith.subf %4, %13 : vector<128x128xf32>
    %15 = arith.mulf %14, %14 : vector<128x128xf32>
    %cst_10 = arith.constant dense<0.000000e+00> : vector<128xf32>
    %16 = vector.multi_reduction <add>, %15, %cst_10 [1] : vector<128x128xf32> to vector<128xf32>
    %17 = vector.shape_cast %16 : vector<128xf32> to vector<128x1xf32>
    %cst_11 = arith.constant 1.280000e+02 : f32
    %18 = vector.broadcast %cst_11 : f32 to vector<128x1xf32>
    %19 = arith.divf %17, %18 : vector<128x1xf32>
    %20 = vector.broadcast %12 : vector<128x1xf32> to vector<128x128xf32>
    %21 = arith.subf %4, %20 : vector<128x128xf32>
    %cst_12 = arith.constant 9.99999974E-6 : f32
    %22 = vector.broadcast %cst_12 : f32 to vector<128x1xf32>
    %23 = arith.addf %19, %22 : vector<128x1xf32>
    %24 = math.rsqrt %23 : vector<128x1xf32>
    %25 = vector.broadcast %24 : vector<128x1xf32> to vector<128x128xf32>
    %26 = arith.mulf %21, %25 : vector<128x128xf32>
    %27 = vector.broadcast %6 : vector<1x128xf32> to vector<128x128xf32>
    %28 = arith.mulf %26, %27 : vector<128x128xf32>
    %29 = vector.broadcast %8 : vector<1x128xf32> to vector<128x128xf32>
    %30 = arith.addf %28, %29 : vector<128x128xf32>
    %31 = vector.shape_cast %30 : vector<128x128xf32> to vector<1x128x128xf32>
    %32 = vector.broadcast %31 : vector<1x128x128xf32> to vector<2x128x128xf32>
    %c0_13 = arith.constant 0 : index
    %c0_14 = arith.constant 0 : index
    %c0_15 = arith.constant 0 : index
    %c0_16 = arith.constant 0 : index
    %33 = vector.load %arg5[%c0_13, %c0_14, %c0_15, %c0_16] : memref<1x2x128x384xf32, #tpu.memory_space<vmem>>, vector<1x2x128x384xf32>
    %34 = vector.shape_cast %33 : vector<1x2x128x384xf32> to vector<2x128x384xf32>
    "tpu.trace_start"() <{level = 10 : i32, message = "hnd,hde->hne"}> : () -> ()
    %cst_17 = arith.constant dense<0.000000e+00> : vector<2x128x384xf32>
    %35 = tpu.matmul %32, %34, %cst_17 {dimension_numbers = #tpu.dot_dimension_numbers<[2], [1], [1], [2], [0, 0, 0, 1, 1, 2], [0], [0]>} : vector<2x128x128xf32>, vector<2x128x384xf32>, vector<2x128x384xf32> -> vector<2x128x384xf32>
    "tpu.trace_stop"() : () -> ()
    %36 = vector.extract_strided_slice %35 {offsets = [0, 0, 0], sizes = [2, 128, 128], strides = [1, 1, 1]} : vector<2x128x384xf32> to vector<2x128x128xf32>
    %37 = vector.extract_strided_slice %35 {offsets = [0, 0, 128], sizes = [2, 128, 128], strides = [1, 1, 1]} : vector<2x128x384xf32> to vector<2x128x128xf32>
    %38 = vector.extract_strided_slice %35 {offsets = [0, 0, 256], sizes = [2, 128, 128], strides = [1, 1, 1]} : vector<2x128x384xf32> to vector<2x128x128xf32>
    "tpu.trace_start"() <{level = 10 : i32, message = "hnd,hmd->hnm"}> : () -> ()
    %cst_18 = arith.constant dense<0.000000e+00> : vector<2x128x128xf32>
    %39 = tpu.matmul %36, %37, %cst_18 {dimension_numbers = #tpu.dot_dimension_numbers<[2], [2], [1], [1], [0, 0, 0, 1, 1, 1], [0], [0]>} : vector<2x128x128xf32>, vector<2x128x128xf32>, vector<2x128x128xf32> -> vector<2x128x128xf32>
    "tpu.trace_stop"() : () -> ()
    %cst_19 = arith.constant dense<0xFF800000> : vector<2x128xf32>
    %40 = vector.multi_reduction <maximumf>, %39, %cst_19 [2] : vector<2x128x128xf32> to vector<2x128xf32>
    %41 = vector.shape_cast %40 : vector<2x128xf32> to vector<2x128x1xf32>
    %42 = vector.broadcast %41 : vector<2x128x1xf32> to vector<2x128x128xf32>
    %43 = arith.subf %39, %42 : vector<2x128x128xf32>
    %44 = math.exp %43 : vector<2x128x128xf32>
    %cst_20 = arith.constant dense<0.000000e+00> : vector<2x128xf32>
    %45 = vector.multi_reduction <add>, %44, %cst_20 [2] : vector<2x128x128xf32> to vector<2x128xf32>
    %46 = vector.shape_cast %45 : vector<2x128xf32> to vector<2x128x1xf32>
    %cst_21 = arith.constant 1.000000e+00 : f32
    %47 = vector.broadcast %cst_21 : f32 to vector<2x128x1xf32>
    %48 = arith.divf %47, %46 : vector<2x128x1xf32>
    %49 = vector.broadcast %48 : vector<2x128x1xf32> to vector<2x128x128xf32>
    %50 = arith.mulf %44, %49 : vector<2x128x128xf32>
    "tpu.trace_start"() <{level = 10 : i32, message = "hnm,hmd->hnd"}> : () -> ()
    %cst_22 = arith.constant dense<0.000000e+00> : vector<2x128x128xf32>
    %51 = tpu.matmul %50, %38, %cst_22 {dimension_numbers = #tpu.dot_dimension_numbers<[2], [1], [1], [2], [0, 0, 0, 1, 1, 2], [0], [0]>} : vector<2x128x128xf32>, vector<2x128x128xf32>, vector<2x128x128xf32> -> vector<2x128x128xf32>
    "tpu.trace_stop"() : () -> ()
    %c0_23 = arith.constant 0 : index
    %c0_24 = arith.constant 0 : index
    %c0_25 = arith.constant 0 : index
    %c0_26 = arith.constant 0 : index
    %52 = vector.load %arg6[%c0_23, %c0_24, %c0_25, %c0_26] : memref<1x2x128x128xf32, #tpu.memory_space<vmem>>, vector<1x2x128x128xf32>
    %53 = vector.shape_cast %52 : vector<1x2x128x128xf32> to vector<2x128x128xf32>
    "tpu.trace_start"() <{level = 10 : i32, message = "hnd,hde->hne"}> : () -> ()
    %cst_27 = arith.constant dense<0.000000e+00> : vector<2x128x128xf32>
    %54 = tpu.matmul %51, %53, %cst_27 {dimension_numbers = #tpu.dot_dimension_numbers<[2], [1], [1], [2], [0, 0, 0, 1, 1, 2], [0], [0]>} : vector<2x128x128xf32>, vector<2x128x128xf32>, vector<2x128x128xf32> -> vector<2x128x128xf32>
    "tpu.trace_stop"() : () -> ()
    %55 = vector.extract_strided_slice %54 {offsets = [0, 0, 0], sizes = [1, 128, 128], strides = [1, 1, 1]} : vector<2x128x128xf32> to vector<1x128x128xf32>
    %56 = vector.shape_cast %55 : vector<1x128x128xf32> to vector<128x128xf32>
    %57 = vector.extract_strided_slice %54 {offsets = [1, 0, 0], sizes = [1, 128, 128], strides = [1, 1, 1]} : vector<2x128x128xf32> to vector<1x128x128xf32>
    %58 = vector.shape_cast %57 : vector<1x128x128xf32> to vector<128x128xf32>
    %59 = arith.addf %56, %58 : vector<128x128xf32>
    %c0_28 = arith.constant 0 : index
    %c0_29 = arith.constant 0 : index
    %c0_30 = arith.constant 0 : index
    %60 = vector.load %arg7[%c0_28, %c0_29, %c0_30] : memref<1x1x128xf32, #tpu.memory_space<vmem>>, vector<1x1x128xf32>
    %61 = vector.shape_cast %60 : vector<1x1x128xf32> to vector<1x128xf32>
    %62 = vector.broadcast %61 : vector<1x128xf32> to vector<128x128xf32>
    %63 = arith.addf %59, %62 : vector<128x128xf32>
    %64 = arith.addf %63, %4 : vector<128x128xf32>
    %c0_31 = arith.constant 0 : index
    %c0_32 = arith.constant 0 : index
    %c0_33 = arith.constant 0 : index
    %65 = vector.load %arg8[%c0_31, %c0_32, %c0_33] : memref<1x1x128xf32, #tpu.memory_space<vmem>>, vector<1x1x128xf32>
    %66 = vector.shape_cast %65 : vector<1x1x128xf32> to vector<1x128xf32>
    %c0_34 = arith.constant 0 : index
    %c0_35 = arith.constant 0 : index
    %c0_36 = arith.constant 0 : index
    %67 = vector.load %arg9[%c0_34, %c0_35, %c0_36] : memref<1x1x128xf32, #tpu.memory_space<vmem>>, vector<1x1x128xf32>
    %68 = vector.shape_cast %67 : vector<1x1x128xf32> to vector<1x128xf32>
    %cst_37 = arith.constant dense<0.000000e+00> : vector<128xf32>
    %69 = vector.multi_reduction <add>, %64, %cst_37 [1] : vector<128x128xf32> to vector<128xf32>
    %70 = vector.shape_cast %69 : vector<128xf32> to vector<128x1xf32>
    %cst_38 = arith.constant 1.280000e+02 : f32
    %71 = vector.broadcast %cst_38 : f32 to vector<128x1xf32>
    %72 = arith.divf %70, %71 : vector<128x1xf32>
    %73 = vector.broadcast %72 : vector<128x1xf32> to vector<128x128xf32>
    %74 = arith.subf %64, %73 : vector<128x128xf32>
    %75 = arith.mulf %74, %74 : vector<128x128xf32>
    %cst_39 = arith.constant dense<0.000000e+00> : vector<128xf32>
    %76 = vector.multi_reduction <add>, %75, %cst_39 [1] : vector<128x128xf32> to vector<128xf32>
    %77 = vector.shape_cast %76 : vector<128xf32> to vector<128x1xf32>
    %cst_40 = arith.constant 1.280000e+02 : f32
    %78 = vector.broadcast %cst_40 : f32 to vector<128x1xf32>
    %79 = arith.divf %77, %78 : vector<128x1xf32>
    %80 = vector.broadcast %72 : vector<128x1xf32> to vector<128x128xf32>
    %81 = arith.subf %64, %80 : vector<128x128xf32>
    %cst_41 = arith.constant 9.99999974E-6 : f32
    %82 = vector.broadcast %cst_41 : f32 to vector<128x1xf32>
    %83 = arith.addf %79, %82 : vector<128x1xf32>
    %84 = math.rsqrt %83 : vector<128x1xf32>
    %85 = vector.broadcast %84 : vector<128x1xf32> to vector<128x128xf32>
    %86 = arith.mulf %81, %85 : vector<128x128xf32>
    %87 = vector.broadcast %66 : vector<1x128xf32> to vector<128x128xf32>
    %88 = arith.mulf %86, %87 : vector<128x128xf32>
    %89 = vector.broadcast %68 : vector<1x128xf32> to vector<128x128xf32>
    %90 = arith.addf %88, %89 : vector<128x128xf32>
    %c0_42 = arith.constant 0 : index
    %c0_43 = arith.constant 0 : index
    %c0_44 = arith.constant 0 : index
    %91 = vector.load %arg10[%c0_42, %c0_43, %c0_44] : memref<1x128x256xf32, #tpu.memory_space<vmem>>, vector<1x128x256xf32>
    %92 = vector.shape_cast %91 : vector<1x128x256xf32> to vector<128x256xf32>
    %cst_45 = arith.constant dense<0.000000e+00> : vector<128x256xf32>
    %93 = tpu.matmul %90, %92, %cst_45 {dimension_numbers = #tpu.dot_dimension_numbers<[1], [0], [0], [1], [0, 0, 1, 1], [], []>} : vector<128x128xf32>, vector<128x256xf32>, vector<128x256xf32> -> vector<128x256xf32>
    %c0_46 = arith.constant 0 : index
    %c0_47 = arith.constant 0 : index
    %c0_48 = arith.constant 0 : index
    %94 = vector.load %arg11[%c0_46, %c0_47, %c0_48] : memref<1x1x256xf32, #tpu.memory_space<vmem>>, vector<1x1x256xf32>
    %95 = vector.shape_cast %94 : vector<1x1x256xf32> to vector<1x256xf32>
    %96 = vector.broadcast %95 : vector<1x256xf32> to vector<128x256xf32>
    %97 = arith.addf %93, %96 : vector<128x256xf32>
    %cst_49 = arith.constant 5.000000e-01 : f32
    %98 = vector.broadcast %cst_49 : f32 to vector<128x256xf32>
    %99 = arith.mulf %97, %98 : vector<128x256xf32>
    %cst_50 = arith.constant 0.707106769 : f32
    %100 = vector.broadcast %cst_50 : f32 to vector<128x256xf32>
    %101 = arith.mulf %97, %100 : vector<128x256xf32>
    %cst_51 = arith.constant 0.000000e+00 : f32
    %102 = vector.broadcast %cst_51 : f32 to vector<128x256xf32>
    %103 = arith.cmpf oge, %101, %102 : vector<128x256xf32>
    %cst_52 = arith.constant 1.000000e+00 : f32
    %cst_53 = arith.constant -1.000000e+00 : f32
    %104 = vector.broadcast %cst_52 : f32 to vector<128x256xf32>
    %105 = vector.broadcast %cst_53 : f32 to vector<128x256xf32>
    %106 = arith.select %103, %104, %105 : vector<128x256xi1>, vector<128x256xf32>
    %107 = math.absf %101 : vector<128x256xf32>
    %cst_54 = arith.constant 0.327591091 : f32
    %108 = vector.broadcast %cst_54 : f32 to vector<128x256xf32>
    %109 = arith.mulf %108, %107 : vector<128x256xf32>
    %cst_55 = arith.constant 1.000000e+00 : f32
    %110 = vector.broadcast %cst_55 : f32 to vector<128x256xf32>
    %111 = arith.addf %110, %109 : vector<128x256xf32>
    %cst_56 = arith.constant 1.000000e+00 : f32
    %112 = vector.broadcast %cst_56 : f32 to vector<128x256xf32>
    %113 = arith.divf %112, %111 : vector<128x256xf32>
    %cst_57 = arith.constant 1.06140542 : f32
    %114 = vector.broadcast %cst_57 : f32 to vector<128x256xf32>
    %115 = arith.mulf %114, %113 : vector<128x256xf32>
    %cst_58 = arith.constant -1.45315206 : f32
    %116 = vector.broadcast %cst_58 : f32 to vector<128x256xf32>
    %117 = arith.addf %115, %116 : vector<128x256xf32>
    %118 = arith.mulf %117, %113 : vector<128x256xf32>
    %cst_59 = arith.constant 1.42141378 : f32
    %119 = vector.broadcast %cst_59 : f32 to vector<128x256xf32>
    %120 = arith.addf %118, %119 : vector<128x256xf32>
    %121 = arith.mulf %120, %113 : vector<128x256xf32>
    %cst_60 = arith.constant -0.284496725 : f32
    %122 = vector.broadcast %cst_60 : f32 to vector<128x256xf32>
    %123 = arith.addf %121, %122 : vector<128x256xf32>
    %124 = arith.mulf %123, %113 : vector<128x256xf32>
    %cst_61 = arith.constant 0.254829586 : f32
    %125 = vector.broadcast %cst_61 : f32 to vector<128x256xf32>
    %126 = arith.addf %124, %125 : vector<128x256xf32>
    %127 = arith.mulf %126, %113 : vector<128x256xf32>
    %cst_62 = arith.constant 0.000000e+00 : f32
    %128 = vector.broadcast %cst_62 : f32 to vector<128x256xf32>
    %129 = arith.subf %128, %107 : vector<128x256xf32>
    %130 = arith.mulf %129, %107 : vector<128x256xf32>
    %131 = math.exp %130 : vector<128x256xf32>
    %132 = arith.mulf %127, %131 : vector<128x256xf32>
    %cst_63 = arith.constant 1.000000e+00 : f32
    %133 = vector.broadcast %cst_63 : f32 to vector<128x256xf32>
    %134 = arith.subf %133, %132 : vector<128x256xf32>
    %135 = arith.mulf %106, %134 : vector<128x256xf32>
    %cst_64 = arith.constant 1.000000e+00 : f32
    %136 = vector.broadcast %cst_64 : f32 to vector<128x256xf32>
    %137 = arith.addf %136, %135 : vector<128x256xf32>
    %138 = arith.mulf %99, %137 : vector<128x256xf32>
    %c0_65 = arith.constant 0 : index
    %c0_66 = arith.constant 0 : index
    %c0_67 = arith.constant 0 : index
    %139 = vector.load %arg12[%c0_65, %c0_66, %c0_67] : memref<1x256x128xf32, #tpu.memory_space<vmem>>, vector<1x256x128xf32>
    %140 = vector.shape_cast %139 : vector<1x256x128xf32> to vector<256x128xf32>
    %cst_68 = arith.constant dense<0.000000e+00> : vector<128x128xf32>
    %141 = tpu.matmul %138, %140, %cst_68 {dimension_numbers = #tpu.dot_dimension_numbers<[1], [0], [0], [1], [0, 0, 1, 1], [], []>} : vector<128x256xf32>, vector<256x128xf32>, vector<128x128xf32> -> vector<128x128xf32>
    %c0_69 = arith.constant 0 : index
    %c0_70 = arith.constant 0 : index
    %c0_71 = arith.constant 0 : index
    %142 = vector.load %arg13[%c0_69, %c0_70, %c0_71] : memref<1x1x128xf32, #tpu.memory_space<vmem>>, vector<1x1x128xf32>
    %143 = vector.shape_cast %142 : vector<1x1x128xf32> to vector<1x128xf32>
    %144 = vector.broadcast %143 : vector<1x128xf32> to vector<128x128xf32>
    %145 = arith.addf %141, %144 : vector<128x128xf32>
    %146 = arith.addf %145, %64 : vector<128x128xf32>
    %c0_72 = arith.constant 0 : index
    %c0_73 = arith.constant 0 : index
    %c0_74 = arith.constant 0 : index
    %147 = vector.load %arg16[%c0_72, %c0_73, %c0_74] : memref<1x128x128xf32, #tpu.memory_space<vmem>>, vector<1x128x128xf32>
    %148 = vector.shape_cast %147 : vector<1x128x128xf32> to vector<128x128xf32>
    %149 = vector.shape_cast %146 : vector<128x128xf32> to vector<1x128x128xf32>
    tpu.vector_store %arg16[%c0_72, %c0_73, %c0_74], %149 {strides = array<i32>} : memref<1x128x128xf32, #tpu.memory_space<vmem>>, vector<1x128x128xf32>,
    %c1_i32 = arith.constant 1 : i32
    %150 = arith.cmpi eq, %arg1, %c1_i32 : i32
    %151 = arith.extui %150 : i1 to i32
    %c0_i32_75 = arith.constant 0 : i32
    %152 = arith.cmpi ne, %151, %c0_i32_75 : i32
    scf.if %152 {
      %c0_76 = arith.constant 0 : index
      %c0_77 = arith.constant 0 : index
      %153 = vector.load %arg14[%c0_76, %c0_77] : memref<1x128xf32, #tpu.memory_space<vmem>>, vector<1x128xf32>
      %c0_78 = arith.constant 0 : index
      %c0_79 = arith.constant 0 : index
      %154 = vector.load %arg15[%c0_78, %c0_79] : memref<1x128xf32, #tpu.memory_space<vmem>>, vector<1x128xf32>
      %cst_80 = arith.constant dense<0.000000e+00> : vector<128xf32>
      %155 = vector.multi_reduction <add>, %146, %cst_80 [1] : vector<128x128xf32> to vector<128xf32>
      %156 = vector.shape_cast %155 : vector<128xf32> to vector<128x1xf32>
      %cst_81 = arith.constant 1.280000e+02 : f32
      %157 = vector.broadcast %cst_81 : f32 to vector<128x1xf32>
      %158 = arith.divf %156, %157 : vector<128x1xf32>
      %159 = vector.broadcast %158 : vector<128x1xf32> to vector<128x128xf32>
      %160 = arith.subf %146, %159 : vector<128x128xf32>
      %161 = arith.mulf %160, %160 : vector<128x128xf32>
      %cst_82 = arith.constant dense<0.000000e+00> : vector<128xf32>
      %162 = vector.multi_reduction <add>, %161, %cst_82 [1] : vector<128x128xf32> to vector<128xf32>
      %163 = vector.shape_cast %162 : vector<128xf32> to vector<128x1xf32>
      %cst_83 = arith.constant 1.280000e+02 : f32
      %164 = vector.broadcast %cst_83 : f32 to vector<128x1xf32>
      %165 = arith.divf %163, %164 : vector<128x1xf32>
      %166 = vector.broadcast %158 : vector<128x1xf32> to vector<128x128xf32>
      %167 = arith.subf %146, %166 : vector<128x128xf32>
      %cst_84 = arith.constant 9.99999974E-6 : f32
      %168 = vector.broadcast %cst_84 : f32 to vector<128x1xf32>
      %169 = arith.addf %165, %168 : vector<128x1xf32>
      %170 = math.rsqrt %169 : vector<128x1xf32>
      %171 = vector.broadcast %170 : vector<128x1xf32> to vector<128x128xf32>
      %172 = arith.mulf %167, %171 : vector<128x128xf32>
      %173 = vector.broadcast %153 : vector<1x128xf32> to vector<128x128xf32>
      %174 = arith.mulf %172, %173 : vector<128x128xf32>
      %175 = vector.broadcast %154 : vector<1x128xf32> to vector<128x128xf32>
      %176 = arith.addf %174, %175 : vector<128x128xf32>
      %c0_85 = arith.constant 0 : index
      %c0_86 = arith.constant 0 : index
      %c0_87 = arith.constant 0 : index
      %177 = vector.load %arg16[%c0_85, %c0_86, %c0_87] : memref<1x128x128xf32, #tpu.memory_space<vmem>>, vector<1x128x128xf32>
      %178 = vector.shape_cast %177 : vector<1x128x128xf32> to vector<128x128xf32>
      %179 = vector.shape_cast %176 : vector<128x128xf32> to vector<1x128x128xf32>
      tpu.vector_store %arg16[%c0_85, %c0_86, %c0_87], %179 {strides = array<i32>} : memref<1x128x128xf32, #tpu.memory_space<vmem>>, vector<1x128x128xf32>,
    } else {
    }
    return
  }
  func.func @transform_0(%arg0: i32, %arg1: i32) -> (i32, i32, i32) {
    %c0_i32 = arith.constant 0 : i32
    %c0_i32_0 = arith.constant 0 : i32
    %c0_i32_1 = arith.constant 0 : i32
    return %arg0, %c0_i32, %c0_i32_0 : i32, i32, i32
  }
  func.func @transform_1(%arg0: i32, %arg1: i32) -> (i32, i32, i32) {
    %c0_i32 = arith.constant 0 : i32
    %c0_i32_0 = arith.constant 0 : i32
    %c0_i32_1 = arith.constant 0 : i32
    return %arg1, %c0_i32, %c0_i32_0 : i32, i32, i32
  }
  func.func @transform_2(%arg0: i32, %arg1: i32) -> (i32, i32, i32) {
    %c0_i32 = arith.constant 0 : i32
    %c0_i32_0 = arith.constant 0 : i32
    %c0_i32_1 = arith.constant 0 : i32
    return %arg1, %c0_i32, %c0_i32_0 : i32, i32, i32
  }
  func.func @transform_3(%arg0: i32, %arg1: i32) -> (i32, i32, i32, i32) {
    %c0_i32 = arith.constant 0 : i32
    %c0_i32_0 = arith.constant 0 : i32
    %c0_i32_1 = arith.constant 0 : i32
    %c0_i32_2 = arith.constant 0 : i32
    return %arg1, %c0_i32, %c0_i32_0, %c0_i32_1 : i32, i32, i32, i32
  }
  func.func @transform_4(%arg0: i32, %arg1: i32) -> (i32, i32, i32, i32) {
    %c0_i32 = arith.constant 0 : i32
    %c0_i32_0 = arith.constant 0 : i32
    %c0_i32_1 = arith.constant 0 : i32
    %c0_i32_2 = arith.constant 0 : i32
    return %arg1, %c0_i32, %c0_i32_0, %c0_i32_1 : i32, i32, i32, i32
  }
  func.func @transform_5(%arg0: i32, %arg1: i32) -> (i32, i32, i32) {
    %c0_i32 = arith.constant 0 : i32
    %c0_i32_0 = arith.constant 0 : i32
    %c0_i32_1 = arith.constant 0 : i32
    return %arg1, %c0_i32, %c0_i32_0 : i32, i32, i32
  }
  func.func @transform_6(%arg0: i32, %arg1: i32) -> (i32, i32, i32) {
    %c0_i32 = arith.constant 0 : i32
    %c0_i32_0 = arith.constant 0 : i32
    %c0_i32_1 = arith.constant 0 : i32
    return %arg1, %c0_i32, %c0_i32_0 : i32, i32, i32
  }
  func.func @transform_7(%arg0: i32, %arg1: i32) -> (i32, i32, i32) {
    %c0_i32 = arith.constant 0 : i32
    %c0_i32_0 = arith.constant 0 : i32
    %c0_i32_1 = arith.constant 0 : i32
    return %arg1, %c0_i32, %c0_i32_0 : i32, i32, i32
  }
  func.func @transform_8(%arg0: i32, %arg1: i32) -> (i32, i32, i32) {
    %c0_i32 = arith.constant 0 : i32
    %c0_i32_0 = arith.constant 0 : i32
    %c0_i32_1 = arith.constant 0 : i32
    return %arg1, %c0_i32, %c0_i32_0 : i32, i32, i32
  }
  func.func @transform_9(%arg0: i32, %arg1: i32) -> (i32, i32, i32) {
    %c0_i32 = arith.constant 0 : i32
    %c0_i32_0 = arith.constant 0 : i32
    %c0_i32_1 = arith.constant 0 : i32
    return %arg1, %c0_i32, %c0_i32_0 : i32, i32, i32
  }
  func.func @transform_10(%arg0: i32, %arg1: i32) -> (i32, i32, i32) {
    %c0_i32 = arith.constant 0 : i32
    %c0_i32_0 = arith.constant 0 : i32
    %c0_i32_1 = arith.constant 0 : i32
    return %arg1, %c0_i32, %c0_i32_0 : i32, i32, i32
  }
  func.func @transform_11(%arg0: i32, %arg1: i32) -> (i32, i32, i32) {
    %c0_i32 = arith.constant 0 : i32
    %c0_i32_0 = arith.constant 0 : i32
    %c0_i32_1 = arith.constant 0 : i32
    return %arg1, %c0_i32, %c0_i32_0 : i32, i32, i32
  }
  func.func @transform_12(%arg0: i32, %arg1: i32) -> (i32, i32) {
    %c0_i32 = arith.constant 0 : i32
    %c0_i32_0 = arith.constant 0 : i32
    %c0_i32_1 = arith.constant 0 : i32
    return %c0_i32, %c0_i32_0 : i32, i32
  }
  func.func @transform_13(%arg0: i32, %arg1: i32) -> (i32, i32) {
    %c0_i32 = arith.constant 0 : i32
    %c0_i32_0 = arith.constant 0 : i32
    %c0_i32_1 = arith.constant 0 : i32
    return %c0_i32, %c0_i32_0 : i32, i32
  }
  func.func @transform_14(%arg0: i32, %arg1: i32) -> (i32, i32, i32) {
    %c0_i32 = arith.constant 0 : i32
    %c0_i32_0 = arith.constant 0 : i32
    %c0_i32_1 = arith.constant 0 : i32
    return %arg0, %c0_i32, %c0_i32_0 : i32, i32, i32
  }
}

</mosaic_0001>

<llo_original>
// kernel: tpu_custom_call.1
$region0: #{tpu_custom_call.1}
  #allocation0 [shape = 'u32[]', space=smem, size = 0x4, offset = 0x4, fixed_abs, tag = 'smem constant byte address 0x4 - core index']
  #allocation1 [shape = 'u32[72,128]{1,0:T(1,128)}', space=vmem, size = 0x9000, scoped, tag = 'internal scratch']
  %s0 = inlined_call_operand.hbm [shape: f32[2,128,128], index: 0, kind: input, shape index: {}, may-alias: {0,14}]
  %s1 = inlined_call_operand.hbm [shape: f32[2,1,128], index: 1, kind: input, shape index: {}]
  %s2 = inlined_call_operand.hbm [shape: f32[2,1,128], index: 2, kind: input, shape index: {}]
  %s3 = inlined_call_operand.hbm [shape: f32[2,2,128,384], index: 3, kind: input, shape index: {}]
  %s4 = inlined_call_operand.vmem [shape: f32[2,2,128,128], index: 4, kind: input, shape index: {}]
  %s5 = inlined_call_operand.hbm [shape: f32[2,1,128], index: 5, kind: input, shape index: {}]
  %s6 = inlined_call_operand.hbm [shape: f32[2,1,128], index: 6, kind: input, shape index: {}]
  %s7 = inlined_call_operand.hbm [shape: f32[2,1,128], index: 7, kind: input, shape index: {}]
  %s8 = inlined_call_operand.hbm [shape: f32[2,128,256], index: 8, kind: input, shape index: {}]
  %s9 = inlined_call_operand.vmem [shape: f32[2,1,256], index: 9, kind: input, shape index: {}]
  %s10 = inlined_call_operand.hbm [shape: f32[2,256,128], index: 10, kind: input, shape index: {}]
  %s11 = inlined_call_operand.hbm [shape: f32[2,1,128], index: 11, kind: input, shape index: {}]
  %s12 = inlined_call_operand.vmem [shape: f32[1,128], index: 12, kind: input, shape index: {}]
  %s13 = inlined_call_operand.vmem [shape: f32[1,128], index: 13, kind: input, shape index: {}]
  %s14 = inlined_call_operand.hbm [shape: f32[2,128,128], index: 14, kind: output, shape index: {}, may-alias: {0,14}]
  %s15 = sld [smem:[#allocation0]]
  $region137: #{tpu_custom_call.1} parent=0
    _
  %s17 = ssub.s32 1, %s15
  %s18 = scalar_select 0, %s17, %s15
  $region1: #{tpu_custom_call.1} parent=0
    #allocation2 [shape = 'u8[131072]{0}', space=vmem, size = 0x20000, scoped, tag = 'input window, operand 0']
    #allocation3 [shape = 's32[2]{0}', space=sflag, size = 0x8, scoped, tag = 'scoped memory for tpu_custom_call.1']
    #allocation4 [shape = 's32[2]{0}', space=sflag, size = 0x8, scoped, tag = 'scoped memory for tpu_custom_call.1']
    #allocation5 [shape = 'u8[1024]{0}', space=vmem, size = 0x400, scoped, tag = 'input window, operand 1']
    #allocation6 [shape = 's32[2]{0}', space=sflag, size = 0x8, scoped, tag = 'scoped memory for tpu_custom_call.1']
    #allocation7 [shape = 'u8[1024]{0}', space=vmem, size = 0x400, scoped, tag = 'input window, operand 2']
    #allocation8 [shape = 'u8[786432]{0}', space=vmem, size = 0xc0000, scoped, tag = 'input window, operand 3']
    #allocation9 [shape = 's32[2]{0}', space=sflag, size = 0x8, scoped, tag = 'scoped memory for tpu_custom_call.1']
    #allocation10 [shape = 'u8[1024]{0}', space=vmem, size = 0x400, scoped, tag = 'input window, operand 5']
    #allocation11 [shape = 'u8[1024]{0}', space=vmem, size = 0x400, scoped, tag = 'input window, operand 6']
    #allocation12 [shape = 's32[2]{0}', space=sflag, size = 0x8, scoped, tag = 'scoped memory for tpu_custom_call.1']
    #allocation13 [shape = 'u8[1024]{0}', space=vmem, size = 0x400, scoped, tag = 'input window, operand 7']
    #allocation14 [shape = 'u8[262144]{0}', space=vmem, size = 0x40000, scoped, tag = 'input window, operand 8']
    #allocation15 [shape = 's32[2]{0}', space=sflag, size = 0x8, scoped, tag = 'scoped memory for tpu_custom_call.1']
    #allocation16 [shape = 'u8[262144]{0}', space=vmem, size = 0x40000, scoped, tag = 'input window, operand 10']
    #allocation17 [shape = 'u8[1024]{0}', space=vmem, size = 0x400, scoped, tag = 'input window, operand 11']
    #allocation18 [shape = 's32[2]{0}', space=sflag, size = 0x8, scoped, tag = 'scoped memory for tpu_custom_call.1']
    #allocation19 [shape = 'u8[131072]{0}', space=vmem, size = 0x20000, scoped, tag = 'output window, operand 0']
    %19 = vsyncpa [#allocation3], 0
    %s20 = scalar_lea.sflag [#allocation3], 1
    %21 = vsyncpa %s20, 0
    %22 = vsyncpa [#allocation6], 0
    %s23 = scalar_lea.sflag [#allocation6], 1
    %24 = vsyncpa %s23, 0
    %25 = vsyncpa [#allocation9], 0
    %s26 = scalar_lea.sflag [#allocation9], 1
    %27 = vsyncpa %s26, 0
    %28 = vsyncpa [#allocation12], 0
    %s29 = scalar_lea.sflag [#allocation12], 1
    %30 = vsyncpa %s29, 0
    %31 = vsyncpa [#allocation15], 0
    %s32 = scalar_lea.sflag [#allocation15], 1
    %33 = vsyncpa %s32, 0
    %34 = vsyncpa [#allocation18], 0
    %s35 = scalar_lea.sflag [#allocation18], 1
    %36 = vsyncpa %s35, 0
    %37 = vsyncpa [#allocation4], 0
    %s38 = scalar_lea.sflag [#allocation4], 1
    %39 = vsyncpa %s38, 0
    loop: start=0, step=1, limit=6
    $region2: #{tpu_custom_call.1} parent=1 // loop_pre_header
      _
    $region3: #{tpu_custom_call.1} parent=1 // loop_header
      %s41 = sphi 0, %s45
      %p42 = scmp.ge.s32.totalorder %s41, 6
      %s48 = sphi 0, %s60
      %s49 = sphi 0, %s56
      %s50 = sphi 0, %s48
      %s51 = sphi 0, %s49
      %s52 = sphi 0, %s50
      %s53 = sphi 0, %s51
      %s63 = sphi 0, %s65
      %s66 = sphi 0, %s63
      %s67 = sphi 0, %s66
      %s83 = sphi 0, %s67
      %s89 = sphi 0, %s91
      %s92 = sphi 0, %s89
      %s93 = sphi 0, %s92
      %s109 = sphi 0, %s93
      %s115 = sphi 0, %s117
      %s118 = sphi 0, %s115
      %s119 = sphi 0, %s118
      %s135 = sphi 0, %s119
      %s141 = sphi 0, %s143
      %s144 = sphi 0, %s141
      %s145 = sphi 0, %s144
      %s161 = sphi 0, %s145
      %s167 = sphi 0, %s169
      %s170 = sphi 0, %s167
      %s171 = sphi 0, %s170
      %s187 = sphi 0, %s171
      %s193 = sphi 0, %s195
      %s196 = sphi 0, %s193
      %s197 = sphi 0, %s196
      %s213 = sphi 0, %s197
      %s219 = sphi 0, %s221
      %s222 = sphi 0, %s219
      %s223 = sphi 0, %s222
      %s239 = sphi 0, %s223
      %s245 = sphi 0, %s247
      %s248 = sphi 0, %s245
      %s249 = sphi 0, %s248
      %s265 = sphi 0, %s249
      %s271 = sphi 0, %s273
      %s274 = sphi 0, %s271
      %s275 = sphi 0, %s274
      %s291 = sphi 0, %s275
      %s297 = sphi 0, %s299
      %s300 = sphi 0, %s297
      %s301 = sphi 0, %s300
      %s317 = sphi 0, %s301
      %s323 = sphi 0, %s325
      %s326 = sphi 0, %s323
      %s327 = sphi 0, %s326
      %s343 = sphi 0, %s327
      %s349 = sphi 0, %s351
      %s352 = sphi 0, %s349
      %s353 = sphi 0, %s352
      %s369 = sphi 0, %s353
      %s373 = sphi 0, %s373
      %s375 = sphi 0, %s373
      %s376 = sphi 0, %s375
      %s390 = sphi 0, %s376
      %s394 = sphi 0, %s394
      %s396 = sphi 0, %s394
      %s397 = sphi 0, %s396
      %s411 = sphi 0, %s397
      %s417 = sphi 0, %s419
      %s420 = sphi 0, %s417
      %s421 = sphi 0, %s420
      %s437 = sphi 0, %s421
    $region4: #{tpu_custom_call.1} parent=1 // loop_header_branch
      %44 = sbr.rel (%p42) target = $region8
    $region5: #{tpu_custom_call.1} parent=1 // loop_body
      %s46 = ssub.s32 %s41, 1
      %s47 = ssub.s32 %s41, 2
      %s54 = sadd.s32 1, %s49
      %p55 = scmp.ge.s32.totalorder %s54, 2
      %s56 = scalar_select %p55, 0, %s54
      %s57 = sadd.s32 1, %s48
      %s58 = scalar_select %p55, %s57, %s48
      %p59 = scmp.ge.s32.totalorder %s58, 2
      %s60 = scalar_select %p59, 0, %s58
      %s61 = ssub.s32 %s48, %s60
      %p62 = scmp.eq.s32.totalorder %s61, 0
      %s64 = sadd.s32 %s63, 1
      %s65 = scalar_select %p62, %s63, %s64
      %p68 = pneg %p62
      %p69 = scmp.eq.s32.totalorder %s41, 3
      %p70 = por %p68, %p69
      %p71 = scmp.ne.s32.totalorder %s63, %s66
      %p72 = scmp.eq.s32.totalorder %s41, 0
      %p73 = por %p71, %p72
      %p74 = scmp.ne.s32.totalorder %s63, %s66
      %p75 = scmp.eq.s32.totalorder %s46, 3
      %p76 = por %p74, %p75
      %p77 = scmp.ne.s32.totalorder %s66, %s67
      %p78 = scmp.eq.s32.totalorder %s46, 0
      %p79 = por %p77, %p78
      %p80 = scmp.ne.s32.totalorder %s66, %s67
      %p81 = scmp.eq.s32.totalorder %s47, 3
      %p82 = por %p80, %p81
      %p84 = scmp.ne.s32.totalorder %s67, %s83
      %p85 = scmp.eq.s32.totalorder %s47, 0
      %p86 = por %p84, %p85
      %s87 = ssub.s32 %s49, %s56
      %p88 = scmp.eq.s32.totalorder %s87, 0
      %s90 = sadd.s32 %s89, 1
      %s91 = scalar_select %p88, %s89, %s90
      %p94 = pneg %p88
      %p95 = scmp.eq.s32.totalorder %s41, 3
      %p96 = por %p94, %p95
      %p97 = scmp.ne.s32.totalorder %s89, %s92
      %p98 = scmp.eq.s32.totalorder %s41, 0
      %p99 = por %p97, %p98
      %p100 = scmp.ne.s32.totalorder %s89, %s92
      %p101 = scmp.eq.s32.totalorder %s46, 3
      %p102 = por %p100, %p101
      %p103 = scmp.ne.s32.totalorder %s92, %s93
      %p104 = scmp.eq.s32.totalorder %s46, 0
      %p105 = por %p103, %p104
      %p106 = scmp.ne.s32.totalorder %s92, %s93
      %p107 = scmp.eq.s32.totalorder %s47, 3
      %p108 = por %p106, %p107
      %p110 = scmp.ne.s32.totalorder %s93, %s109
      %p111 = scmp.eq.s32.totalorder %s47, 0
      %p112 = por %p110, %p111
      %s113 = ssub.s32 %s49, %s56
      %p114 = scmp.eq.s32.totalorder %s113, 0
      %s116 = sadd.s32 %s115, 1
      %s117 = scalar_select %p114, %s115, %s116
      %p120 = pneg %p114
      %p121 = scmp.eq.s32.totalorder %s41, 3
      %p122 = por %p120, %p121
      %p123 = scmp.ne.s32.totalorder %s115, %s118
      %p124 = scmp.eq.s32.totalorder %s41, 0
      %p125 = por %p123, %p124
      %p126 = scmp.ne.s32.totalorder %s115, %s118
      %p127 = scmp.eq.s32.totalorder %s46, 3
      %p128 = por %p126, %p127
      %p129 = scmp.ne.s32.totalorder %s118, %s119
      %p130 = scmp.eq.s32.totalorder %s46, 0
      %p131 = por %p129, %p130
      %p132 = scmp.ne.s32.totalorder %s118, %s119
      %p133 = scmp.eq.s32.totalorder %s47, 3
      %p134 = por %p132, %p133
      %p136 = scmp.ne.s32.totalorder %s119, %s135
      %p137 = scmp.eq.s32.totalorder %s47, 0
      %p138 = por %p136, %p137
      %s139 = ssub.s32 %s49, %s56
      %p140 = scmp.eq.s32.totalorder %s139, 0
      %s142 = sadd.s32 %s141, 1
      %s143 = scalar_select %p140, %s141, %s142
      %p146 = pneg %p140
      %p147 = scmp.eq.s32.totalorder %s41, 3
      %p148 = por %p146, %p147
      %p149 = scmp.ne.s32.totalorder %s141, %s144
      %p150 = scmp.eq.s32.totalorder %s41, 0
      %p151 = por %p149, %p150
      %p152 = scmp.ne.s32.totalorder %s141, %s144
      %p153 = scmp.eq.s32.totalorder %s46, 3
      %p154 = por %p152, %p153
      %p155 = scmp.ne.s32.totalorder %s144, %s145
      %p156 = scmp.eq.s32.totalorder %s46, 0
      %p157 = por %p155, %p156
      %p158 = scmp.ne.s32.totalorder %s144, %s145
      %p159 = scmp.eq.s32.totalorder %s47, 3
      %p160 = por %p158, %p159
      %p162 = scmp.ne.s32.totalorder %s145, %s161
      %p163 = scmp.eq.s32.totalorder %s47, 0
      %p164 = por %p162, %p163
      %s165 = ssub.s32 %s49, %s56
      %p166 = scmp.eq.s32.totalorder %s165, 0
      %s168 = sadd.s32 %s167, 1
      %s169 = scalar_select %p166, %s167, %s168
      %p172 = pneg %p166
      %p173 = scmp.eq.s32.totalorder %s41, 3
      %p174 = por %p172, %p173
      %p175 = scmp.ne.s32.totalorder %s167, %s170
      %p176 = scmp.eq.s32.totalorder %s41, 0
      %p177 = por %p175, %p176
      %p178 = scmp.ne.s32.totalorder %s167, %s170
      %p179 = scmp.eq.s32.totalorder %s46, 3
      %p180 = por %p178, %p179
      %p181 = scmp.ne.s32.totalorder %s170, %s171
      %p182 = scmp.eq.s32.totalorder %s46, 0
      %p183 = por %p181, %p182
      %p184 = scmp.ne.s32.totalorder %s170, %s171
      %p185 = scmp.eq.s32.totalorder %s47, 3
      %p186 = por %p184, %p185
      %p188 = scmp.ne.s32.totalorder %s171, %s187
      %p189 = scmp.eq.s32.totalorder %s47, 0
      %p190 = por %p188, %p189
      %s191 = ssub.s32 %s49, %s56
      %p192 = scmp.eq.s32.totalorder %s191, 0
      %s194 = sadd.s32 %s193, 1
      %s195 = scalar_select %p192, %s193, %s194
      %p198 = pneg %p192
      %p199 = scmp.eq.s32.totalorder %s41, 3
      %p200 = por %p198, %p199
      %p201 = scmp.ne.s32.totalorder %s193, %s196
      %p202 = scmp.eq.s32.totalorder %s41, 0
      %p203 = por %p201, %p202
      %p204 = scmp.ne.s32.totalorder %s193, %s196
      %p205 = scmp.eq.s32.totalorder %s46, 3
      %p206 = por %p204, %p205
      %p207 = scmp.ne.s32.totalorder %s196, %s197
      %p208 = scmp.eq.s32.totalorder %s46, 0
      %p209 = por %p207, %p208
      %p210 = scmp.ne.s32.totalorder %s196, %s197
      %p211 = scmp.eq.s32.totalorder %s47, 3
      %p212 = por %p210, %p211
      %p214 = scmp.ne.s32.totalorder %s197, %s213
      %p215 = scmp.eq.s32.totalorder %s47, 0
      %p216 = por %p214, %p215
      %s217 = ssub.s32 %s49, %s56
      %p218 = scmp.eq.s32.totalorder %s217, 0
      %s220 = sadd.s32 %s219, 1
      %s221 = scalar_select %p218, %s219, %s220
      %p224 = pneg %p218
      %p225 = scmp.eq.s32.totalorder %s41, 3
      %p226 = por %p224, %p225
      %p227 = scmp.ne.s32.totalorder %s219, %s222
      %p228 = scmp.eq.s32.totalorder %s41, 0
      %p229 = por %p227, %p228
      %p230 = scmp.ne.s32.totalorder %s219, %s222
      %p231 = scmp.eq.s32.totalorder %s46, 3
      %p232 = por %p230, %p231
      %p233 = scmp.ne.s32.totalorder %s222, %s223
      %p234 = scmp.eq.s32.totalorder %s46, 0
      %p235 = por %p233, %p234
      %p236 = scmp.ne.s32.totalorder %s222, %s223
      %p237 = scmp.eq.s32.totalorder %s47, 3
      %p238 = por %p236, %p237
      %p240 = scmp.ne.s32.totalorder %s223, %s239
      %p241 = scmp.eq.s32.totalorder %s47, 0
      %p242 = por %p240, %p241
      %s243 = ssub.s32 %s49, %s56
      %p244 = scmp.eq.s32.totalorder %s243, 0
      %s246 = sadd.s32 %s245, 1
      %s247 = scalar_select %p244, %s245, %s246
      %p250 = pneg %p244
      %p251 = scmp.eq.s32.totalorder %s41, 3
      %p252 = por %p250, %p251
      %p253 = scmp.ne.s32.totalorder %s245, %s248
      %p254 = scmp.eq.s32.totalorder %s41, 0
      %p255 = por %p253, %p254
      %p256 = scmp.ne.s32.totalorder %s245, %s248
      %p257 = scmp.eq.s32.totalorder %s46, 3
      %p258 = por %p256, %p257
      %p259 = scmp.ne.s32.totalorder %s248, %s249
      %p260 = scmp.eq.s32.totalorder %s46, 0
      %p261 = por %p259, %p260
      %p262 = scmp.ne.s32.totalorder %s248, %s249
      %p263 = scmp.eq.s32.totalorder %s47, 3
      %p264 = por %p262, %p263
      %p266 = scmp.ne.s32.totalorder %s249, %s265
      %p267 = scmp.eq.s32.totalorder %s47, 0
      %p268 = por %p266, %p267
      %s269 = ssub.s32 %s49, %s56
      %p270 = scmp.eq.s32.totalorder %s269, 0
      %s272 = sadd.s32 %s271, 1
      %s273 = scalar_select %p270, %s271, %s272
      %p276 = pneg %p270
      %p277 = scmp.eq.s32.totalorder %s41, 3
      %p278 = por %p276, %p277
      %p279 = scmp.ne.s32.totalorder %s271, %s274
      %p280 = scmp.eq.s32.totalorder %s41, 0
      %p281 = por %p279, %p280
      %p282 = scmp.ne.s32.totalorder %s271, %s274
      %p283 = scmp.eq.s32.totalorder %s46, 3
      %p284 = por %p282, %p283
      %p285 = scmp.ne.s32.totalorder %s274, %s275
      %p286 = scmp.eq.s32.totalorder %s46, 0
      %p287 = por %p285, %p286
      %p288 = scmp.ne.s32.totalorder %s274, %s275
      %p289 = scmp.eq.s32.totalorder %s47, 3
      %p290 = por %p288, %p289
      %p292 = scmp.ne.s32.totalorder %s275, %s291
      %p293 = scmp.eq.s32.totalorder %s47, 0
      %p294 = por %p292, %p293
      %s295 = ssub.s32 %s49, %s56
      %p296 = scmp.eq.s32.totalorder %s295, 0
      %s298 = sadd.s32 %s297, 1
      %s299 = scalar_select %p296, %s297, %s298
      %p302 = pneg %p296
      %p303 = scmp.eq.s32.totalorder %s41, 3
      %p304 = por %p302, %p303
      %p305 = scmp.ne.s32.totalorder %s297, %s300
      %p306 = scmp.eq.s32.totalorder %s41, 0
      %p307 = por %p305, %p306
      %p308 = scmp.ne.s32.totalorder %s297, %s300
      %p309 = scmp.eq.s32.totalorder %s46, 3
      %p310 = por %p308, %p309
      %p311 = scmp.ne.s32.totalorder %s300, %s301
      %p312 = scmp.eq.s32.totalorder %s46, 0
      %p313 = por %p311, %p312
      %p314 = scmp.ne.s32.totalorder %s300, %s301
      %p315 = scmp.eq.s32.totalorder %s47, 3
      %p316 = por %p314, %p315
      %p318 = scmp.ne.s32.totalorder %s301, %s317
      %p319 = scmp.eq.s32.totalorder %s47, 0
      %p320 = por %p318, %p319
      %s321 = ssub.s32 %s49, %s56
      %p322 = scmp.eq.s32.totalorder %s321, 0
      %s324 = sadd.s32 %s323, 1
      %s325 = scalar_select %p322, %s323, %s324
      %p328 = pneg %p322
      %p329 = scmp.eq.s32.totalorder %s41, 3
      %p330 = por %p328, %p329
      %p331 = scmp.ne.s32.totalorder %s323, %s326
      %p332 = scmp.eq.s32.totalorder %s41, 0
      %p333 = por %p331, %p332
      %p334 = scmp.ne.s32.totalorder %s323, %s326
      %p335 = scmp.eq.s32.totalorder %s46, 3
      %p336 = por %p334, %p335
      %p337 = scmp.ne.s32.totalorder %s326, %s327
      %p338 = scmp.eq.s32.totalorder %s46, 0
      %p339 = por %p337, %p338
      %p340 = scmp.ne.s32.totalorder %s326, %s327
      %p341 = scmp.eq.s32.totalorder %s47, 3
      %p342 = por %p340, %p341
      %p344 = scmp.ne.s32.totalorder %s327, %s343
      %p345 = scmp.eq.s32.totalorder %s47, 0
      %p346 = por %p344, %p345
      %s347 = ssub.s32 %s49, %s56
      %p348 = scmp.eq.s32.totalorder %s347, 0
      %s350 = sadd.s32 %s349, 1
      %s351 = scalar_select %p348, %s349, %s350
      %p354 = pneg %p348
      %p355 = scmp.eq.s32.totalorder %s41, 3
      %p356 = por %p354, %p355
      %p357 = scmp.ne.s32.totalorder %s349, %s352
      %p358 = scmp.eq.s32.totalorder %s41, 0
      %p359 = por %p357, %p358
      %p360 = scmp.ne.s32.totalorder %s349, %s352
      %p361 = scmp.eq.s32.totalorder %s46, 3
      %p362 = por %p360, %p361
      %p363 = scmp.ne.s32.totalorder %s352, %s353
      %p364 = scmp.eq.s32.totalorder %s46, 0
      %p365 = por %p363, %p364
      %p366 = scmp.ne.s32.totalorder %s352, %s353
      %p367 = scmp.eq.s32.totalorder %s47, 3
      %p368 = por %p366, %p367
      %p370 = scmp.ne.s32.totalorder %s353, %s369
      %p371 = scmp.eq.s32.totalorder %s47, 0
      %p372 = por %p370, %p371
      %s374 = sadd.s32 %s373, 1
      %p377 = scmp.eq.s32.totalorder %s41, 3
      %p378 = scmp.ne.s32.totalorder %s373, %s375
      %p379 = scmp.eq.s32.totalorder %s41, 0
      %p380 = por %p378, %p379
      %p381 = scmp.ne.s32.totalorder %s373, %s375
      %p382 = scmp.eq.s32.totalorder %s46, 3
      %p383 = por %p381, %p382
      %p384 = scmp.ne.s32.totalorder %s375, %s376
      %p385 = scmp.eq.s32.totalorder %s46, 0
      %p386 = por %p384, %p385
      %p387 = scmp.ne.s32.totalorder %s375, %s376
      %p388 = scmp.eq.s32.totalorder %s47, 3
      %p389 = por %p387, %p388
      %p391 = scmp.ne.s32.totalorder %s376, %s390
      %p392 = scmp.eq.s32.totalorder %s47, 0
      %p393 = por %p391, %p392
      %s395 = sadd.s32 %s394, 1
      %p398 = scmp.eq.s32.totalorder %s41, 3
      %p399 = scmp.ne.s32.totalorder %s394, %s396
      %p400 = scmp.eq.s32.totalorder %s41, 0
      %p401 = por %p399, %p400
      %p402 = scmp.ne.s32.totalorder %s394, %s396
      %p403 = scmp.eq.s32.totalorder %s46, 3
      %p404 = por %p402, %p403
      %p405 = scmp.ne.s32.totalorder %s396, %s397
      %p406 = scmp.eq.s32.totalorder %s46, 0
      %p407 = por %p405, %p406
      %p408 = scmp.ne.s32.totalorder %s396, %s397
      %p409 = scmp.eq.s32.totalorder %s47, 3
      %p410 = por %p408, %p409
      %p412 = scmp.ne.s32.totalorder %s397, %s411
      %p413 = scmp.eq.s32.totalorder %s47, 0
      %p414 = por %p412, %p413
      %s415 = ssub.s32 %s48, %s60
      %p416 = scmp.eq.s32.totalorder %s415, 0
      %s418 = sadd.s32 %s417, 1
      %s419 = scalar_select %p416, %s417, %s418
      %p422 = pneg %p416
      %p423 = scmp.eq.s32.totalorder %s41, 3
      %p424 = por %p422, %p423
      %p425 = scmp.ne.s32.totalorder %s417, %s420
      %p426 = scmp.eq.s32.totalorder %s41, 0
      %p427 = por %p425, %p426
      %p428 = scmp.ne.s32.totalorder %s417, %s420
      %p429 = scmp.eq.s32.totalorder %s46, 3
      %p430 = por %p428, %p429
      %p431 = scmp.ne.s32.totalorder %s420, %s421
      %p432 = scmp.eq.s32.totalorder %s46, 0
      %p433 = por %p431, %p432
      %p434 = scmp.ne.s32.totalorder %s420, %s421
      %p435 = scmp.eq.s32.totalorder %s47, 3
      %p436 = por %p434, %p435
      %p438 = scmp.ne.s32.totalorder %s421, %s437
      %p439 = scmp.eq.s32.totalorder %s47, 0
      %p440 = por %p438, %p439
      %p441 = scmp.le.s32.totalorder 1, %s41
      %p442 = scmp.lt.s32.totalorder %s41, 5
      %p443 = pnand %p441, %p442
      %p444 = pneg %p443
      // Predicated region
      $region9: #{tpu_custom_call.1} parent=5 // pred_check
        _
      $region10: #{tpu_custom_call.1} parent=5 // pred_check_branch
        %446 = sbr.rel (%p443) target = $region12
      $region11: #{tpu_custom_call.1} parent=5 // pred_region
        %s447 = ssub.s32 %s41, 1
        // Predicated region
        $region13: #{tpu_custom_call.1} parent=11 // pred_check
          %p448 = pneg %p386
        $region14: #{tpu_custom_call.1} parent=11 // pred_check_branch
          %450 = sbr.rel (%p448) target = $region16
        $region15: #{tpu_custom_call.1} parent=11 // pred_region
          _
        $region16: #{tpu_custom_call.1} parent=11 // pred_fallthru
          _
        // Predicated region
        $region17: #{tpu_custom_call.1} parent=11 // pred_check
          %p451 = pneg %p407
        $region18: #{tpu_custom_call.1} parent=11 // pred_check_branch
          %453 = sbr.rel (%p451) target = $region20
        $region19: #{tpu_custom_call.1} parent=11 // pred_region
          _
        $region20: #{tpu_custom_call.1} parent=11 // pred_fallthru
          _
      $region12: #{tpu_custom_call.1} parent=5 // pred_fallthru
        _
      %p454 = scmp.lt.s32.totalorder %s41, 4
      // Predicated region
      $region21: #{tpu_custom_call.1} parent=5 // pred_check
        %p455 = pneg %p454
      $region22: #{tpu_custom_call.1} parent=5 // pred_check_branch
        %457 = sbr.rel (%p455) target = $region24
      $region23: #{tpu_custom_call.1} parent=5 // pred_region
        // Predicated region
        $region25: #{tpu_custom_call.1} parent=23 // pred_check
          %p458 = pneg %p73
        $region26: #{tpu_custom_call.1} parent=23 // pred_check_branch
          %460 = sbr.rel (%p458) target = $region28
        $region27: #{tpu_custom_call.1} parent=23 // pred_region
          %s461 = sand.u32 %s63, 1
          %s462 = scalar_lea.sflag [#allocation3], %s461
          %s463 = sand.u32 %s63, 1
          %s464 = smul.addr %s463, 128
          %s465 = scalar_lea.vmem [#allocation2], %s464
          %467 = vsyncadd %s462, 0
          %s468 = smul.addr %s48, 16
          %s469 = smul.addr %s468, 8
          %s470 = scalar_lea.hbm %s0, %s469
          %s471 = sshll.u32 %s470, 4
          %s472 = int_to_ptr.hbm [resolvable:$true] %s471
          %s473 = sshll.u32 %s465, 4
          %s474 = int_to_ptr.vmem [resolvable:$true] %s473
          %479 = dma.hbm_to_vmem [thread:$0]  %s472, 2048, %s474, %s462, 128, 128, 8
        $region28: #{tpu_custom_call.1} parent=23 // pred_fallthru
          _
        // Predicated region
        $region29: #{tpu_custom_call.1} parent=23 // pred_check
          %p480 = pneg %p99
        $region30: #{tpu_custom_call.1} parent=23 // pred_check_branch
          %482 = sbr.rel (%p480) target = $region32
        $region31: #{tpu_custom_call.1} parent=23 // pred_region
          %s483 = sand.u32 %s41, 1
          %s484 = scalar_lea.sflag [#allocation6], %s483
          %s485 = sand.u32 %s89, 1
          %s486 = scalar_lea.vmem [#allocation5], %s485
          %488 = vsyncadd %s484, 0
          %s489 = scalar_lea.hbm %s1, %s49
          %s491 = sshll.u32 %s489, 4
          %s492 = int_to_ptr.hbm [resolvable:$true] %s491
          %s493 = sshll.u32 %s486, 4
          %s494 = int_to_ptr.vmem [resolvable:$true] %s493
          %496 = dma.hbm_to_vmem [thread:$0]  %s492, 16, %s494, %s484
        $region32: #{tpu_custom_call.1} parent=23 // pred_fallthru
          _
        // Predicated region
        $region33: #{tpu_custom_call.1} parent=23 // pred_check
          %p497 = pneg %p125
        $region34: #{tpu_custom_call.1} parent=23 // pred_check_branch
          %499 = sbr.rel (%p497) target = $region36
        $region35: #{tpu_custom_call.1} parent=23 // pred_region
          %s500 = sand.u32 %s41, 1
          %s501 = scalar_lea.sflag [#allocation6], %s500
          %s502 = sand.u32 %s115, 1
          %s503 = scalar_lea.vmem [#allocation7], %s502
          %505 = vsyncadd %s501, 0
          %s506 = scalar_lea.hbm %s2, %s49
          %s508 = sshll.u32 %s506, 4
          %s509 = int_to_ptr.hbm [resolvable:$true] %s508
          %s510 = sshll.u32 %s503, 4
          %s511 = int_to_ptr.vmem [resolvable:$true] %s510
          %513 = dma.hbm_to_vmem [thread:$0]  %s509, 16, %s511, %s501
        $region36: #{tpu_custom_call.1} parent=23 // pred_fallthru
          _
        // Predicated region
        $region37: #{tpu_custom_call.1} parent=23 // pred_check
          %p514 = pneg %p151
        $region38: #{tpu_custom_call.1} parent=23 // pred_check_branch
          %516 = sbr.rel (%p514) target = $region40
        $region39: #{tpu_custom_call.1} parent=23 // pred_region
          %s517 = sand.u32 %s41, 1
          %s518 = scalar_lea.sflag [#allocation9], %s517
          %s519 = sand.u32 %s141, 1
          %s520 = smul.addr %s519, 768
          %s521 = scalar_lea.vmem [#allocation8], %s520
          %523 = vsyncadd %s518, 0
          %s524 = smul.addr %s49, 96
          %s525 = smul.addr %s524, 8
          %s526 = scalar_lea.hbm %s3, %s525
          %s527 = sshll.u32 %s526, 4
          %s528 = int_to_ptr.hbm [resolvable:$true] %s527
          %s529 = sshll.u32 %s521, 4
          %s530 = int_to_ptr.vmem [resolvable:$true] %s529
          %535 = dma.hbm_to_vmem [thread:$0]  %s528, 12288, %s530, %s518, 384, 384, 24
        $region40: #{tpu_custom_call.1} parent=23 // pred_fallthru
          _
        // Predicated region
        $region41: #{tpu_custom_call.1} parent=23 // pred_check
          %p536 = pneg %p177
        $region42: #{tpu_custom_call.1} parent=23 // pred_check_branch
          %538 = sbr.rel (%p536) target = $region44
        $region43: #{tpu_custom_call.1} parent=23 // pred_region
          %p539 = scmp.lt.s32.totalorder %s49, 1
          %s540 = scalar_select %p539, %s49, 1
          %s541 = smul.addr %s540, 32
          %s542 = smul.addr %s541, 8
          %s543 = scalar_lea.vmem %s4, %s542
        $region44: #{tpu_custom_call.1} parent=23 // pred_fallthru
          _
        // Predicated region
        $region45: #{tpu_custom_call.1} parent=23 // pred_check
          %p544 = pneg %p203
        $region46: #{tpu_custom_call.1} parent=23 // pred_check_branch
          %546 = sbr.rel (%p544) target = $region48
        $region47: #{tpu_custom_call.1} parent=23 // pred_region
          %s547 = sand.u32 %s41, 1
          %s548 = scalar_lea.sflag [#allocation9], %s547
          %s549 = sand.u32 %s193, 1
          %s550 = scalar_lea.vmem [#allocation10], %s549
          %552 = vsyncadd %s548, 0
          %s553 = scalar_lea.hbm %s5, %s49
          %s555 = sshll.u32 %s553, 4
          %s556 = int_to_ptr.hbm [resolvable:$true] %s555
          %s557 = sshll.u32 %s550, 4
          %s558 = int_to_ptr.vmem [resolvable:$true] %s557
          %560 = dma.hbm_to_vmem [thread:$0]  %s556, 16, %s558, %s548
        $region48: #{tpu_custom_call.1} parent=23 // pred_fallthru
          _
        // Predicated region
        $region49: #{tpu_custom_call.1} parent=23 // pred_check
          %p561 = pneg %p229
        $region50: #{tpu_custom_call.1} parent=23 // pred_check_branch
          %563 = sbr.rel (%p561) target = $region52
        $region51: #{tpu_custom_call.1} parent=23 // pred_region
          %s564 = sand.u32 %s41, 1
          %s565 = scalar_lea.sflag [#allocation12], %s564
          %s566 = sand.u32 %s219, 1
          %s567 = scalar_lea.vmem [#allocation11], %s566
          %569 = vsyncadd %s565, 0
          %s570 = scalar_lea.hbm %s6, %s49
          %s572 = sshll.u32 %s570, 4
          %s573 = int_to_ptr.hbm [resolvable:$true] %s572
          %s574 = sshll.u32 %s567, 4
          %s575 = int_to_ptr.vmem [resolvable:$true] %s574
          %577 = dma.hbm_to_vmem [thread:$0]  %s573, 16, %s575, %s565
        $region52: #{tpu_custom_call.1} parent=23 // pred_fallthru
          _
        // Predicated region
        $region53: #{tpu_custom_call.1} parent=23 // pred_check
          %p578 = pneg %p255
        $region54: #{tpu_custom_call.1} parent=23 // pred_check_branch
          %580 = sbr.rel (%p578) target = $region56
        $region55: #{tpu_custom_call.1} parent=23 // pred_region
          %s581 = sand.u32 %s41, 1
          %s582 = scalar_lea.sflag [#allocation12], %s581
          %s583 = sand.u32 %s245, 1
          %s584 = scalar_lea.vmem [#allocation13], %s583
          %586 = vsyncadd %s582, 0
          %s587 = scalar_lea.hbm %s7, %s49
          %s589 = sshll.u32 %s587, 4
          %s590 = int_to_ptr.hbm [resolvable:$true] %s589
          %s591 = sshll.u32 %s584, 4
          %s592 = int_to_ptr.vmem [resolvable:$true] %s591
          %594 = dma.hbm_to_vmem [thread:$0]  %s590, 16, %s592, %s582
        $region56: #{tpu_custom_call.1} parent=23 // pred_fallthru
          _
        // Predicated region
        $region57: #{tpu_custom_call.1} parent=23 // pred_check
          %p595 = pneg %p281
        $region58: #{tpu_custom_call.1} parent=23 // pred_check_branch
          %597 = sbr.rel (%p595) target = $region60
        $region59: #{tpu_custom_call.1} parent=23 // pred_region
          %s598 = sand.u32 %s41, 1
          %s599 = scalar_lea.sflag [#allocation15], %s598
          %s600 = sand.u32 %s271, 1
          %s601 = smul.addr %s600, 256
          %s602 = scalar_lea.vmem [#allocation14], %s601
          %604 = vsyncadd %s599, 0
          %s605 = smul.addr %s49, 32
          %s606 = smul.addr %s605, 8
          %s607 = scalar_lea.hbm %s8, %s606
          %s608 = sshll.u32 %s607, 4
          %s609 = int_to_ptr.hbm [resolvable:$true] %s608
          %s610 = sshll.u32 %s602, 4
          %s611 = int_to_ptr.vmem [resolvable:$true] %s610
          %616 = dma.hbm_to_vmem [thread:$0]  %s609, 4096, %s611, %s599, 256, 256, 16
        $region60: #{tpu_custom_call.1} parent=23 // pred_fallthru
          _
        // Predicated region
        $region61: #{tpu_custom_call.1} parent=23 // pred_check
          %p617 = pneg %p307
        $region62: #{tpu_custom_call.1} parent=23 // pred_check_branch
          %619 = sbr.rel (%p617) target = $region64
        $region63: #{tpu_custom_call.1} parent=23 // pred_region
          %p620 = scmp.lt.s32.totalorder %s49, 1
          %s621 = scalar_select %p620, %s49, 1
          %s622 = smul.addr %s621, 2
          %s623 = scalar_lea.vmem %s9, %s622
        $region64: #{tpu_custom_call.1} parent=23 // pred_fallthru
          _
        // Predicated region
        $region65: #{tpu_custom_call.1} parent=23 // pred_check
          %p624 = pneg %p333
        $region66: #{tpu_custom_call.1} parent=23 // pred_check_branch
          %626 = sbr.rel (%p624) target = $region68
        $region67: #{tpu_custom_call.1} parent=23 // pred_region
          %s627 = sand.u32 %s41, 1
          %s628 = scalar_lea.sflag [#allocation15], %s627
          %s629 = sand.u32 %s323, 1
          %s630 = smul.addr %s629, 256
          %s631 = scalar_lea.vmem [#allocation16], %s630
          %633 = vsyncadd %s628, 0
          %s634 = smul.addr %s49, 32
          %s635 = smul.addr %s634, 8
          %s636 = scalar_lea.hbm %s10, %s635
          %s637 = sshll.u32 %s636, 4
          %s638 = int_to_ptr.hbm [resolvable:$true] %s637
          %s639 = sshll.u32 %s631, 4
          %s640 = int_to_ptr.vmem [resolvable:$true] %s639
          %645 = dma.hbm_to_vmem [thread:$0]  %s638, 4096, %s640, %s628, 128, 128, 8
        $region68: #{tpu_custom_call.1} parent=23 // pred_fallthru
          _
        // Predicated region
        $region69: #{tpu_custom_call.1} parent=23 // pred_check
          %p646 = pneg %p359
        $region70: #{tpu_custom_call.1} parent=23 // pred_check_branch
          %648 = sbr.rel (%p646) target = $region72
        $region71: #{tpu_custom_call.1} parent=23 // pred_region
          %s649 = sand.u32 %s349, 1
          %s650 = scalar_lea.sflag [#allocation18], %s649
          %s651 = sand.u32 %s349, 1
          %s652 = scalar_lea.vmem [#allocation17], %s651
          %654 = vsyncadd %s650, 0
          %s655 = scalar_lea.hbm %s11, %s49
          %s657 = sshll.u32 %s655, 4
          %s658 = int_to_ptr.hbm [resolvable:$true] %s657
          %s659 = sshll.u32 %s652, 4
          %s660 = int_to_ptr.vmem [resolvable:$true] %s659
          %662 = dma.hbm_to_vmem [thread:$0]  %s658, 16, %s660, %s650
        $region72: #{tpu_custom_call.1} parent=23 // pred_fallthru
          _
      $region24: #{tpu_custom_call.1} parent=5 // pred_fallthru
        _
      %p663 = scmp.le.s32.totalorder 1, %s41
      %p664 = scmp.lt.s32.totalorder %s41, 5
      %p665 = pnand %p663, %p664
      %p666 = pneg %p665
      // Predicated region
      $region73: #{tpu_custom_call.1} parent=5 // pred_check
        _
      $region74: #{tpu_custom_call.1} parent=5 // pred_check_branch
        %668 = sbr.rel (%p665) target = $region76
      $region75: #{tpu_custom_call.1} parent=5 // pred_region
        %s669 = ssub.s32 %s41, 1
        %s670 = sand.u32 %s66, 1
        %s671 = scalar_lea.sflag [#allocation3], %s670
        %s672 = sand.u32 %s66, 1
        %s673 = smul.addr %s672, 128
        %s674 = scalar_lea.vmem [#allocation2], %s673
        // Predicated region
        $region77: #{tpu_custom_call.1} parent=75 // pred_check
          %p675 = pneg %p79
        $region78: #{tpu_custom_call.1} parent=75 // pred_check_branch
          %677 = sbr.rel (%p675) target = $region80
        $region79: #{tpu_custom_call.1} parent=75 // pred_region
          %679 = dma.done %s671, 2048
        $region80: #{tpu_custom_call.1} parent=75 // pred_fallthru
          _
        %s680 = sand.u32 %s46, 1
        %s681 = scalar_lea.sflag [#allocation6], %s680
        %s682 = sand.u32 %s92, 1
        %s683 = scalar_lea.vmem [#allocation5], %s682
        // Predicated region
        $region81: #{tpu_custom_call.1} parent=75 // pred_check
          %p684 = pneg %p105
        $region82: #{tpu_custom_call.1} parent=75 // pred_check_branch
          %686 = sbr.rel (%p684) target = $region84
        $region83: #{tpu_custom_call.1} parent=75 // pred_region
          %688 = dma.done %s681, 16
        $region84: #{tpu_custom_call.1} parent=75 // pred_fallthru
          _
        %s689 = sand.u32 %s46, 1
        %s690 = scalar_lea.sflag [#allocation6], %s689
        %s691 = sand.u32 %s118, 1
        %s692 = scalar_lea.vmem [#allocation7], %s691
        // Predicated region
        $region85: #{tpu_custom_call.1} parent=75 // pred_check
          %p693 = pneg %p131
        $region86: #{tpu_custom_call.1} parent=75 // pred_check_branch
          %695 = sbr.rel (%p693) target = $region88
        $region87: #{tpu_custom_call.1} parent=75 // pred_region
          %697 = dma.done %s690, 16
        $region88: #{tpu_custom_call.1} parent=75 // pred_fallthru
          _
        %s698 = sand.u32 %s46, 1
        %s699 = scalar_lea.sflag [#allocation9], %s698
        %s700 = sand.u32 %s144, 1
        %s701 = smul.addr %s700, 768
        %s702 = scalar_lea.vmem [#allocation8], %s701
        // Predicated region
        $region89: #{tpu_custom_call.1} parent=75 // pred_check
          %p703 = pneg %p157
        $region90: #{tpu_custom_call.1} parent=75 // pred_check_branch
          %705 = sbr.rel (%p703) target = $region92
        $region91: #{tpu_custom_call.1} parent=75 // pred_region
          %707 = dma.done %s699, 12288
        $region92: #{tpu_custom_call.1} parent=75 // pred_fallthru
          _
        %s708 = sand.u32 %s46, 1
        %s709 = scalar_lea.sflag [#allocation9], %s708
        %s710 = sand.u32 %s196, 1
        %s711 = scalar_lea.vmem [#allocation10], %s710
        // Predicated region
        $region93: #{tpu_custom_call.1} parent=75 // pred_check
          %p712 = pneg %p209
        $region94: #{tpu_custom_call.1} parent=75 // pred_check_branch
          %714 = sbr.rel (%p712) target = $region96
        $region95: #{tpu_custom_call.1} parent=75 // pred_region
          %716 = dma.done %s709, 16
        $region96: #{tpu_custom_call.1} parent=75 // pred_fallthru
          _
        %s717 = sand.u32 %s46, 1
        %s718 = scalar_lea.sflag [#allocation12], %s717
        %s719 = sand.u32 %s222, 1
        %s720 = scalar_lea.vmem [#allocation11], %s719
        // Predicated region
        $region97: #{tpu_custom_call.1} parent=75 // pred_check
          %p721 = pneg %p235
        $region98: #{tpu_custom_call.1} parent=75 // pred_check_branch
          %723 = sbr.rel (%p721) target = $region100
        $region99: #{tpu_custom_call.1} parent=75 // pred_region
          %725 = dma.done %s718, 16
        $region100: #{tpu_custom_call.1} parent=75 // pred_fallthru
          _
        %s726 = sand.u32 %s46, 1
        %s727 = scalar_lea.sflag [#allocation12], %s726
        %s728 = sand.u32 %s248, 1
        %s729 = scalar_lea.vmem [#allocation13], %s728
        // Predicated region
        $region101: #{tpu_custom_call.1} parent=75 // pred_check
          %p730 = pneg %p261
        $region102: #{tpu_custom_call.1} parent=75 // pred_check_branch
          %732 = sbr.rel (%p730) target = $region104
        $region103: #{tpu_custom_call.1} parent=75 // pred_region
          %734 = dma.done %s727, 16
        $region104: #{tpu_custom_call.1} parent=75 // pred_fallthru
          _
        %s735 = sand.u32 %s46, 1
        %s736 = scalar_lea.sflag [#allocation15], %s735
        %s737 = sand.u32 %s274, 1
        %s738 = smul.addr %s737, 256
        %s739 = scalar_lea.vmem [#allocation14], %s738
        // Predicated region
        $region105: #{tpu_custom_call.1} parent=75 // pred_check
          %p740 = pneg %p287
        $region106: #{tpu_custom_call.1} parent=75 // pred_check_branch
          %742 = sbr.rel (%p740) target = $region108
        $region107: #{tpu_custom_call.1} parent=75 // pred_region
          %744 = dma.done %s736, 4096
        $region108: #{tpu_custom_call.1} parent=75 // pred_fallthru
          _
        %s745 = sand.u32 %s46, 1
        %s746 = scalar_lea.sflag [#allocation15], %s745
        %s747 = sand.u32 %s326, 1
        %s748 = smul.addr %s747, 256
        %s749 = scalar_lea.vmem [#allocation16], %s748
        // Predicated region
        $region109: #{tpu_custom_call.1} parent=75 // pred_check
          %p750 = pneg %p339
        $region110: #{tpu_custom_call.1} parent=75 // pred_check_branch
          %752 = sbr.rel (%p750) target = $region112
        $region111: #{tpu_custom_call.1} parent=75 // pred_region
          %754 = dma.done %s746, 4096
        $region112: #{tpu_custom_call.1} parent=75 // pred_fallthru
          _
        %s755 = sand.u32 %s352, 1
        %s756 = scalar_lea.sflag [#allocation18], %s755
        %s757 = sand.u32 %s352, 1
        %s758 = scalar_lea.vmem [#allocation17], %s757
        // Predicated region
        $region113: #{tpu_custom_call.1} parent=75 // pred_check
          %p759 = pneg %p365
        $region114: #{tpu_custom_call.1} parent=75 // pred_check_branch
          %761 = sbr.rel (%p759) target = $region116
        $region115: #{tpu_custom_call.1} parent=75 // pred_region
          %763 = dma.done %s756, 16
        $region116: #{tpu_custom_call.1} parent=75 // pred_fallthru
          _
        %s764 = sand.u32 %s66, 1
        %s765 = scalar_lea.sflag [#allocation3], %s764
        %s766 = sand.u32 %s66, 1
        %s767 = smul.addr %s766, 128
        %s768 = scalar_lea.vmem [#allocation2], %s767
        %p769 = pneg %p79
        %p770 = pneg %p76
        %s771 = sand.u32 %s46, 1
        %s772 = scalar_lea.sflag [#allocation6], %s771
        %s773 = sand.u32 %s92, 1
        %s774 = scalar_lea.vmem [#allocation5], %s773
        %p775 = pneg %p105
        %p776 = pneg %p102
        %s777 = sand.u32 %s46, 1
        %s778 = scalar_lea.sflag [#allocation6], %s777
        %s779 = sand.u32 %s118, 1
        %s780 = scalar_lea.vmem [#allocation7], %s779
        %p781 = pneg %p131
        %p782 = pneg %p128
        %s783 = sand.u32 %s46, 1
        %s784 = scalar_lea.sflag [#allocation9], %s783
        %s785 = sand.u32 %s144, 1
        %s786 = smul.addr %s785, 768
        %s787 = scalar_lea.vmem [#allocation8], %s786
        %p788 = pneg %p157
        %p789 = pneg %p154
        %p790 = scmp.lt.s32.totalorder %s51, 1
        %s791 = scalar_select %p790, %s51, 1
        %s792 = smul.addr %s791, 32
        %s793 = smul.addr %s792, 8
        %s794 = scalar_lea.vmem %s4, %s793
        %p795 = pneg %p183
        %p796 = pneg %p180
        %s797 = sand.u32 %s46, 1
        %s798 = scalar_lea.sflag [#allocation9], %s797
        %s799 = sand.u32 %s196, 1
        %s800 = scalar_lea.vmem [#allocation10], %s799
        %p801 = pneg %p209
        %p802 = pneg %p206
        %s803 = sand.u32 %s46, 1
        %s804 = scalar_lea.sflag [#allocation12], %s803
        %s805 = sand.u32 %s222, 1
        %s806 = scalar_lea.vmem [#allocation11], %s805
        %p807 = pneg %p235
        %p808 = pneg %p232
        %s809 = sand.u32 %s46, 1
        %s810 = scalar_lea.sflag [#allocation12], %s809
        %s811 = sand.u32 %s248, 1
        %s812 = scalar_lea.vmem [#allocation13], %s811
        %p813 = pneg %p261
        %p814 = pneg %p258
        %s815 = sand.u32 %s46, 1
        %s816 = scalar_lea.sflag [#allocation15], %s815
        %s817 = sand.u32 %s274, 1
        %s818 = smul.addr %s817, 256
        %s819 = scalar_lea.vmem [#allocation14], %s818
        %p820 = pneg %p287
        %p821 = pneg %p284
        %p822 = scmp.lt.s32.totalorder %s51, 1
        %s823 = scalar_select %p822, %s51, 1
        %s824 = smul.addr %s823, 2
        %s825 = scalar_lea.vmem %s9, %s824
        %p826 = pneg %p313
        %p827 = pneg %p310
        %s828 = sand.u32 %s46, 1
        %s829 = scalar_lea.sflag [#allocation15], %s828
        %s830 = sand.u32 %s326, 1
        %s831 = smul.addr %s830, 256
        %s832 = scalar_lea.vmem [#allocation16], %s831
        %p833 = pneg %p339
        %p834 = pneg %p336
        %s835 = sand.u32 %s352, 1
        %s836 = scalar_lea.sflag [#allocation18], %s835
        %s837 = sand.u32 %s352, 1
        %s838 = scalar_lea.vmem [#allocation17], %s837
        %p839 = pneg %p365
        %p840 = pneg %p362
        %p841 = pneg %p386
        %p842 = pneg %p383
        %p843 = pneg %p407
        %p844 = pneg %p404
        %p845 = pneg %p433
        %p846 = pneg %p430
        %s847 = sand.u32 %s420, 1
        %s848 = scalar_lea.sflag [#allocation4], %s847
        %s849 = sand.u32 %s420, 1
        %s850 = smul.addr %s849, 128
        %s851 = scalar_lea.vmem [#allocation19], %s850
        %p852 = scmp.lt.s32.totalorder %s51, 1
        %s853 = scalar_select %p852, %s51, 1
        %s854 = smul.addr %s853, 32
        %s855 = smul.addr %s854, 8
        %s856 = scalar_lea.vmem %s4, %s855
        %p857 = scmp.lt.s32.totalorder %s51, 1
        %s858 = scalar_select %p857, %s51, 1
        %s859 = smul.addr %s858, 2
        %s860 = scalar_lea.vmem %s9, %s859
        %p861 = scmp.eq.s32.totalorder %s51, 0
        // Predicated region
        $region117: #{tpu_custom_call.1} parent=75 // pred_check
          %p862 = pneg %p861
        $region118: #{tpu_custom_call.1} parent=75 // pred_check_branch
          %864 = sbr.rel (%p862) target = $region120
        $region119: #{tpu_custom_call.1} parent=75 // pred_region
          %v865 = vld [vmem:[%s674] sm:$0xff]
          %v866 = vld [vmem:[%s674 + $0x8] sm:$0xff]
          %v867 = vld [vmem:[%s674 + $0x10] sm:$0xff]
          %v868 = vld [vmem:[%s674 + $0x18] sm:$0xff]
          %v869 = vld [vmem:[%s674 + $0x20] sm:$0xff]
          %v870 = vld [vmem:[%s674 + $0x28] sm:$0xff]
          %v871 = vld [vmem:[%s674 + $0x30] sm:$0xff]
          %v872 = vld [vmem:[%s674 + $0x38] sm:$0xff]
          %v873 = vld [vmem:[%s674 + $0x40] sm:$0xff]
          %v874 = vld [vmem:[%s674 + $0x48] sm:$0xff]
          %v875 = vld [vmem:[%s674 + $0x50] sm:$0xff]
          %v876 = vld [vmem:[%s674 + $0x58] sm:$0xff]
          %v877 = vld [vmem:[%s674 + $0x60] sm:$0xff]
          %v878 = vld [vmem:[%s674 + $0x68] sm:$0xff]
          %v879 = vld [vmem:[%s674 + $0x70] sm:$0xff]
          %v880 = vld [vmem:[%s674 + $0x78] sm:$0xff]
          %881 = vst [vmem:[%s851] sm:$0xff] %v865
          %882 = vst [vmem:[%s851 + $0x8] sm:$0xff] %v866
          %883 = vst [vmem:[%s851 + $0x10] sm:$0xff] %v867
          %884 = vst [vmem:[%s851 + $0x18] sm:$0xff] %v868
          %885 = vst [vmem:[%s851 + $0x20] sm:$0xff] %v869
          %886 = vst [vmem:[%s851 + $0x28] sm:$0xff] %v870
          %887 = vst [vmem:[%s851 + $0x30] sm:$0xff] %v871
          %888 = vst [vmem:[%s851 + $0x38] sm:$0xff] %v872
          %889 = vst [vmem:[%s851 + $0x40] sm:$0xff] %v873
          %890 = vst [vmem:[%s851 + $0x48] sm:$0xff] %v874
          %891 = vst [vmem:[%s851 + $0x50] sm:$0xff] %v875
          %892 = vst [vmem:[%s851 + $0x58] sm:$0xff] %v876
          %893 = vst [vmem:[%s851 + $0x60] sm:$0xff] %v877
          %894 = vst [vmem:[%s851 + $0x68] sm:$0xff] %v878
          %895 = vst [vmem:[%s851 + $0x70] sm:$0xff] %v879
          %896 = vst [vmem:[%s851 + $0x78] sm:$0xff] %v880
        $region120: #{tpu_custom_call.1} parent=75 // pred_fallthru
          _
        %v897 = vld [vmem:[%s851] sm:$0xff]
        %v898 = vld [vmem:[%s851 + $0x8] sm:$0xff]
        %v899 = vld [vmem:[%s851 + $0x10] sm:$0xff]
        %v900 = vld [vmem:[%s851 + $0x18] sm:$0xff]
        %v901 = vld [vmem:[%s851 + $0x20] sm:$0xff]
        %v902 = vld [vmem:[%s851 + $0x28] sm:$0xff]
        %v903 = vld [vmem:[%s851 + $0x30] sm:$0xff]
        %v904 = vld [vmem:[%s851 + $0x38] sm:$0xff]
        %v905 = vld [vmem:[%s851 + $0x40] sm:$0xff]
        %v906 = vld [vmem:[%s851 + $0x48] sm:$0xff]
        %v907 = vld [vmem:[%s851 + $0x50] sm:$0xff]
        %v908 = vld [vmem:[%s851 + $0x58] sm:$0xff]
        %v909 = vld [vmem:[%s851 + $0x60] sm:$0xff]
        %v910 = vld [vmem:[%s851 + $0x68] sm:$0xff]
        %v911 = vld [vmem:[%s851 + $0x70] sm:$0xff]
        %v912 = vld [vmem:[%s851 + $0x78] sm:$0xff]
        %v913 = vld [vmem:[%s683] sm:$0x1]
        %v914 = vld [vmem:[%s692] sm:$0x1]
        %915 = vadd.xlane.f32.xlu0 %v897
        %v916 = vpop.xlane.xlu0 %915
        %917 = vadd.xlane.f32.xlu0 %v898
        %v918 = vpop.xlane.xlu0 %917
        %919 = vadd.xlane.f32.xlu0 %v899
        %v920 = vpop.xlane.xlu0 %919
        %921 = vadd.xlane.f32.xlu0 %v900
        %v922 = vpop.xlane.xlu0 %921
        %923 = vadd.xlane.f32.xlu0 %v901
        %v924 = vpop.xlane.xlu0 %923
        %925 = vadd.xlane.f32.xlu0 %v902
        %v926 = vpop.xlane.xlu0 %925
        %927 = vadd.xlane.f32.xlu0 %v903
        %v928 = vpop.xlane.xlu0 %927
        %929 = vadd.xlane.f32.xlu0 %v904
        %v930 = vpop.xlane.xlu0 %929
        %931 = vadd.xlane.f32.xlu0 %v905
        %v932 = vpop.xlane.xlu0 %931
        %933 = vadd.xlane.f32.xlu0 %v906
        %v934 = vpop.xlane.xlu0 %933
        %935 = vadd.xlane.f32.xlu0 %v907
        %v936 = vpop.xlane.xlu0 %935
        %937 = vadd.xlane.f32.xlu0 %v908
        %v938 = vpop.xlane.xlu0 %937
        %939 = vadd.xlane.f32.xlu0 %v909
        %v940 = vpop.xlane.xlu0 %939
        %941 = vadd.xlane.f32.xlu0 %v910
        %v942 = vpop.xlane.xlu0 %941
        %943 = vadd.xlane.f32.xlu0 %v911
        %v944 = vpop.xlane.xlu0 %943
        %945 = vadd.xlane.f32.xlu0 %v912
        %v946 = vpop.xlane.xlu0 %945
        %v947 = vrcp.pop 128.0
        %v948 = vmul.f32 128.0, %v947
        %v949 = vsub.f32 1.0, %v948
        %v950 = vmul.f32 %v947, %v949
        %v951 = vadd.f32 %v947, %v950
        %vm952 = vweird.f32 %v947
        %v953 = vsel %vm952, %v947, %v951
        %v954 = vmul.f32 %v916, %v953
        %v955 = vmul.f32 %v918, %v953
        %v956 = vmul.f32 %v920, %v953
        %v957 = vmul.f32 %v922, %v953
        %v958 = vmul.f32 %v924, %v953
        %v959 = vmul.f32 %v926, %v953
        %v960 = vmul.f32 %v928, %v953
        %v961 = vmul.f32 %v930, %v953
        %v962 = vmul.f32 %v932, %v953
        %v963 = vmul.f32 %v934, %v953
        %v964 = vmul.f32 %v936, %v953
        %v965 = vmul.f32 %v938, %v953
        %v966 = vmul.f32 %v940, %v953
        %v967 = vmul.f32 %v942, %v953
        %v968 = vmul.f32 %v944, %v953
        %v969 = vmul.f32 %v946, %v953
        %v970 = vsub.f32 %v897, %v954
        %v971 = vsub.f32 %v898, %v955
        %v972 = vsub.f32 %v899, %v956
        %v973 = vsub.f32 %v900, %v957
        %v974 = vsub.f32 %v901, %v958
        %v975 = vsub.f32 %v902, %v959
        %v976 = vsub.f32 %v903, %v960
        %v977 = vsub.f32 %v904, %v961
        %v978 = vsub.f32 %v905, %v962
        %v979 = vsub.f32 %v906, %v963
        %v980 = vsub.f32 %v907, %v964
        %v981 = vsub.f32 %v908, %v965
        %v982 = vsub.f32 %v909, %v966
        %v983 = vsub.f32 %v910, %v967
        %v984 = vsub.f32 %v911, %v968
        %v985 = vsub.f32 %v912, %v969
        %v986 = vmul.f32 %v970, %v970
        %v987 = vmul.f32 %v971, %v971
        %v988 = vmul.f32 %v972, %v972
        %v989 = vmul.f32 %v973, %v973
        %v990 = vmul.f32 %v974, %v974
        %v991 = vmul.f32 %v975, %v975
        %v992 = vmul.f32 %v976, %v976
        %v993 = vmul.f32 %v977, %v977
        %v994 = vmul.f32 %v978, %v978
        %v995 = vmul.f32 %v979, %v979
        %v996 = vmul.f32 %v980, %v980
        %v997 = vmul.f32 %v981, %v981
        %v998 = vmul.f32 %v982, %v982
        %v999 = vmul.f32 %v983, %v983
        %v1000 = vmul.f32 %v984, %v984
        %v1001 = vmul.f32 %v985, %v985
        %1002 = vadd.xlane.f32.xlu0 %v986
        %v1003 = vpop.xlane.xlu0 %1002
        %1004 = vadd.xlane.f32.xlu0 %v987
        %v1005 = vpop.xlane.xlu0 %1004
        %1006 = vadd.xlane.f32.xlu0 %v988
        %v1007 = vpop.xlane.xlu0 %1006
        %1008 = vadd.xlane.f32.xlu0 %v989
        %v1009 = vpop.xlane.xlu0 %1008
        %1010 = vadd.xlane.f32.xlu0 %v990
        %v1011 = vpop.xlane.xlu0 %1010
        %1012 = vadd.xlane.f32.xlu0 %v991
        %v1013 = vpop.xlane.xlu0 %1012
        %1014 = vadd.xlane.f32.xlu0 %v992
        %v1015 = vpop.xlane.xlu0 %1014
        %1016 = vadd.xlane.f32.xlu0 %v993
        %v1017 = vpop.xlane.xlu0 %1016
        %1018 = vadd.xlane.f32.xlu0 %v994
        %v1019 = vpop.xlane.xlu0 %1018
        %1020 = vadd.xlane.f32.xlu0 %v995
        %v1021 = vpop.xlane.xlu0 %1020
        %1022 = vadd.xlane.f32.xlu0 %v996
        %v1023 = vpop.xlane.xlu0 %1022
        %1024 = vadd.xlane.f32.xlu0 %v997
        %v1025 = vpop.xlane.xlu0 %1024
        %1026 = vadd.xlane.f32.xlu0 %v998
        %v1027 = vpop.xlane.xlu0 %1026
        %1028 = vadd.xlane.f32.xlu0 %v999
        %v1029 = vpop.xlane.xlu0 %1028
        %1030 = vadd.xlane.f32.xlu0 %v1000
        %v1031 = vpop.xlane.xlu0 %1030
        %1032 = vadd.xlane.f32.xlu0 %v1001
        %v1033 = vpop.xlane.xlu0 %1032
        %v1034 = vmul.f32 %v1003, %v953
        %v1035 = vmul.f32 %v1005, %v953
        %v1036 = vmul.f32 %v1007, %v953
        %v1037 = vmul.f32 %v1009, %v953
        %v1038 = vmul.f32 %v1011, %v953
        %v1039 = vmul.f32 %v1013, %v953
        %v1040 = vmul.f32 %v1015, %v953
        %v1041 = vmul.f32 %v1017, %v953
        %v1042 = vmul.f32 %v1019, %v953
        %v1043 = vmul.f32 %v1021, %v953
        %v1044 = vmul.f32 %v1023, %v953
        %v1045 = vmul.f32 %v1025, %v953
        %v1046 = vmul.f32 %v1027, %v953
        %v1047 = vmul.f32 %v1029, %v953
        %v1048 = vmul.f32 %v1031, %v953
        %v1049 = vmul.f32 %v1033, %v953
        %v1050 = vadd.f32 %v1034, 1e-05
        %v1051 = vadd.f32 %v1035, 1e-05
        %v1052 = vadd.f32 %v1036, 1e-05
        %v1053 = vadd.f32 %v1037, 1e-05
        %v1054 = vadd.f32 %v1038, 1e-05
        %v1055 = vadd.f32 %v1039, 1e-05
        %v1056 = vadd.f32 %v1040, 1e-05
        %v1057 = vadd.f32 %v1041, 1e-05
        %v1058 = vadd.f32 %v1042, 1e-05
        %v1059 = vadd.f32 %v1043, 1e-05
        %v1060 = vadd.f32 %v1044, 1e-05
        %v1061 = vadd.f32 %v1045, 1e-05
        %v1062 = vadd.f32 %v1046, 1e-05
        %v1063 = vadd.f32 %v1047, 1e-05
        %v1064 = vadd.f32 %v1048, 1e-05
        %v1065 = vadd.f32 %v1049, 1e-05
        %v1066 = vrsqrt.pop %v1050
        %v1067 = vmul.f32 %v1066, %v1050
        %v1068 = vmul.f32 %v1067, %v1066
        %v1069 = vmul.f32 0.5, %v1068
        %v1070 = vsub.f32 1.5, %v1069
        %v1071 = vmul.f32 %v1066, %v1070
        %vm1072 = vweird.f32 %v1050
        %vm1073 = vweird.f32 %v1066
        %vm1074 = vmor %vm1072, %vm1073
        %v1075 = vsel %vm1074, %v1066, %v1071
        %v1076 = vrsqrt.pop %v1051
        %v1077 = vmul.f32 %v1076, %v1051
        %v1078 = vmul.f32 %v1077, %v1076
        %v1079 = vmul.f32 0.5, %v1078
        %v1080 = vsub.f32 1.5, %v1079
        %v1081 = vmul.f32 %v1076, %v1080
        %vm1082 = vweird.f32 %v1051
        %vm1083 = vweird.f32 %v1076
        %vm1084 = vmor %vm1082, %vm1083
        %v1085 = vsel %vm1084, %v1076, %v1081
        %v1086 = vrsqrt.pop %v1052
        %v1087 = vmul.f32 %v1086, %v1052
        %v1088 = vmul.f32 %v1087, %v1086
        %v1089 = vmul.f32 0.5, %v1088
        %v1090 = vsub.f32 1.5, %v1089
        %v1091 = vmul.f32 %v1086, %v1090
        %vm1092 = vweird.f32 %v1052
        %vm1093 = vweird.f32 %v1086
        %vm1094 = vmor %vm1092, %vm1093
        %v1095 = vsel %vm1094, %v1086, %v1091
        %v1096 = vrsqrt.pop %v1053
        %v1097 = vmul.f32 %v1096, %v1053
        %v1098 = vmul.f32 %v1097, %v1096
        %v1099 = vmul.f32 0.5, %v1098
        %v1100 = vsub.f32 1.5, %v1099
        %v1101 = vmul.f32 %v1096, %v1100
        %vm1102 = vweird.f32 %v1053
        %vm1103 = vweird.f32 %v1096
        %vm1104 = vmor %vm1102, %vm1103
        %v1105 = vsel %vm1104, %v1096, %v1101
        %v1106 = vrsqrt.pop %v1054
        %v1107 = vmul.f32 %v1106, %v1054
        %v1108 = vmul.f32 %v1107, %v1106
        %v1109 = vmul.f32 0.5, %v1108
        %v1110 = vsub.f32 1.5, %v1109
        %v1111 = vmul.f32 %v1106, %v1110
        %vm1112 = vweird.f32 %v1054
        %vm1113 = vweird.f32 %v1106
        %vm1114 = vmor %vm1112, %vm1113
        %v1115 = vsel %vm1114, %v1106, %v1111
        %v1116 = vrsqrt.pop %v1055
        %v1117 = vmul.f32 %v1116, %v1055
        %v1118 = vmul.f32 %v1117, %v1116
        %v1119 = vmul.f32 0.5, %v1118
        %v1120 = vsub.f32 1.5, %v1119
        %v1121 = vmul.f32 %v1116, %v1120
        %vm1122 = vweird.f32 %v1055
        %vm1123 = vweird.f32 %v1116
        %vm1124 = vmor %vm1122, %vm1123
        %v1125 = vsel %vm1124, %v1116, %v1121
        %v1126 = vrsqrt.pop %v1056
        %v1127 = vmul.f32 %v1126, %v1056
        %v1128 = vmul.f32 %v1127, %v1126
        %v1129 = vmul.f32 0.5, %v1128
        %v1130 = vsub.f32 1.5, %v1129
        %v1131 = vmul.f32 %v1126, %v1130
        %vm1132 = vweird.f32 %v1056
        %vm1133 = vweird.f32 %v1126
        %vm1134 = vmor %vm1132, %vm1133
        %v1135 = vsel %vm1134, %v1126, %v1131
        %v1136 = vrsqrt.pop %v1057
        %v1137 = vmul.f32 %v1136, %v1057
        %v1138 = vmul.f32 %v1137, %v1136
        %v1139 = vmul.f32 0.5, %v1138
        %v1140 = vsub.f32 1.5, %v1139
        %v1141 = vmul.f32 %v1136, %v1140
        %vm1142 = vweird.f32 %v1057
        %vm1143 = vweird.f32 %v1136
        %vm1144 = vmor %vm1142, %vm1143
        %v1145 = vsel %vm1144, %v1136, %v1141
        %v1146 = vrsqrt.pop %v1058
        %v1147 = vmul.f32 %v1146, %v1058
        %v1148 = vmul.f32 %v1147, %v1146
        %v1149 = vmul.f32 0.5, %v1148
        %v1150 = vsub.f32 1.5, %v1149
        %v1151 = vmul.f32 %v1146, %v1150
        %vm1152 = vweird.f32 %v1058
        %vm1153 = vweird.f32 %v1146
        %vm1154 = vmor %vm1152, %vm1153
        %v1155 = vsel %vm1154, %v1146, %v1151
        %v1156 = vrsqrt.pop %v1059
        %v1157 = vmul.f32 %v1156, %v1059
        %v1158 = vmul.f32 %v1157, %v1156
        %v1159 = vmul.f32 0.5, %v1158
        %v1160 = vsub.f32 1.5, %v1159
        %v1161 = vmul.f32 %v1156, %v1160
        %vm1162 = vweird.f32 %v1059
        %vm1163 = vweird.f32 %v1156
        %vm1164 = vmor %vm1162, %vm1163
        %v1165 = vsel %vm1164, %v1156, %v1161
        %v1166 = vrsqrt.pop %v1060
        %v1167 = vmul.f32 %v1166, %v1060
        %v1168 = vmul.f32 %v1167, %v1166
        %v1169 = vmul.f32 0.5, %v1168
        %v1170 = vsub.f32 1.5, %v1169
        %v1171 = vmul.f32 %v1166, %v1170
        %vm1172 = vweird.f32 %v1060
        %vm1173 = vweird.f32 %v1166
        %vm1174 = vmor %vm1172, %vm1173
        %v1175 = vsel %vm1174, %v1166, %v1171
        %v1176 = vrsqrt.pop %v1061
        %v1177 = vmul.f32 %v1176, %v1061
        %v1178 = vmul.f32 %v1177, %v1176
        %v1179 = vmul.f32 0.5, %v1178
        %v1180 = vsub.f32 1.5, %v1179
        %v1181 = vmul.f32 %v1176, %v1180
        %vm1182 = vweird.f32 %v1061
        %vm1183 = vweird.f32 %v1176
        %vm1184 = vmor %vm1182, %vm1183
        %v1185 = vsel %vm1184, %v1176, %v1181
        %v1186 = vrsqrt.pop %v1062
        %v1187 = vmul.f32 %v1186, %v1062
        %v1188 = vmul.f32 %v1187, %v1186
        %v1189 = vmul.f32 0.5, %v1188
        %v1190 = vsub.f32 1.5, %v1189
        %v1191 = vmul.f32 %v1186, %v1190
        %vm1192 = vweird.f32 %v1062
        %vm1193 = vweird.f32 %v1186
        %vm1194 = vmor %vm1192, %vm1193
        %v1195 = vsel %vm1194, %v1186, %v1191
        %v1196 = vrsqrt.pop %v1063
        %v1197 = vmul.f32 %v1196, %v1063
        %v1198 = vmul.f32 %v1197, %v1196
        %v1199 = vmul.f32 0.5, %v1198
        %v1200 = vsub.f32 1.5, %v1199
        %v1201 = vmul.f32 %v1196, %v1200
        %vm1202 = vweird.f32 %v1063
        %vm1203 = vweird.f32 %v1196
        %vm1204 = vmor %vm1202, %vm1203
        %v1205 = vsel %vm1204, %v1196, %v1201
        %v1206 = vrsqrt.pop %v1064
        %v1207 = vmul.f32 %v1206, %v1064
        %v1208 = vmul.f32 %v1207, %v1206
        %v1209 = vmul.f32 0.5, %v1208
        %v1210 = vsub.f32 1.5, %v1209
        %v1211 = vmul.f32 %v1206, %v1210
        %vm1212 = vweird.f32 %v1064
        %vm1213 = vweird.f32 %v1206
        %vm1214 = vmor %vm1212, %vm1213
        %v1215 = vsel %vm1214, %v1206, %v1211
        %v1216 = vrsqrt.pop %v1065
        %v1217 = vmul.f32 %v1216, %v1065
        %v1218 = vmul.f32 %v1217, %v1216
        %v1219 = vmul.f32 0.5, %v1218
        %v1220 = vsub.f32 1.5, %v1219
        %v1221 = vmul.f32 %v1216, %v1220
        %vm1222 = vweird.f32 %v1065
        %vm1223 = vweird.f32 %v1216
        %vm1224 = vmor %vm1222, %vm1223
        %v1225 = vsel %vm1224, %v1216, %v1221
        %v1226 = vmul.f32 %v970, %v1075
        %v1227 = vmul.f32 %v971, %v1085
        %v1228 = vmul.f32 %v972, %v1095
        %v1229 = vmul.f32 %v973, %v1105
        %v1230 = vmul.f32 %v974, %v1115
        %v1231 = vmul.f32 %v975, %v1125
        %v1232 = vmul.f32 %v976, %v1135
        %v1233 = vmul.f32 %v977, %v1145
        %v1234 = vmul.f32 %v978, %v1155
        %v1235 = vmul.f32 %v979, %v1165
        %v1236 = vmul.f32 %v980, %v1175
        %v1237 = vmul.f32 %v981, %v1185
        %v1238 = vmul.f32 %v982, %v1195
        %v1239 = vmul.f32 %v983, %v1205
        %v1240 = vmul.f32 %v984, %v1215
        %v1241 = vmul.f32 %v985, %v1225
        %v1243 = vperm.slane %v913, 0
        %v1245 = vmul.f32 %v1226, %v1243
        %v1246 = vmul.f32 %v1227, %v1243
        %v1247 = vmul.f32 %v1228, %v1243
        %v1248 = vmul.f32 %v1229, %v1243
        %v1249 = vmul.f32 %v1230, %v1243
        %v1250 = vmul.f32 %v1231, %v1243
        %v1251 = vmul.f32 %v1232, %v1243
        %v1252 = vmul.f32 %v1233, %v1243
        %v1253 = vmul.f32 %v1234, %v1243
        %v1254 = vmul.f32 %v1235, %v1243
        %v1255 = vmul.f32 %v1236, %v1243
        %v1256 = vmul.f32 %v1237, %v1243
        %v1257 = vmul.f32 %v1238, %v1243
        %v1258 = vmul.f32 %v1239, %v1243
        %v1259 = vmul.f32 %v1240, %v1243
        %v1260 = vmul.f32 %v1241, %v1243
        %v1262 = vperm.slane %v914, 0
        %v1264 = vadd.f32 %v1245, %v1262
        %v1265 = vadd.f32 %v1246, %v1262
        %v1266 = vadd.f32 %v1247, %v1262
        %v1267 = vadd.f32 %v1248, %v1262
        %v1268 = vadd.f32 %v1249, %v1262
        %v1269 = vadd.f32 %v1250, %v1262
        %v1270 = vadd.f32 %v1251, %v1262
        %v1271 = vadd.f32 %v1252, %v1262
        %v1272 = vadd.f32 %v1253, %v1262
        %v1273 = vadd.f32 %v1254, %v1262
        %v1274 = vadd.f32 %v1255, %v1262
        %v1275 = vadd.f32 %v1256, %v1262
        %v1276 = vadd.f32 %v1257, %v1262
        %v1277 = vadd.f32 %v1258, %v1262
        %v1278 = vadd.f32 %v1259, %v1262
        %v1279 = vadd.f32 %v1260, %v1262
        %v1280 = vld [vmem:[%s702] sm:$0xff]
        %v1281 = vld [vmem:[%s702 + $0x8] sm:$0xff]
        %v1282 = vld [vmem:[%s702 + $0x10] sm:$0xff]
        %v1283 = vld [vmem:[%s702 + $0x18] sm:$0xff]
        %v1284 = vld [vmem:[%s702 + $0x20] sm:$0xff]
        %v1285 = vld [vmem:[%s702 + $0x28] sm:$0xff]
        %v1286 = vld [vmem:[%s702 + $0x30] sm:$0xff]
        %v1287 = vld [vmem:[%s702 + $0x38] sm:$0xff]
        %v1288 = vld [vmem:[%s702 + $0x40] sm:$0xff]
        %v1289 = vld [vmem:[%s702 + $0x48] sm:$0xff]
        %v1290 = vld [vmem:[%s702 + $0x50] sm:$0xff]
        %v1291 = vld [vmem:[%s702 + $0x58] sm:$0xff]
        %v1292 = vld [vmem:[%s702 + $0x60] sm:$0xff]
        %v1293 = vld [vmem:[%s702 + $0x68] sm:$0xff]
        %v1294 = vld [vmem:[%s702 + $0x70] sm:$0xff]
        %v1295 = vld [vmem:[%s702 + $0x78] sm:$0xff]
        %v1296 = vld [vmem:[%s702 + $0x80] sm:$0xff]
        %v1297 = vld [vmem:[%s702 + $0x88] sm:$0xff]
        %v1298 = vld [vmem:[%s702 + $0x90] sm:$0xff]
        %v1299 = vld [vmem:[%s702 + $0x98] sm:$0xff]
        %v1300 = vld [vmem:[%s702 + $0xa0] sm:$0xff]
        %v1301 = vld [vmem:[%s702 + $0xa8] sm:$0xff]
        %v1302 = vld [vmem:[%s702 + $0xb0] sm:$0xff]
        %v1303 = vld [vmem:[%s702 + $0xb8] sm:$0xff]
        %v1304 = vld [vmem:[%s702 + $0xc0] sm:$0xff]
        %v1305 = vld [vmem:[%s702 + $0xc8] sm:$0xff]
        %v1306 = vld [vmem:[%s702 + $0xd0] sm:$0xff]
        %v1307 = vld [vmem:[%s702 + $0xd8] sm:$0xff]
        %v1308 = vld [vmem:[%s702 + $0xe0] sm:$0xff]
        %v1309 = vld [vmem:[%s702 + $0xe8] sm:$0xff]
        %v1310 = vld [vmem:[%s702 + $0xf0] sm:$0xff]
        %v1311 = vld [vmem:[%s702 + $0xf8] sm:$0xff]
        %v1312 = vld [vmem:[%s702 + $0x100] sm:$0xff]
        %v1313 = vld [vmem:[%s702 + $0x108] sm:$0xff]
        %v1314 = vld [vmem:[%s702 + $0x110] sm:$0xff]
        %v1315 = vld [vmem:[%s702 + $0x118] sm:$0xff]
        %v1316 = vld [vmem:[%s702 + $0x120] sm:$0xff]
        %v1317 = vld [vmem:[%s702 + $0x128] sm:$0xff]
        %v1318 = vld [vmem:[%s702 + $0x130] sm:$0xff]
        %v1319 = vld [vmem:[%s702 + $0x138] sm:$0xff]
        %v1320 = vld [vmem:[%s702 + $0x140] sm:$0xff]
        %v1321 = vld [vmem:[%s702 + $0x148] sm:$0xff]
        %v1322 = vld [vmem:[%s702 + $0x150] sm:$0xff]
        %v1323 = vld [vmem:[%s702 + $0x158] sm:$0xff]
        %v1324 = vld [vmem:[%s702 + $0x160] sm:$0xff]
        %v1325 = vld [vmem:[%s702 + $0x168] sm:$0xff]
        %v1326 = vld [vmem:[%s702 + $0x170] sm:$0xff]
        %v1327 = vld [vmem:[%s702 + $0x178] sm:$0xff]
        %v1328 = vld [vmem:[%s702 + $0x180] sm:$0xff]
        %v1329 = vld [vmem:[%s702 + $0x188] sm:$0xff]
        %v1330 = vld [vmem:[%s702 + $0x190] sm:$0xff]
        %v1331 = vld [vmem:[%s702 + $0x198] sm:$0xff]
        %v1332 = vld [vmem:[%s702 + $0x1a0] sm:$0xff]
        %v1333 = vld [vmem:[%s702 + $0x1a8] sm:$0xff]
        %v1334 = vld [vmem:[%s702 + $0x1b0] sm:$0xff]
        %v1335 = vld [vmem:[%s702 + $0x1b8] sm:$0xff]
        %v1336 = vld [vmem:[%s702 + $0x1c0] sm:$0xff]
        %v1337 = vld [vmem:[%s702 + $0x1c8] sm:$0xff]
        %v1338 = vld [vmem:[%s702 + $0x1d0] sm:$0xff]
        %v1339 = vld [vmem:[%s702 + $0x1d8] sm:$0xff]
        %v1340 = vld [vmem:[%s702 + $0x1e0] sm:$0xff]
        %v1341 = vld [vmem:[%s702 + $0x1e8] sm:$0xff]
        %v1342 = vld [vmem:[%s702 + $0x1f0] sm:$0xff]
        %v1343 = vld [vmem:[%s702 + $0x1f8] sm:$0xff]
        %v1344 = vld [vmem:[%s702 + $0x200] sm:$0xff]
        %v1345 = vld [vmem:[%s702 + $0x208] sm:$0xff]
        %v1346 = vld [vmem:[%s702 + $0x210] sm:$0xff]
        %v1347 = vld [vmem:[%s702 + $0x218] sm:$0xff]
        %v1348 = vld [vmem:[%s702 + $0x220] sm:$0xff]
        %v1349 = vld [vmem:[%s702 + $0x228] sm:$0xff]
        %v1350 = vld [vmem:[%s702 + $0x230] sm:$0xff]
        %v1351 = vld [vmem:[%s702 + $0x238] sm:$0xff]
        %v1352 = vld [vmem:[%s702 + $0x240] sm:$0xff]
        %v1353 = vld [vmem:[%s702 + $0x248] sm:$0xff]
        %v1354 = vld [vmem:[%s702 + $0x250] sm:$0xff]
        %v1355 = vld [vmem:[%s702 + $0x258] sm:$0xff]
        %v1356 = vld [vmem:[%s702 + $0x260] sm:$0xff]
        %v1357 = vld [vmem:[%s702 + $0x268] sm:$0xff]
        %v1358 = vld [vmem:[%s702 + $0x270] sm:$0xff]
        %v1359 = vld [vmem:[%s702 + $0x278] sm:$0xff]
        %v1360 = vld [vmem:[%s702 + $0x280] sm:$0xff]
        %v1361 = vld [vmem:[%s702 + $0x288] sm:$0xff]
        %v1362 = vld [vmem:[%s702 + $0x290] sm:$0xff]
        %v1363 = vld [vmem:[%s702 + $0x298] sm:$0xff]
        %v1364 = vld [vmem:[%s702 + $0x2a0] sm:$0xff]
        %v1365 = vld [vmem:[%s702 + $0x2a8] sm:$0xff]
        %v1366 = vld [vmem:[%s702 + $0x2b0] sm:$0xff]
        %v1367 = vld [vmem:[%s702 + $0x2b8] sm:$0xff]
        %v1368 = vld [vmem:[%s702 + $0x2c0] sm:$0xff]
        %v1369 = vld [vmem:[%s702 + $0x2c8] sm:$0xff]
        %v1370 = vld [vmem:[%s702 + $0x2d0] sm:$0xff]
        %v1371 = vld [vmem:[%s702 + $0x2d8] sm:$0xff]
        %v1372 = vld [vmem:[%s702 + $0x2e0] sm:$0xff]
        %v1373 = vld [vmem:[%s702 + $0x2e8] sm:$0xff]
        %v1374 = vld [vmem:[%s702 + $0x2f0] sm:$0xff]
        %v1375 = vld [vmem:[%s702 + $0x2f8] sm:$0xff]
        %1376 = vmatpush.msra.mxu0 %v1325
        %1377 = vmatpush.msra.mxu0 %v1322
        %1378 = vmatpush.msra.mxu0 %v1319
        %1379 = vmatpush.msra.mxu0 %v1316
        %1380 = vmatpush.msra.mxu0 %v1313
        %1381 = vmatpush.msra.mxu0 %v1310
        %1382 = vmatpush.msra.mxu0 %v1307
        %1383 = vmatpush.msra.mxu0 %v1304
        %1384 = vmatpush.msra.mxu0 %v1301
        %1385 = vmatpush.msra.mxu0 %v1298
        %1386 = vmatpush.msra.mxu0 %v1295
        %1387 = vmatpush.msra.mxu0 %v1292
        %1388 = vmatpush.msra.mxu0 %v1289
        %1389 = vmatpush.msra.mxu0 %v1286
        %1390 = vmatpush.msra.mxu0 %v1283
        %1391 = vmatpush.msra.mxu0 %v1280
        %1392 = vmatmul.f32.gmra.mxu0 %v1264
        %v1393 = vpop.f32.mrf.mxu0
        %v1394 = vadd.f32 0.0, %v1393
        %1395 = vmatmul.f32.gmra.mxu0 %v1265
        %v1396 = vpop.f32.mrf.mxu0
        %v1397 = vadd.f32 0.0, %v1396
        %1398 = vmatmul.f32.gmra.mxu0 %v1266
        %v1399 = vpop.f32.mrf.mxu0
        %v1400 = vadd.f32 0.0, %v1399
        %1401 = vmatmul.f32.gmra.mxu0 %v1267
        %v1402 = vpop.f32.mrf.mxu0
        %v1403 = vadd.f32 0.0, %v1402
        %1404 = vmatmul.f32.gmra.mxu0 %v1268
        %v1405 = vpop.f32.mrf.mxu0
        %v1406 = vadd.f32 0.0, %v1405
        %1407 = vmatmul.f32.gmra.mxu0 %v1269
        %v1408 = vpop.f32.mrf.mxu0
        %v1409 = vadd.f32 0.0, %v1408
        %1410 = vmatmul.f32.gmra.mxu0 %v1270
        %v1411 = vpop.f32.mrf.mxu0
        %v1412 = vadd.f32 0.0, %v1411
        %1413 = vmatmul.f32.gmra.mxu0 %v1271
        %v1414 = vpop.f32.mrf.mxu0
        %v1415 = vadd.f32 0.0, %v1414
        %1416 = vmatmul.f32.gmra.mxu0 %v1272
        %v1417 = vpop.f32.mrf.mxu0
        %v1418 = vadd.f32 0.0, %v1417
        %1419 = vmatmul.f32.gmra.mxu0 %v1273
        %v1420 = vpop.f32.mrf.mxu0
        %v1421 = vadd.f32 0.0, %v1420
        %1422 = vmatmul.f32.gmra.mxu0 %v1274
        %v1423 = vpop.f32.mrf.mxu0
        %v1424 = vadd.f32 0.0, %v1423
        %1425 = vmatmul.f32.gmra.mxu0 %v1275
        %v1426 = vpop.f32.mrf.mxu0
        %v1427 = vadd.f32 0.0, %v1426
        %1428 = vmatmul.f32.gmra.mxu0 %v1276
        %v1429 = vpop.f32.mrf.mxu0
        %v1430 = vadd.f32 0.0, %v1429
        %1431 = vmatmul.f32.gmra.mxu0 %v1277
        %v1432 = vpop.f32.mrf.mxu0
        %v1433 = vadd.f32 0.0, %v1432
        %1434 = vmatmul.f32.gmra.mxu0 %v1278
        %v1435 = vpop.f32.mrf.mxu0
        %v1436 = vadd.f32 0.0, %v1435
        %1437 = vmatmul.f32.gmra.mxu0 %v1279
        %v1438 = vpop.f32.mrf.mxu0
        %v1439 = vadd.f32 0.0, %v1438
        %1440 = vdwg.mxu0
        %1441 = vmatpush.msra.mxu0 %v1326
        %1442 = vmatpush.msra.mxu0 %v1323
        %1443 = vmatpush.msra.mxu0 %v1320
        %1444 = vmatpush.msra.mxu0 %v1317
        %1445 = vmatpush.msra.mxu0 %v1314
        %1446 = vmatpush.msra.mxu0 %v1311
        %1447 = vmatpush.msra.mxu0 %v1308
        %1448 = vmatpush.msra.mxu0 %v1305
        %1449 = vmatpush.msra.mxu0 %v1302
        %1450 = vmatpush.msra.mxu0 %v1299
        %1451 = vmatpush.msra.mxu0 %v1296
        %1452 = vmatpush.msra.mxu0 %v1293
        %1453 = vmatpush.msra.mxu0 %v1290
        %1454 = vmatpush.msra.mxu0 %v1287
        %1455 = vmatpush.msra.mxu0 %v1284
        %1456 = vmatpush.msra.mxu0 %v1281
        %1457 = vmatmul.f32.gmra.mxu0 %v1264
        %v1458 = vpop.f32.mrf.mxu0
        %v1459 = vadd.f32 0.0, %v1458
        %1460 = vmatmul.f32.gmra.mxu0 %v1265
        %v1461 = vpop.f32.mrf.mxu0
        %v1462 = vadd.f32 0.0, %v1461
        %1463 = vmatmul.f32.gmra.mxu0 %v1266
        %v1464 = vpop.f32.mrf.mxu0
        %v1465 = vadd.f32 0.0, %v1464
        %1466 = vmatmul.f32.gmra.mxu0 %v1267
        %v1467 = vpop.f32.mrf.mxu0
        %v1468 = vadd.f32 0.0, %v1467
        %1469 = vmatmul.f32.gmra.mxu0 %v1268
        %v1470 = vpop.f32.mrf.mxu0
        %v1471 = vadd.f32 0.0, %v1470
        %1472 = vmatmul.f32.gmra.mxu0 %v1269
        %v1473 = vpop.f32.mrf.mxu0
        %v1474 = vadd.f32 0.0, %v1473
        %1475 = vmatmul.f32.gmra.mxu0 %v1270
        %v1476 = vpop.f32.mrf.mxu0
        %v1477 = vadd.f32 0.0, %v1476
        %1478 = vmatmul.f32.gmra.mxu0 %v1271
        %v1479 = vpop.f32.mrf.mxu0
        %v1480 = vadd.f32 0.0, %v1479
        %1481 = vmatmul.f32.gmra.mxu0 %v1272
        %v1482 = vpop.f32.mrf.mxu0
        %v1483 = vadd.f32 0.0, %v1482
        %1484 = vmatmul.f32.gmra.mxu0 %v1273
        %v1485 = vpop.f32.mrf.mxu0
        %v1486 = vadd.f32 0.0, %v1485
        %1487 = vmatmul.f32.gmra.mxu0 %v1274
        %v1488 = vpop.f32.mrf.mxu0
        %v1489 = vadd.f32 0.0, %v1488
        %1490 = vmatmul.f32.gmra.mxu0 %v1275
        %v1491 = vpop.f32.mrf.mxu0
        %v1492 = vadd.f32 0.0, %v1491
        %1493 = vmatmul.f32.gmra.mxu0 %v1276
        %v1494 = vpop.f32.mrf.mxu0
        %v1495 = vadd.f32 0.0, %v1494
        %1496 = vmatmul.f32.gmra.mxu0 %v1277
        %v1497 = vpop.f32.mrf.mxu0
        %v1498 = vadd.f32 0.0, %v1497
        %1499 = vmatmul.f32.gmra.mxu0 %v1278
        %v1500 = vpop.f32.mrf.mxu0
        %v1501 = vadd.f32 0.0, %v1500
        %1502 = vmatmul.f32.gmra.mxu0 %v1279
        %v1503 = vpop.f32.mrf.mxu0
        %v1504 = vadd.f32 0.0, %v1503
        %1505 = vdwg.mxu0
        %1506 = vmatpush.msra.mxu0 %v1327
        %1507 = vmatpush.msra.mxu0 %v1324
        %1508 = vmatpush.msra.mxu0 %v1321
        %1509 = vmatpush.msra.mxu0 %v1318
        %1510 = vmatpush.msra.mxu0 %v1315
        %1511 = vmatpush.msra.mxu0 %v1312
        %1512 = vmatpush.msra.mxu0 %v1309
        %1513 = vmatpush.msra.mxu0 %v1306
        %1514 = vmatpush.msra.mxu0 %v1303
        %1515 = vmatpush.msra.mxu0 %v1300
        %1516 = vmatpush.msra.mxu0 %v1297
        %1517 = vmatpush.msra.mxu0 %v1294
        %1518 = vmatpush.msra.mxu0 %v1291
        %1519 = vmatpush.msra.mxu0 %v1288
        %1520 = vmatpush.msra.mxu0 %v1285
        %1521 = vmatpush.msra.mxu0 %v1282
        %1522 = vmatmul.f32.gmra.mxu0 %v1264
        %v1523 = vpop.f32.mrf.mxu0
        %v1524 = vadd.f32 0.0, %v1523
        %1525 = vmatmul.f32.gmra.mxu0 %v1265
        %v1526 = vpop.f32.mrf.mxu0
        %v1527 = vadd.f32 0.0, %v1526
        %1528 = vmatmul.f32.gmra.mxu0 %v1266
        %v1529 = vpop.f32.mrf.mxu0
        %v1530 = vadd.f32 0.0, %v1529
        %1531 = vmatmul.f32.gmra.mxu0 %v1267
        %v1532 = vpop.f32.mrf.mxu0
        %v1533 = vadd.f32 0.0, %v1532
        %1534 = vmatmul.f32.gmra.mxu0 %v1268
        %v1535 = vpop.f32.mrf.mxu0
        %v1536 = vadd.f32 0.0, %v1535
        %1537 = vmatmul.f32.gmra.mxu0 %v1269
        %v1538 = vpop.f32.mrf.mxu0
        %v1539 = vadd.f32 0.0, %v1538
        %1540 = vmatmul.f32.gmra.mxu0 %v1270
        %v1541 = vpop.f32.mrf.mxu0
        %v1542 = vadd.f32 0.0, %v1541
        %1543 = vmatmul.f32.gmra.mxu0 %v1271
        %v1544 = vpop.f32.mrf.mxu0
        %v1545 = vadd.f32 0.0, %v1544
        %1546 = vmatmul.f32.gmra.mxu0 %v1272
        %v1547 = vpop.f32.mrf.mxu0
        %v1548 = vadd.f32 0.0, %v1547
        %1549 = vmatmul.f32.gmra.mxu0 %v1273
        %v1550 = vpop.f32.mrf.mxu0
        %v1551 = vadd.f32 0.0, %v1550
        %1552 = vmatmul.f32.gmra.mxu0 %v1274
        %v1553 = vpop.f32.mrf.mxu0
        %v1554 = vadd.f32 0.0, %v1553
        %1555 = vmatmul.f32.gmra.mxu0 %v1275
        %v1556 = vpop.f32.mrf.mxu0
        %v1557 = vadd.f32 0.0, %v1556
        %1558 = vmatmul.f32.gmra.mxu0 %v1276
        %v1559 = vpop.f32.mrf.mxu0
        %v1560 = vadd.f32 0.0, %v1559
        %1561 = vmatmul.f32.gmra.mxu0 %v1277
        %v1562 = vpop.f32.mrf.mxu0
        %v1563 = vadd.f32 0.0, %v1562
        %1564 = vmatmul.f32.gmra.mxu0 %v1278
        %v1565 = vpop.f32.mrf.mxu0
        %v1566 = vadd.f32 0.0, %v1565
        %1567 = vmatmul.f32.gmra.mxu0 %v1279
        %v1568 = vpop.f32.mrf.mxu0
        %v1569 = vadd.f32 0.0, %v1568
        %1570 = vdwg.mxu0
        %1571 = vmatpush.msra.mxu0 %v1373
        %1572 = vmatpush.msra.mxu0 %v1370
        %1573 = vmatpush.msra.mxu0 %v1367
        %1574 = vmatpush.msra.mxu0 %v1364
        %1575 = vmatpush.msra.mxu0 %v1361
        %1576 = vmatpush.msra.mxu0 %v1358
        %1577 = vmatpush.msra.mxu0 %v1355
        %1578 = vmatpush.msra.mxu0 %v1352
        %1579 = vmatpush.msra.mxu0 %v1349
        %1580 = vmatpush.msra.mxu0 %v1346
        %1581 = vmatpush.msra.mxu0 %v1343
        %1582 = vmatpush.msra.mxu0 %v1340
        %1583 = vmatpush.msra.mxu0 %v1337
        %1584 = vmatpush.msra.mxu0 %v1334
        %1585 = vmatpush.msra.mxu0 %v1331
        %1586 = vmatpush.msra.mxu0 %v1328
        %1587 = vmatmul.f32.gmra.mxu0 %v1264
        %v1588 = vpop.f32.mrf.mxu0
        %v1589 = vadd.f32 0.0, %v1588
        %1590 = vmatmul.f32.gmra.mxu0 %v1265
        %v1591 = vpop.f32.mrf.mxu0
        %v1592 = vadd.f32 0.0, %v1591
        %1593 = vmatmul.f32.gmra.mxu0 %v1266
        %v1594 = vpop.f32.mrf.mxu0
        %v1595 = vadd.f32 0.0, %v1594
        %1596 = vmatmul.f32.gmra.mxu0 %v1267
        %v1597 = vpop.f32.mrf.mxu0
        %v1598 = vadd.f32 0.0, %v1597
        %1599 = vmatmul.f32.gmra.mxu0 %v1268
        %v1600 = vpop.f32.mrf.mxu0
        %v1601 = vadd.f32 0.0, %v1600
        %1602 = vmatmul.f32.gmra.mxu0 %v1269
        %v1603 = vpop.f32.mrf.mxu0
        %v1604 = vadd.f32 0.0, %v1603
        %1605 = vmatmul.f32.gmra.mxu0 %v1270
        %v1606 = vpop.f32.mrf.mxu0
        %v1607 = vadd.f32 0.0, %v1606
        %1608 = vmatmul.f32.gmra.mxu0 %v1271
        %v1609 = vpop.f32.mrf.mxu0
        %v1610 = vadd.f32 0.0, %v1609
        %1611 = vmatmul.f32.gmra.mxu0 %v1272
        %v1612 = vpop.f32.mrf.mxu0
        %v1613 = vadd.f32 0.0, %v1612
        %1614 = vmatmul.f32.gmra.mxu0 %v1273
        %v1615 = vpop.f32.mrf.mxu0
        %v1616 = vadd.f32 0.0, %v1615
        %1617 = vmatmul.f32.gmra.mxu0 %v1274
        %v1618 = vpop.f32.mrf.mxu0
        %v1619 = vadd.f32 0.0, %v1618
        %1620 = vmatmul.f32.gmra.mxu0 %v1275
        %v1621 = vpop.f32.mrf.mxu0
        %v1622 = vadd.f32 0.0, %v1621
        %1623 = vmatmul.f32.gmra.mxu0 %v1276
        %v1624 = vpop.f32.mrf.mxu0
        %v1625 = vadd.f32 0.0, %v1624
        %1626 = vmatmul.f32.gmra.mxu0 %v1277
        %v1627 = vpop.f32.mrf.mxu0
        %v1628 = vadd.f32 0.0, %v1627
        %1629 = vmatmul.f32.gmra.mxu0 %v1278
        %v1630 = vpop.f32.mrf.mxu0
        %v1631 = vadd.f32 0.0, %v1630
        %1632 = vmatmul.f32.gmra.mxu0 %v1279
        %v1633 = vpop.f32.mrf.mxu0
        %v1634 = vadd.f32 0.0, %v1633
        %1635 = vdwg.mxu0
        %1636 = vmatpush.msra.mxu0 %v1374
        %1637 = vmatpush.msra.mxu0 %v1371
        %1638 = vmatpush.msra.mxu0 %v1368
        %1639 = vmatpush.msra.mxu0 %v1365
        %1640 = vmatpush.msra.mxu0 %v1362
        %1641 = vmatpush.msra.mxu0 %v1359
        %1642 = vmatpush.msra.mxu0 %v1356
        %1643 = vmatpush.msra.mxu0 %v1353
        %1644 = vmatpush.msra.mxu0 %v1350
        %1645 = vmatpush.msra.mxu0 %v1347
        %1646 = vmatpush.msra.mxu0 %v1344
        %1647 = vmatpush.msra.mxu0 %v1341
        %1648 = vmatpush.msra.mxu0 %v1338
        %1649 = vmatpush.msra.mxu0 %v1335
        %1650 = vmatpush.msra.mxu0 %v1332
        %1651 = vmatpush.msra.mxu0 %v1329
        %1652 = vmatmul.f32.gmra.mxu0 %v1264
        %v1653 = vpop.f32.mrf.mxu0
        %v1654 = vadd.f32 0.0, %v1653
        %1655 = vmatmul.f32.gmra.mxu0 %v1265
        %v1656 = vpop.f32.mrf.mxu0
        %v1657 = vadd.f32 0.0, %v1656
        %1658 = vmatmul.f32.gmra.mxu0 %v1266
        %v1659 = vpop.f32.mrf.mxu0
        %v1660 = vadd.f32 0.0, %v1659
        %1661 = vmatmul.f32.gmra.mxu0 %v1267
        %v1662 = vpop.f32.mrf.mxu0
        %v1663 = vadd.f32 0.0, %v1662
        %1664 = vmatmul.f32.gmra.mxu0 %v1268
        %v1665 = vpop.f32.mrf.mxu0
        %v1666 = vadd.f32 0.0, %v1665
        %1667 = vmatmul.f32.gmra.mxu0 %v1269
        %v1668 = vpop.f32.mrf.mxu0
        %v1669 = vadd.f32 0.0, %v1668
        %1670 = vmatmul.f32.gmra.mxu0 %v1270
        %v1671 = vpop.f32.mrf.mxu0
        %v1672 = vadd.f32 0.0, %v1671
        %1673 = vmatmul.f32.gmra.mxu0 %v1271
        %v1674 = vpop.f32.mrf.mxu0
        %v1675 = vadd.f32 0.0, %v1674
        %1676 = vmatmul.f32.gmra.mxu0 %v1272
        %v1677 = vpop.f32.mrf.mxu0
        %v1678 = vadd.f32 0.0, %v1677
        %1679 = vmatmul.f32.gmra.mxu0 %v1273
        %v1680 = vpop.f32.mrf.mxu0
        %v1681 = vadd.f32 0.0, %v1680
        %1682 = vmatmul.f32.gmra.mxu0 %v1274
        %v1683 = vpop.f32.mrf.mxu0
        %v1684 = vadd.f32 0.0, %v1683
        %1685 = vmatmul.f32.gmra.mxu0 %v1275
        %v1686 = vpop.f32.mrf.mxu0
        %v1687 = vadd.f32 0.0, %v1686
        %1688 = vmatmul.f32.gmra.mxu0 %v1276
        %v1689 = vpop.f32.mrf.mxu0
        %v1690 = vadd.f32 0.0, %v1689
        %1691 = vmatmul.f32.gmra.mxu0 %v1277
        %v1692 = vpop.f32.mrf.mxu0
        %v1693 = vadd.f32 0.0, %v1692
        %1694 = vmatmul.f32.gmra.mxu0 %v1278
        %v1695 = vpop.f32.mrf.mxu0
        %v1696 = vadd.f32 0.0, %v1695
        %1697 = vmatmul.f32.gmra.mxu0 %v1279
        %v1698 = vpop.f32.mrf.mxu0
        %v1699 = vadd.f32 0.0, %v1698
        %1700 = vdwg.mxu0
        %1701 = vmatpush.msra.mxu0 %v1375
        %1702 = vmatpush.msra.mxu0 %v1372
        %1703 = vmatpush.msra.mxu0 %v1369
        %1704 = vmatpush.msra.mxu0 %v1366
        %1705 = vmatpush.msra.mxu0 %v1363
        %1706 = vmatpush.msra.mxu0 %v1360
        %1707 = vmatpush.msra.mxu0 %v1357
        %1708 = vmatpush.msra.mxu0 %v1354
        %1709 = vmatpush.msra.mxu0 %v1351
        %1710 = vmatpush.msra.mxu0 %v1348
        %1711 = vmatpush.msra.mxu0 %v1345
        %1712 = vmatpush.msra.mxu0 %v1342
        %1713 = vmatpush.msra.mxu0 %v1339
        %1714 = vmatpush.msra.mxu0 %v1336
        %1715 = vmatpush.msra.mxu0 %v1333
        %1716 = vmatpush.msra.mxu0 %v1330
        %1717 = vmatmul.f32.gmra.mxu0 %v1264
        %v1718 = vpop.f32.mrf.mxu0
        %v1719 = vadd.f32 0.0, %v1718
        %1720 = vmatmul.f32.gmra.mxu0 %v1265
        %v1721 = vpop.f32.mrf.mxu0
        %v1722 = vadd.f32 0.0, %v1721
        %1723 = vmatmul.f32.gmra.mxu0 %v1266
        %v1724 = vpop.f32.mrf.mxu0
        %v1725 = vadd.f32 0.0, %v1724
        %1726 = vmatmul.f32.gmra.mxu0 %v1267
        %v1727 = vpop.f32.mrf.mxu0
        %v1728 = vadd.f32 0.0, %v1727
        %1729 = vmatmul.f32.gmra.mxu0 %v1268
        %v1730 = vpop.f32.mrf.mxu0
        %v1731 = vadd.f32 0.0, %v1730
        %1732 = vmatmul.f32.gmra.mxu0 %v1269
        %v1733 = vpop.f32.mrf.mxu0
        %v1734 = vadd.f32 0.0, %v1733
        %1735 = vmatmul.f32.gmra.mxu0 %v1270
        %v1736 = vpop.f32.mrf.mxu0
        %v1737 = vadd.f32 0.0, %v1736
        %1738 = vmatmul.f32.gmra.mxu0 %v1271
        %v1739 = vpop.f32.mrf.mxu0
        %v1740 = vadd.f32 0.0, %v1739
        %1741 = vmatmul.f32.gmra.mxu0 %v1272
        %v1742 = vpop.f32.mrf.mxu0
        %v1743 = vadd.f32 0.0, %v1742
        %1744 = vmatmul.f32.gmra.mxu0 %v1273
        %v1745 = vpop.f32.mrf.mxu0
        %v1746 = vadd.f32 0.0, %v1745
        %1747 = vmatmul.f32.gmra.mxu0 %v1274
        %v1748 = vpop.f32.mrf.mxu0
        %v1749 = vadd.f32 0.0, %v1748
        %1750 = vmatmul.f32.gmra.mxu0 %v1275
        %v1751 = vpop.f32.mrf.mxu0
        %v1752 = vadd.f32 0.0, %v1751
        %1753 = vmatmul.f32.gmra.mxu0 %v1276
        %v1754 = vpop.f32.mrf.mxu0
        %v1755 = vadd.f32 0.0, %v1754
        %1756 = vmatmul.f32.gmra.mxu0 %v1277
        %v1757 = vpop.f32.mrf.mxu0
        %v1758 = vadd.f32 0.0, %v1757
        %1759 = vmatmul.f32.gmra.mxu0 %v1278
        %v1760 = vpop.f32.mrf.mxu0
        %v1761 = vadd.f32 0.0, %v1760
        %1762 = vmatmul.f32.gmra.mxu0 %v1279
        %v1763 = vpop.f32.mrf.mxu0
        %v1764 = vadd.f32 0.0, %v1763
        %1765 = vdwg.mxu0
        %1766 = vmatpush.xpose.msra.mxu0 %v1504
        %1767 = vmatpush.xpose.msra.mxu0 %v1501
        %1768 = vmatpush.xpose.msra.mxu0 %v1498
        %1769 = vmatpush.xpose.msra.mxu0 %v1495
        %1770 = vmatpush.xpose.msra.mxu0 %v1492
        %1771 = vmatpush.xpose.msra.mxu0 %v1489
        %1772 = vmatpush.xpose.msra.mxu0 %v1486
        %1773 = vmatpush.xpose.msra.mxu0 %v1483
        %1774 = vmatpush.xpose.msra.mxu0 %v1480
        %1775 = vmatpush.xpose.msra.mxu0 %v1477
        %1776 = vmatpush.xpose.msra.mxu0 %v1474
        %1777 = vmatpush.xpose.msra.mxu0 %v1471
        %1778 = vmatpush.xpose.msra.mxu0 %v1468
        %1779 = vmatpush.xpose.msra.mxu0 %v1465
        %1780 = vmatpush.xpose.msra.mxu0 %v1462
        %1781 = vmatpush.xpose.msra.mxu0 %v1459
        %1782 = vmatmul.f32.gmra.mxu0 %v1394
        %v1783 = vpop.f32.mrf.mxu0
        %v1784 = vadd.f32 0.0, %v1783
        %1785 = vmatmul.f32.gmra.mxu0 %v1397
        %v1786 = vpop.f32.mrf.mxu0
        %v1787 = vadd.f32 0.0, %v1786
        %1788 = vmatmul.f32.gmra.mxu0 %v1400
        %v1789 = vpop.f32.mrf.mxu0
        %v1790 = vadd.f32 0.0, %v1789
        %1791 = vmatmul.f32.gmra.mxu0 %v1403
        %v1792 = vpop.f32.mrf.mxu0
        %v1793 = vadd.f32 0.0, %v1792
        %1794 = vmatmul.f32.gmra.mxu0 %v1406
        %v1795 = vpop.f32.mrf.mxu0
        %v1796 = vadd.f32 0.0, %v1795
        %1797 = vmatmul.f32.gmra.mxu0 %v1409
        %v1798 = vpop.f32.mrf.mxu0
        %v1799 = vadd.f32 0.0, %v1798
        %1800 = vmatmul.f32.gmra.mxu0 %v1412
        %v1801 = vpop.f32.mrf.mxu0
        %v1802 = vadd.f32 0.0, %v1801
        %1803 = vmatmul.f32.gmra.mxu0 %v1415
        %v1804 = vpop.f32.mrf.mxu0
        %v1805 = vadd.f32 0.0, %v1804
        %1806 = vmatmul.f32.gmra.mxu0 %v1418
        %v1807 = vpop.f32.mrf.mxu0
        %v1808 = vadd.f32 0.0, %v1807
        %1809 = vmatmul.f32.gmra.mxu0 %v1421
        %v1810 = vpop.f32.mrf.mxu0
        %v1811 = vadd.f32 0.0, %v1810
        %1812 = vmatmul.f32.gmra.mxu0 %v1424
        %v1813 = vpop.f32.mrf.mxu0
        %v1814 = vadd.f32 0.0, %v1813
        %1815 = vmatmul.f32.gmra.mxu0 %v1427
        %v1816 = vpop.f32.mrf.mxu0
        %v1817 = vadd.f32 0.0, %v1816
        %1818 = vmatmul.f32.gmra.mxu0 %v1430
        %v1819 = vpop.f32.mrf.mxu0
        %v1820 = vadd.f32 0.0, %v1819
        %1821 = vmatmul.f32.gmra.mxu0 %v1433
        %v1822 = vpop.f32.mrf.mxu0
        %v1823 = vadd.f32 0.0, %v1822
        %1824 = vmatmul.f32.gmra.mxu0 %v1436
        %v1825 = vpop.f32.mrf.mxu0
        %v1826 = vadd.f32 0.0, %v1825
        %1827 = vmatmul.f32.gmra.mxu0 %v1439
        %v1828 = vpop.f32.mrf.mxu0
        %v1829 = vadd.f32 0.0, %v1828
        %1830 = vdwg.mxu0
        %1831 = vmatpush.xpose.msra.mxu0 %v1699
        %1832 = vmatpush.xpose.msra.mxu0 %v1696
        %1833 = vmatpush.xpose.msra.mxu0 %v1693
        %1834 = vmatpush.xpose.msra.mxu0 %v1690
        %1835 = vmatpush.xpose.msra.mxu0 %v1687
        %1836 = vmatpush.xpose.msra.mxu0 %v1684
        %1837 = vmatpush.xpose.msra.mxu0 %v1681
        %1838 = vmatpush.xpose.msra.mxu0 %v1678
        %1839 = vmatpush.xpose.msra.mxu0 %v1675
        %1840 = vmatpush.xpose.msra.mxu0 %v1672
        %1841 = vmatpush.xpose.msra.mxu0 %v1669
        %1842 = vmatpush.xpose.msra.mxu0 %v1666
        %1843 = vmatpush.xpose.msra.mxu0 %v1663
        %1844 = vmatpush.xpose.msra.mxu0 %v1660
        %1845 = vmatpush.xpose.msra.mxu0 %v1657
        %1846 = vmatpush.xpose.msra.mxu0 %v1654
        %1847 = vmatmul.f32.gmra.mxu0 %v1589
        %v1848 = vpop.f32.mrf.mxu0
        %v1849 = vadd.f32 0.0, %v1848
        %1850 = vmatmul.f32.gmra.mxu0 %v1592
        %v1851 = vpop.f32.mrf.mxu0
        %v1852 = vadd.f32 0.0, %v1851
        %1853 = vmatmul.f32.gmra.mxu0 %v1595
        %v1854 = vpop.f32.mrf.mxu0
        %v1855 = vadd.f32 0.0, %v1854
        %1856 = vmatmul.f32.gmra.mxu0 %v1598
        %v1857 = vpop.f32.mrf.mxu0
        %v1858 = vadd.f32 0.0, %v1857
        %1859 = vmatmul.f32.gmra.mxu0 %v1601
        %v1860 = vpop.f32.mrf.mxu0
        %v1861 = vadd.f32 0.0, %v1860
        %1862 = vmatmul.f32.gmra.mxu0 %v1604
        %v1863 = vpop.f32.mrf.mxu0
        %v1864 = vadd.f32 0.0, %v1863
        %1865 = vmatmul.f32.gmra.mxu0 %v1607
        %v1866 = vpop.f32.mrf.mxu0
        %v1867 = vadd.f32 0.0, %v1866
        %1868 = vmatmul.f32.gmra.mxu0 %v1610
        %v1869 = vpop.f32.mrf.mxu0
        %v1870 = vadd.f32 0.0, %v1869
        %1871 = vmatmul.f32.gmra.mxu0 %v1613
        %v1872 = vpop.f32.mrf.mxu0
        %v1873 = vadd.f32 0.0, %v1872
        %1874 = vmatmul.f32.gmra.mxu0 %v1616
        %v1875 = vpop.f32.mrf.mxu0
        %v1876 = vadd.f32 0.0, %v1875
        %1877 = vmatmul.f32.gmra.mxu0 %v1619
        %v1878 = vpop.f32.mrf.mxu0
        %v1879 = vadd.f32 0.0, %v1878
        %1880 = vmatmul.f32.gmra.mxu0 %v1622
        %v1881 = vpop.f32.mrf.mxu0
        %v1882 = vadd.f32 0.0, %v1881
        %1883 = vmatmul.f32.gmra.mxu0 %v1625
        %v1884 = vpop.f32.mrf.mxu0
        %v1885 = vadd.f32 0.0, %v1884
        %1886 = vmatmul.f32.gmra.mxu0 %v1628
        %v1887 = vpop.f32.mrf.mxu0
        %v1888 = vadd.f32 0.0, %v1887
        %1889 = vmatmul.f32.gmra.mxu0 %v1631
        %v1890 = vpop.f32.mrf.mxu0
        %v1891 = vadd.f32 0.0, %v1890
        %1892 = vmatmul.f32.gmra.mxu0 %v1634
        %v1893 = vpop.f32.mrf.mxu0
        %v1894 = vadd.f32 0.0, %v1893
        %1895 = vdwg.mxu0
        %1896 = vmax.xlane.f32.xlu0 %v1784
        %v1897 = vpop.xlane.xlu0 %1896
        %1898 = vmax.xlane.f32.xlu0 %v1787
        %v1899 = vpop.xlane.xlu0 %1898
        %1900 = vmax.xlane.f32.xlu0 %v1790
        %v1901 = vpop.xlane.xlu0 %1900
        %1902 = vmax.xlane.f32.xlu0 %v1793
        %v1903 = vpop.xlane.xlu0 %1902
        %1904 = vmax.xlane.f32.xlu0 %v1796
        %v1905 = vpop.xlane.xlu0 %1904
        %1906 = vmax.xlane.f32.xlu0 %v1799
        %v1907 = vpop.xlane.xlu0 %1906
        %1908 = vmax.xlane.f32.xlu0 %v1802
        %v1909 = vpop.xlane.xlu0 %1908
        %1910 = vmax.xlane.f32.xlu0 %v1805
        %v1911 = vpop.xlane.xlu0 %1910
        %1912 = vmax.xlane.f32.xlu0 %v1808
        %v1913 = vpop.xlane.xlu0 %1912
        %1914 = vmax.xlane.f32.xlu0 %v1811
        %v1915 = vpop.xlane.xlu0 %1914
        %1916 = vmax.xlane.f32.xlu0 %v1814
        %v1917 = vpop.xlane.xlu0 %1916
        %1918 = vmax.xlane.f32.xlu0 %v1817
        %v1919 = vpop.xlane.xlu0 %1918
        %1920 = vmax.xlane.f32.xlu0 %v1820
        %v1921 = vpop.xlane.xlu0 %1920
        %1922 = vmax.xlane.f32.xlu0 %v1823
        %v1923 = vpop.xlane.xlu0 %1922
        %1924 = vmax.xlane.f32.xlu0 %v1826
        %v1925 = vpop.xlane.xlu0 %1924
        %1926 = vmax.xlane.f32.xlu0 %v1829
        %v1927 = vpop.xlane.xlu0 %1926
        %1928 = vmax.xlane.f32.xlu0 %v1849
        %v1929 = vpop.xlane.xlu0 %1928
        %1930 = vmax.xlane.f32.xlu0 %v1852
        %v1931 = vpop.xlane.xlu0 %1930
        %1932 = vmax.xlane.f32.xlu0 %v1855
        %v1933 = vpop.xlane.xlu0 %1932
        %1934 = vmax.xlane.f32.xlu0 %v1858
        %v1935 = vpop.xlane.xlu0 %1934
        %1936 = vmax.xlane.f32.xlu0 %v1861
        %v1937 = vpop.xlane.xlu0 %1936
        %1938 = vmax.xlane.f32.xlu0 %v1864
        %v1939 = vpop.xlane.xlu0 %1938
        %1940 = vmax.xlane.f32.xlu0 %v1867
        %v1941 = vpop.xlane.xlu0 %1940
        %1942 = vmax.xlane.f32.xlu0 %v1870
        %v1943 = vpop.xlane.xlu0 %1942
        %1944 = vmax.xlane.f32.xlu0 %v1873
        %v1945 = vpop.xlane.xlu0 %1944
        %1946 = vmax.xlane.f32.xlu0 %v1876
        %v1947 = vpop.xlane.xlu0 %1946
        %1948 = vmax.xlane.f32.xlu0 %v1879
        %v1949 = vpop.xlane.xlu0 %1948
        %1950 = vmax.xlane.f32.xlu0 %v1882
        %v1951 = vpop.xlane.xlu0 %1950
        %1952 = vmax.xlane.f32.xlu0 %v1885
        %v1953 = vpop.xlane.xlu0 %1952
        %1954 = vmax.xlane.f32.xlu0 %v1888
        %v1955 = vpop.xlane.xlu0 %1954
        %1956 = vmax.xlane.f32.xlu0 %v1891
        %v1957 = vpop.xlane.xlu0 %1956
        %1958 = vmax.xlane.f32.xlu0 %v1894
        %v1959 = vpop.xlane.xlu0 %1958
        %v1960 = vsub.f32 %v1784, %v1897
        %v1961 = vsub.f32 %v1787, %v1899
        %v1962 = vsub.f32 %v1790, %v1901
        %v1963 = vsub.f32 %v1793, %v1903
        %v1964 = vsub.f32 %v1796, %v1905
        %v1965 = vsub.f32 %v1799, %v1907
        %v1966 = vsub.f32 %v1802, %v1909
        %v1967 = vsub.f32 %v1805, %v1911
        %v1968 = vsub.f32 %v1808, %v1913
        %v1969 = vsub.f32 %v1811, %v1915
        %v1970 = vsub.f32 %v1814, %v1917
        %v1971 = vsub.f32 %v1817, %v1919
        %v1972 = vsub.f32 %v1820, %v1921
        %v1973 = vsub.f32 %v1823, %v1923
        %v1974 = vsub.f32 %v1826, %v1925
        %v1975 = vsub.f32 %v1829, %v1927
        %v1976 = vsub.f32 %v1849, %v1929
        %v1977 = vsub.f32 %v1852, %v1931
        %v1978 = vsub.f32 %v1855, %v1933
        %v1979 = vsub.f32 %v1858, %v1935
        %v1980 = vsub.f32 %v1861, %v1937
        %v1981 = vsub.f32 %v1864, %v1939
        %v1982 = vsub.f32 %v1867, %v1941
        %v1983 = vsub.f32 %v1870, %v1943
        %v1984 = vsub.f32 %v1873, %v1945
        %v1985 = vsub.f32 %v1876, %v1947
        %v1986 = vsub.f32 %v1879, %v1949
        %v1987 = vsub.f32 %v1882, %v1951
        %v1988 = vsub.f32 %v1885, %v1953
        %v1989 = vsub.f32 %v1888, %v1955
        %v1990 = vsub.f32 %v1891, %v1957
        %v1991 = vsub.f32 %v1894, %v1959
        %v1992 = vmul.f32 %v1960, 1.442695
        %v1993 = vpow.pop %v1992
        %v1994 = vmul.f32 %v1961, 1.442695
        %v1995 = vpow.pop %v1994
        %v1996 = vmul.f32 %v1962, 1.442695
        %v1997 = vpow.pop %v1996
        %v1998 = vmul.f32 %v1963, 1.442695
        %v1999 = vpow.pop %v1998
        %v2000 = vmul.f32 %v1964, 1.442695
        %v2001 = vpow.pop %v2000
        %v2002 = vmul.f32 %v1965, 1.442695
        %v2003 = vpow.pop %v2002
        %v2004 = vmul.f32 %v1966, 1.442695
        %v2005 = vpow.pop %v2004
        %v2006 = vmul.f32 %v1967, 1.442695
        %v2007 = vpow.pop %v2006
        %v2008 = vmul.f32 %v1968, 1.442695
        %v2009 = vpow.pop %v2008
        %v2010 = vmul.f32 %v1969, 1.442695
        %v2011 = vpow.pop %v2010
        %v2012 = vmul.f32 %v1970, 1.442695
        %v2013 = vpow.pop %v2012
        %v2014 = vmul.f32 %v1971, 1.442695
        %v2015 = vpow.pop %v2014
        %v2016 = vmul.f32 %v1972, 1.442695
        %v2017 = vpow.pop %v2016
        %v2018 = vmul.f32 %v1973, 1.442695
        %v2019 = vpow.pop %v2018
        %v2020 = vmul.f32 %v1974, 1.442695
        %v2021 = vpow.pop %v2020
        %v2022 = vmul.f32 %v1975, 1.442695
        %v2023 = vpow.pop %v2022
        %v2024 = vmul.f32 %v1976, 1.442695
        %v2025 = vpow.pop %v2024
        %v2026 = vmul.f32 %v1977, 1.442695
        %v2027 = vpow.pop %v2026
        %v2028 = vmul.f32 %v1978, 1.442695
        %v2029 = vpow.pop %v2028
        %v2030 = vmul.f32 %v1979, 1.442695
        %v2031 = vpow.pop %v2030
        %v2032 = vmul.f32 %v1980, 1.442695
        %v2033 = vpow.pop %v2032
        %v2034 = vmul.f32 %v1981, 1.442695
        %v2035 = vpow.pop %v2034
        %v2036 = vmul.f32 %v1982, 1.442695
        %v2037 = vpow.pop %v2036
        %v2038 = vmul.f32 %v1983, 1.442695
        %v2039 = vpow.pop %v2038
        %v2040 = vmul.f32 %v1984, 1.442695
        %v2041 = vpow.pop %v2040
        %v2042 = vmul.f32 %v1985, 1.442695
        %v2043 = vpow.pop %v2042
        %v2044 = vmul.f32 %v1986, 1.442695
        %v2045 = vpow.pop %v2044
        %v2046 = vmul.f32 %v1987, 1.442695
        %v2047 = vpow.pop %v2046
        %v2048 = vmul.f32 %v1988, 1.442695
        %v2049 = vpow.pop %v2048
        %v2050 = vmul.f32 %v1989, 1.442695
        %v2051 = vpow.pop %v2050
        %v2052 = vmul.f32 %v1990, 1.442695
        %v2053 = vpow.pop %v2052
        %v2054 = vmul.f32 %v1991, 1.442695
        %v2055 = vpow.pop %v2054
        %2056 = vadd.xlane.f32.xlu0 %v1993
        %v2057 = vpop.xlane.xlu0 %2056
        %2058 = vadd.xlane.f32.xlu0 %v1995
        %v2059 = vpop.xlane.xlu0 %2058
        %2060 = vadd.xlane.f32.xlu0 %v1997
        %v2061 = vpop.xlane.xlu0 %2060
        %2062 = vadd.xlane.f32.xlu0 %v1999
        %v2063 = vpop.xlane.xlu0 %2062
        %2064 = vadd.xlane.f32.xlu0 %v2001
        %v2065 = vpop.xlane.xlu0 %2064
        %2066 = vadd.xlane.f32.xlu0 %v2003
        %v2067 = vpop.xlane.xlu0 %2066
        %2068 = vadd.xlane.f32.xlu0 %v2005
        %v2069 = vpop.xlane.xlu0 %2068
        %2070 = vadd.xlane.f32.xlu0 %v2007
        %v2071 = vpop.xlane.xlu0 %2070
        %2072 = vadd.xlane.f32.xlu0 %v2009
        %v2073 = vpop.xlane.xlu0 %2072
        %2074 = vadd.xlane.f32.xlu0 %v2011
        %v2075 = vpop.xlane.xlu0 %2074
        %2076 = vadd.xlane.f32.xlu0 %v2013
        %v2077 = vpop.xlane.xlu0 %2076
        %2078 = vadd.xlane.f32.xlu0 %v2015
        %v2079 = vpop.xlane.xlu0 %2078
        %2080 = vadd.xlane.f32.xlu0 %v2017
        %v2081 = vpop.xlane.xlu0 %2080
        %2082 = vadd.xlane.f32.xlu0 %v2019
        %v2083 = vpop.xlane.xlu0 %2082
        %2084 = vadd.xlane.f32.xlu0 %v2021
        %v2085 = vpop.xlane.xlu0 %2084
        %2086 = vadd.xlane.f32.xlu0 %v2023
        %v2087 = vpop.xlane.xlu0 %2086
        %2088 = vadd.xlane.f32.xlu0 %v2025
        %v2089 = vpop.xlane.xlu0 %2088
        %2090 = vadd.xlane.f32.xlu0 %v2027
        %v2091 = vpop.xlane.xlu0 %2090
        %2092 = vadd.xlane.f32.xlu0 %v2029
        %v2093 = vpop.xlane.xlu0 %2092
        %2094 = vadd.xlane.f32.xlu0 %v2031
        %v2095 = vpop.xlane.xlu0 %2094
        %2096 = vadd.xlane.f32.xlu0 %v2033
        %v2097 = vpop.xlane.xlu0 %2096
        %2098 = vadd.xlane.f32.xlu0 %v2035
        %v2099 = vpop.xlane.xlu0 %2098
        %2100 = vadd.xlane.f32.xlu0 %v2037
        %v2101 = vpop.xlane.xlu0 %2100
        %2102 = vadd.xlane.f32.xlu0 %v2039
        %v2103 = vpop.xlane.xlu0 %2102
        %2104 = vadd.xlane.f32.xlu0 %v2041
        %v2105 = vpop.xlane.xlu0 %2104
        %2106 = vadd.xlane.f32.xlu0 %v2043
        %v2107 = vpop.xlane.xlu0 %2106
        %2108 = vadd.xlane.f32.xlu0 %v2045
        %v2109 = vpop.xlane.xlu0 %2108
        %2110 = vadd.xlane.f32.xlu0 %v2047
        %v2111 = vpop.xlane.xlu0 %2110
        %2112 = vadd.xlane.f32.xlu0 %v2049
        %v2113 = vpop.xlane.xlu0 %2112
        %2114 = vadd.xlane.f32.xlu0 %v2051
        %v2115 = vpop.xlane.xlu0 %2114
        %2116 = vadd.xlane.f32.xlu0 %v2053
        %v2117 = vpop.xlane.xlu0 %2116
        %2118 = vadd.xlane.f32.xlu0 %v2055
        %v2119 = vpop.xlane.xlu0 %2118
        %v2120 = vrcp.pop %v2057
        %v2121 = vmul.f32 %v2057, %v2120
        %v2122 = vsub.f32 1.0, %v2121
        %v2123 = vmul.f32 %v2120, %v2122
        %v2124 = vadd.f32 %v2120, %v2123
        %vm2125 = vweird.f32 %v2057
        %vm2126 = vweird.f32 %v2120
        %vm2127 = vmor %vm2125, %vm2126
        %v2128 = vsel %vm2127, %v2120, %v2124
        %v2129 = vand.u32 2147483647, %v2057
        %vm2130 = vcmp.eq.f32.partialorder %v2129, 8.507059e+37
        %v2131 = vand.u32 %v2057, 2147483648
        %v2132 = vor.u32 1.1754944e-38, %v2131
        %v2133 = vsel %vm2130, %v2132, %v2128
        %v2134 = vmul.f32 1.0, %v2133
        %v2135 = vrcp.pop %v2059
        %v2136 = vmul.f32 %v2059, %v2135
        %v2137 = vsub.f32 1.0, %v2136
        %v2138 = vmul.f32 %v2135, %v2137
        %v2139 = vadd.f32 %v2135, %v2138
        %vm2140 = vweird.f32 %v2059
        %vm2141 = vweird.f32 %v2135
        %vm2142 = vmor %vm2140, %vm2141
        %v2143 = vsel %vm2142, %v2135, %v2139
        %v2144 = vand.u32 2147483647, %v2059
        %vm2145 = vcmp.eq.f32.partialorder %v2144, 8.507059e+37
        %v2146 = vand.u32 %v2059, 2147483648
        %v2147 = vor.u32 1.1754944e-38, %v2146
        %v2148 = vsel %vm2145, %v2147, %v2143
        %v2149 = vmul.f32 1.0, %v2148
        %v2150 = vrcp.pop %v2061
        %v2151 = vmul.f32 %v2061, %v2150
        %v2152 = vsub.f32 1.0, %v2151
        %v2153 = vmul.f32 %v2150, %v2152
        %v2154 = vadd.f32 %v2150, %v2153
        %vm2155 = vweird.f32 %v2061
        %vm2156 = vweird.f32 %v2150
        %vm2157 = vmor %vm2155, %vm2156
        %v2158 = vsel %vm2157, %v2150, %v2154
        %v2159 = vand.u32 2147483647, %v2061
        %vm2160 = vcmp.eq.f32.partialorder %v2159, 8.507059e+37
        %v2161 = vand.u32 %v2061, 2147483648
        %v2162 = vor.u32 1.1754944e-38, %v2161
        %v2163 = vsel %vm2160, %v2162, %v2158
        %v2164 = vmul.f32 1.0, %v2163
        %v2165 = vrcp.pop %v2063
        %v2166 = vmul.f32 %v2063, %v2165
        %v2167 = vsub.f32 1.0, %v2166
        %v2168 = vmul.f32 %v2165, %v2167
        %v2169 = vadd.f32 %v2165, %v2168
        %vm2170 = vweird.f32 %v2063
        %vm2171 = vweird.f32 %v2165
        %vm2172 = vmor %vm2170, %vm2171
        %v2173 = vsel %vm2172, %v2165, %v2169
        %v2174 = vand.u32 2147483647, %v2063
        %vm2175 = vcmp.eq.f32.partialorder %v2174, 8.507059e+37
        %v2176 = vand.u32 %v2063, 2147483648
        %v2177 = vor.u32 1.1754944e-38, %v2176
        %v2178 = vsel %vm2175, %v2177, %v2173
        %v2179 = vmul.f32 1.0, %v2178
        %v2180 = vrcp.pop %v2065
        %v2181 = vmul.f32 %v2065, %v2180
        %v2182 = vsub.f32 1.0, %v2181
        %v2183 = vmul.f32 %v2180, %v2182
        %v2184 = vadd.f32 %v2180, %v2183
        %vm2185 = vweird.f32 %v2065
        %vm2186 = vweird.f32 %v2180
        %vm2187 = vmor %vm2185, %vm2186
        %v2188 = vsel %vm2187, %v2180, %v2184
        %v2189 = vand.u32 2147483647, %v2065
        %vm2190 = vcmp.eq.f32.partialorder %v2189, 8.507059e+37
        %v2191 = vand.u32 %v2065, 2147483648
        %v2192 = vor.u32 1.1754944e-38, %v2191
        %v2193 = vsel %vm2190, %v2192, %v2188
        %v2194 = vmul.f32 1.0, %v2193
        %v2195 = vrcp.pop %v2067
        %v2196 = vmul.f32 %v2067, %v2195
        %v2197 = vsub.f32 1.0, %v2196
        %v2198 = vmul.f32 %v2195, %v2197
        %v2199 = vadd.f32 %v2195, %v2198
        %vm2200 = vweird.f32 %v2067
        %vm2201 = vweird.f32 %v2195
        %vm2202 = vmor %vm2200, %vm2201
        %v2203 = vsel %vm2202, %v2195, %v2199
        %v2204 = vand.u32 2147483647, %v2067
        %vm2205 = vcmp.eq.f32.partialorder %v2204, 8.507059e+37
        %v2206 = vand.u32 %v2067, 2147483648
        %v2207 = vor.u32 1.1754944e-38, %v2206
        %v2208 = vsel %vm2205, %v2207, %v2203
        %v2209 = vmul.f32 1.0, %v2208
        %v2210 = vrcp.pop %v2069
        %v2211 = vmul.f32 %v2069, %v2210
        %v2212 = vsub.f32 1.0, %v2211
        %v2213 = vmul.f32 %v2210, %v2212
        %v2214 = vadd.f32 %v2210, %v2213
        %vm2215 = vweird.f32 %v2069
        %vm2216 = vweird.f32 %v2210
        %vm2217 = vmor %vm2215, %vm2216
        %v2218 = vsel %vm2217, %v2210, %v2214
        %v2219 = vand.u32 2147483647, %v2069
        %vm2220 = vcmp.eq.f32.partialorder %v2219, 8.507059e+37
        %v2221 = vand.u32 %v2069, 2147483648
        %v2222 = vor.u32 1.1754944e-38, %v2221
        %v2223 = vsel %vm2220, %v2222, %v2218
        %v2224 = vmul.f32 1.0, %v2223
        %v2225 = vrcp.pop %v2071
        %v2226 = vmul.f32 %v2071, %v2225
        %v2227 = vsub.f32 1.0, %v2226
        %v2228 = vmul.f32 %v2225, %v2227
        %v2229 = vadd.f32 %v2225, %v2228
        %vm2230 = vweird.f32 %v2071
        %vm2231 = vweird.f32 %v2225
        %vm2232 = vmor %vm2230, %vm2231
        %v2233 = vsel %vm2232, %v2225, %v2229
        %v2234 = vand.u32 2147483647, %v2071
        %vm2235 = vcmp.eq.f32.partialorder %v2234, 8.507059e+37
        %v2236 = vand.u32 %v2071, 2147483648
        %v2237 = vor.u32 1.1754944e-38, %v2236
        %v2238 = vsel %vm2235, %v2237, %v2233
        %v2239 = vmul.f32 1.0, %v2238
        %v2240 = vrcp.pop %v2073
        %v2241 = vmul.f32 %v2073, %v2240
        %v2242 = vsub.f32 1.0, %v2241
        %v2243 = vmul.f32 %v2240, %v2242
        %v2244 = vadd.f32 %v2240, %v2243
        %vm2245 = vweird.f32 %v2073
        %vm2246 = vweird.f32 %v2240
        %vm2247 = vmor %vm2245, %vm2246
        %v2248 = vsel %vm2247, %v2240, %v2244
        %v2249 = vand.u32 2147483647, %v2073
        %vm2250 = vcmp.eq.f32.partialorder %v2249, 8.507059e+37
        %v2251 = vand.u32 %v2073, 2147483648
        %v2252 = vor.u32 1.1754944e-38, %v2251
        %v2253 = vsel %vm2250, %v2252, %v2248
        %v2254 = vmul.f32 1.0, %v2253
        %v2255 = vrcp.pop %v2075
        %v2256 = vmul.f32 %v2075, %v2255
        %v2257 = vsub.f32 1.0, %v2256
        %v2258 = vmul.f32 %v2255, %v2257
        %v2259 = vadd.f32 %v2255, %v2258
        %vm2260 = vweird.f32 %v2075
        %vm2261 = vweird.f32 %v2255
        %vm2262 = vmor %vm2260, %vm2261
        %v2263 = vsel %vm2262, %v2255, %v2259
        %v2264 = vand.u32 2147483647, %v2075
        %vm2265 = vcmp.eq.f32.partialorder %v2264, 8.507059e+37
        %v2266 = vand.u32 %v2075, 2147483648
        %v2267 = vor.u32 1.1754944e-38, %v2266
        %v2268 = vsel %vm2265, %v2267, %v2263
        %v2269 = vmul.f32 1.0, %v2268
        %v2270 = vrcp.pop %v2077
        %v2271 = vmul.f32 %v2077, %v2270
        %v2272 = vsub.f32 1.0, %v2271
        %v2273 = vmul.f32 %v2270, %v2272
        %v2274 = vadd.f32 %v2270, %v2273
        %vm2275 = vweird.f32 %v2077
        %vm2276 = vweird.f32 %v2270
        %vm2277 = vmor %vm2275, %vm2276
        %v2278 = vsel %vm2277, %v2270, %v2274
        %v2279 = vand.u32 2147483647, %v2077
        %vm2280 = vcmp.eq.f32.partialorder %v2279, 8.507059e+37
        %v2281 = vand.u32 %v2077, 2147483648
        %v2282 = vor.u32 1.1754944e-38, %v2281
        %v2283 = vsel %vm2280, %v2282, %v2278
        %v2284 = vmul.f32 1.0, %v2283
        %v2285 = vrcp.pop %v2079
        %v2286 = vmul.f32 %v2079, %v2285
        %v2287 = vsub.f32 1.0, %v2286
        %v2288 = vmul.f32 %v2285, %v2287
        %v2289 = vadd.f32 %v2285, %v2288
        %vm2290 = vweird.f32 %v2079
        %vm2291 = vweird.f32 %v2285
        %vm2292 = vmor %vm2290, %vm2291
        %v2293 = vsel %vm2292, %v2285, %v2289
        %v2294 = vand.u32 2147483647, %v2079
        %vm2295 = vcmp.eq.f32.partialorder %v2294, 8.507059e+37
        %v2296 = vand.u32 %v2079, 2147483648
        %v2297 = vor.u32 1.1754944e-38, %v2296
        %v2298 = vsel %vm2295, %v2297, %v2293
        %v2299 = vmul.f32 1.0, %v2298
        %v2300 = vrcp.pop %v2081
        %v2301 = vmul.f32 %v2081, %v2300
        %v2302 = vsub.f32 1.0, %v2301
        %v2303 = vmul.f32 %v2300, %v2302
        %v2304 = vadd.f32 %v2300, %v2303
        %vm2305 = vweird.f32 %v2081
        %vm2306 = vweird.f32 %v2300
        %vm2307 = vmor %vm2305, %vm2306
        %v2308 = vsel %vm2307, %v2300, %v2304
        %v2309 = vand.u32 2147483647, %v2081
        %vm2310 = vcmp.eq.f32.partialorder %v2309, 8.507059e+37
        %v2311 = vand.u32 %v2081, 2147483648
        %v2312 = vor.u32 1.1754944e-38, %v2311
        %v2313 = vsel %vm2310, %v2312, %v2308
        %v2314 = vmul.f32 1.0, %v2313
        %v2315 = vrcp.pop %v2083
        %v2316 = vmul.f32 %v2083, %v2315
        %v2317 = vsub.f32 1.0, %v2316
        %v2318 = vmul.f32 %v2315, %v2317
        %v2319 = vadd.f32 %v2315, %v2318
        %vm2320 = vweird.f32 %v2083
        %vm2321 = vweird.f32 %v2315
        %vm2322 = vmor %vm2320, %vm2321
        %v2323 = vsel %vm2322, %v2315, %v2319
        %v2324 = vand.u32 2147483647, %v2083
        %vm2325 = vcmp.eq.f32.partialorder %v2324, 8.507059e+37
        %v2326 = vand.u32 %v2083, 2147483648
        %v2327 = vor.u32 1.1754944e-38, %v2326
        %v2328 = vsel %vm2325, %v2327, %v2323
        %v2329 = vmul.f32 1.0, %v2328
        %v2330 = vrcp.pop %v2085
        %v2331 = vmul.f32 %v2085, %v2330
        %v2332 = vsub.f32 1.0, %v2331
        %v2333 = vmul.f32 %v2330, %v2332
        %v2334 = vadd.f32 %v2330, %v2333
        %vm2335 = vweird.f32 %v2085
        %vm2336 = vweird.f32 %v2330
        %vm2337 = vmor %vm2335, %vm2336
        %v2338 = vsel %vm2337, %v2330, %v2334
        %v2339 = vand.u32 2147483647, %v2085
        %vm2340 = vcmp.eq.f32.partialorder %v2339, 8.507059e+37
        %v2341 = vand.u32 %v2085, 2147483648
        %v2342 = vor.u32 1.1754944e-38, %v2341
        %v2343 = vsel %vm2340, %v2342, %v2338
        %v2344 = vmul.f32 1.0, %v2343
        %v2345 = vrcp.pop %v2087
        %v2346 = vmul.f32 %v2087, %v2345
        %v2347 = vsub.f32 1.0, %v2346
        %v2348 = vmul.f32 %v2345, %v2347
        %v2349 = vadd.f32 %v2345, %v2348
        %vm2350 = vweird.f32 %v2087
        %vm2351 = vweird.f32 %v2345
        %vm2352 = vmor %vm2350, %vm2351
        %v2353 = vsel %vm2352, %v2345, %v2349
        %v2354 = vand.u32 2147483647, %v2087
        %vm2355 = vcmp.eq.f32.partialorder %v2354, 8.507059e+37
        %v2356 = vand.u32 %v2087, 2147483648
        %v2357 = vor.u32 1.1754944e-38, %v2356
        %v2358 = vsel %vm2355, %v2357, %v2353
        %v2359 = vmul.f32 1.0, %v2358
        %v2360 = vrcp.pop %v2089
        %v2361 = vmul.f32 %v2089, %v2360
        %v2362 = vsub.f32 1.0, %v2361
        %v2363 = vmul.f32 %v2360, %v2362
        %v2364 = vadd.f32 %v2360, %v2363
        %vm2365 = vweird.f32 %v2089
        %vm2366 = vweird.f32 %v2360
        %vm2367 = vmor %vm2365, %vm2366
        %v2368 = vsel %vm2367, %v2360, %v2364
        %v2369 = vand.u32 2147483647, %v2089
        %vm2370 = vcmp.eq.f32.partialorder %v2369, 8.507059e+37
        %v2371 = vand.u32 %v2089, 2147483648
        %v2372 = vor.u32 1.1754944e-38, %v2371
        %v2373 = vsel %vm2370, %v2372, %v2368
        %v2374 = vmul.f32 1.0, %v2373
        %v2375 = vrcp.pop %v2091
        %v2376 = vmul.f32 %v2091, %v2375
        %v2377 = vsub.f32 1.0, %v2376
        %v2378 = vmul.f32 %v2375, %v2377
        %v2379 = vadd.f32 %v2375, %v2378
        %vm2380 = vweird.f32 %v2091
        %vm2381 = vweird.f32 %v2375
        %vm2382 = vmor %vm2380, %vm2381
        %v2383 = vsel %vm2382, %v2375, %v2379
        %v2384 = vand.u32 2147483647, %v2091
        %vm2385 = vcmp.eq.f32.partialorder %v2384, 8.507059e+37
        %v2386 = vand.u32 %v2091, 2147483648
        %v2387 = vor.u32 1.1754944e-38, %v2386
        %v2388 = vsel %vm2385, %v2387, %v2383
        %v2389 = vmul.f32 1.0, %v2388
        %v2390 = vrcp.pop %v2093
        %v2391 = vmul.f32 %v2093, %v2390
        %v2392 = vsub.f32 1.0, %v2391
        %v2393 = vmul.f32 %v2390, %v2392
        %v2394 = vadd.f32 %v2390, %v2393
        %vm2395 = vweird.f32 %v2093
        %vm2396 = vweird.f32 %v2390
        %vm2397 = vmor %vm2395, %vm2396
        %v2398 = vsel %vm2397, %v2390, %v2394
        %v2399 = vand.u32 2147483647, %v2093
        %vm2400 = vcmp.eq.f32.partialorder %v2399, 8.507059e+37
        %v2401 = vand.u32 %v2093, 2147483648
        %v2402 = vor.u32 1.1754944e-38, %v2401
        %v2403 = vsel %vm2400, %v2402, %v2398
        %v2404 = vmul.f32 1.0, %v2403
        %v2405 = vrcp.pop %v2095
        %v2406 = vmul.f32 %v2095, %v2405
        %v2407 = vsub.f32 1.0, %v2406
        %v2408 = vmul.f32 %v2405, %v2407
        %v2409 = vadd.f32 %v2405, %v2408
        %vm2410 = vweird.f32 %v2095
        %vm2411 = vweird.f32 %v2405
        %vm2412 = vmor %vm2410, %vm2411
        %v2413 = vsel %vm2412, %v2405, %v2409
        %v2414 = vand.u32 2147483647, %v2095
        %vm2415 = vcmp.eq.f32.partialorder %v2414, 8.507059e+37
        %v2416 = vand.u32 %v2095, 2147483648
        %v2417 = vor.u32 1.1754944e-38, %v2416
        %v2418 = vsel %vm2415, %v2417, %v2413
        %v2419 = vmul.f32 1.0, %v2418
        %v2420 = vrcp.pop %v2097
        %v2421 = vmul.f32 %v2097, %v2420
        %v2422 = vsub.f32 1.0, %v2421
        %v2423 = vmul.f32 %v2420, %v2422
        %v2424 = vadd.f32 %v2420, %v2423
        %vm2425 = vweird.f32 %v2097
        %vm2426 = vweird.f32 %v2420
        %vm2427 = vmor %vm2425, %vm2426
        %v2428 = vsel %vm2427, %v2420, %v2424
        %v2429 = vand.u32 2147483647, %v2097
        %vm2430 = vcmp.eq.f32.partialorder %v2429, 8.507059e+37
        %v2431 = vand.u32 %v2097, 2147483648
        %v2432 = vor.u32 1.1754944e-38, %v2431
        %v2433 = vsel %vm2430, %v2432, %v2428
        %v2434 = vmul.f32 1.0, %v2433
        %v2435 = vrcp.pop %v2099
        %v2436 = vmul.f32 %v2099, %v2435
        %v2437 = vsub.f32 1.0, %v2436
        %v2438 = vmul.f32 %v2435, %v2437
        %v2439 = vadd.f32 %v2435, %v2438
        %vm2440 = vweird.f32 %v2099
        %vm2441 = vweird.f32 %v2435
        %vm2442 = vmor %vm2440, %vm2441
        %v2443 = vsel %vm2442, %v2435, %v2439
        %v2444 = vand.u32 2147483647, %v2099
        %vm2445 = vcmp.eq.f32.partialorder %v2444, 8.507059e+37
        %v2446 = vand.u32 %v2099, 2147483648
        %v2447 = vor.u32 1.1754944e-38, %v2446
        %v2448 = vsel %vm2445, %v2447, %v2443
        %v2449 = vmul.f32 1.0, %v2448
        %v2450 = vrcp.pop %v2101
        %v2451 = vmul.f32 %v2101, %v2450
        %v2452 = vsub.f32 1.0, %v2451
        %v2453 = vmul.f32 %v2450, %v2452
        %v2454 = vadd.f32 %v2450, %v2453
        %vm2455 = vweird.f32 %v2101
        %vm2456 = vweird.f32 %v2450
        %vm2457 = vmor %vm2455, %vm2456
        %v2458 = vsel %vm2457, %v2450, %v2454
        %v2459 = vand.u32 2147483647, %v2101
        %vm2460 = vcmp.eq.f32.partialorder %v2459, 8.507059e+37
        %v2461 = vand.u32 %v2101, 2147483648
        %v2462 = vor.u32 1.1754944e-38, %v2461
        %v2463 = vsel %vm2460, %v2462, %v2458
        %v2464 = vmul.f32 1.0, %v2463
        %v2465 = vrcp.pop %v2103
        %v2466 = vmul.f32 %v2103, %v2465
        %v2467 = vsub.f32 1.0, %v2466
        %v2468 = vmul.f32 %v2465, %v2467
        %v2469 = vadd.f32 %v2465, %v2468
        %vm2470 = vweird.f32 %v2103
        %vm2471 = vweird.f32 %v2465
        %vm2472 = vmor %vm2470, %vm2471
        %v2473 = vsel %vm2472, %v2465, %v2469
        %v2474 = vand.u32 2147483647, %v2103
        %vm2475 = vcmp.eq.f32.partialorder %v2474, 8.507059e+37
        %v2476 = vand.u32 %v2103, 2147483648
        %v2477 = vor.u32 1.1754944e-38, %v2476
        %v2478 = vsel %vm2475, %v2477, %v2473
        %v2479 = vmul.f32 1.0, %v2478
        %v2480 = vrcp.pop %v2105
        %v2481 = vmul.f32 %v2105, %v2480
        %v2482 = vsub.f32 1.0, %v2481
        %v2483 = vmul.f32 %v2480, %v2482
        %v2484 = vadd.f32 %v2480, %v2483
        %vm2485 = vweird.f32 %v2105
        %vm2486 = vweird.f32 %v2480
        %vm2487 = vmor %vm2485, %vm2486
        %v2488 = vsel %vm2487, %v2480, %v2484
        %v2489 = vand.u32 2147483647, %v2105
        %vm2490 = vcmp.eq.f32.partialorder %v2489, 8.507059e+37
        %v2491 = vand.u32 %v2105, 2147483648
        %v2492 = vor.u32 1.1754944e-38, %v2491
        %v2493 = vsel %vm2490, %v2492, %v2488
        %v2494 = vmul.f32 1.0, %v2493
        %v2495 = vrcp.pop %v2107
        %v2496 = vmul.f32 %v2107, %v2495
        %v2497 = vsub.f32 1.0, %v2496
        %v2498 = vmul.f32 %v2495, %v2497
        %v2499 = vadd.f32 %v2495, %v2498
        %vm2500 = vweird.f32 %v2107
        %vm2501 = vweird.f32 %v2495
        %vm2502 = vmor %vm2500, %vm2501
        %v2503 = vsel %vm2502, %v2495, %v2499
        %v2504 = vand.u32 2147483647, %v2107
        %vm2505 = vcmp.eq.f32.partialorder %v2504, 8.507059e+37
        %v2506 = vand.u32 %v2107, 2147483648
        %v2507 = vor.u32 1.1754944e-38, %v2506
        %v2508 = vsel %vm2505, %v2507, %v2503
        %v2509 = vmul.f32 1.0, %v2508
        %v2510 = vrcp.pop %v2109
        %v2511 = vmul.f32 %v2109, %v2510
        %v2512 = vsub.f32 1.0, %v2511
        %v2513 = vmul.f32 %v2510, %v2512
        %v2514 = vadd.f32 %v2510, %v2513
        %vm2515 = vweird.f32 %v2109
        %vm2516 = vweird.f32 %v2510
        %vm2517 = vmor %vm2515, %vm2516
        %v2518 = vsel %vm2517, %v2510, %v2514
        %v2519 = vand.u32 2147483647, %v2109
        %vm2520 = vcmp.eq.f32.partialorder %v2519, 8.507059e+37
        %v2521 = vand.u32 %v2109, 2147483648
        %v2522 = vor.u32 1.1754944e-38, %v2521
        %v2523 = vsel %vm2520, %v2522, %v2518
        %v2524 = vmul.f32 1.0, %v2523
        %v2525 = vrcp.pop %v2111
        %v2526 = vmul.f32 %v2111, %v2525
        %v2527 = vsub.f32 1.0, %v2526
        %v2528 = vmul.f32 %v2525, %v2527
        %v2529 = vadd.f32 %v2525, %v2528
        %vm2530 = vweird.f32 %v2111
        %vm2531 = vweird.f32 %v2525
        %vm2532 = vmor %vm2530, %vm2531
        %v2533 = vsel %vm2532, %v2525, %v2529
        %v2534 = vand.u32 2147483647, %v2111
        %vm2535 = vcmp.eq.f32.partialorder %v2534, 8.507059e+37
        %v2536 = vand.u32 %v2111, 2147483648
        %v2537 = vor.u32 1.1754944e-38, %v2536
        %v2538 = vsel %vm2535, %v2537, %v2533
        %v2539 = vmul.f32 1.0, %v2538
        %v2540 = vrcp.pop %v2113
        %v2541 = vmul.f32 %v2113, %v2540
        %v2542 = vsub.f32 1.0, %v2541
        %v2543 = vmul.f32 %v2540, %v2542
        %v2544 = vadd.f32 %v2540, %v2543
        %vm2545 = vweird.f32 %v2113
        %vm2546 = vweird.f32 %v2540
        %vm2547 = vmor %vm2545, %vm2546
        %v2548 = vsel %vm2547, %v2540, %v2544
        %v2549 = vand.u32 2147483647, %v2113
        %vm2550 = vcmp.eq.f32.partialorder %v2549, 8.507059e+37
        %v2551 = vand.u32 %v2113, 2147483648
        %v2552 = vor.u32 1.1754944e-38, %v2551
        %v2553 = vsel %vm2550, %v2552, %v2548
        %v2554 = vmul.f32 1.0, %v2553
        %v2555 = vrcp.pop %v2115
        %v2556 = vmul.f32 %v2115, %v2555
        %v2557 = vsub.f32 1.0, %v2556
        %v2558 = vmul.f32 %v2555, %v2557
        %v2559 = vadd.f32 %v2555, %v2558
        %vm2560 = vweird.f32 %v2115
        %vm2561 = vweird.f32 %v2555
        %vm2562 = vmor %vm2560, %vm2561
        %v2563 = vsel %vm2562, %v2555, %v2559
        %v2564 = vand.u32 2147483647, %v2115
        %vm2565 = vcmp.eq.f32.partialorder %v2564, 8.507059e+37
        %v2566 = vand.u32 %v2115, 2147483648
        %v2567 = vor.u32 1.1754944e-38, %v2566
        %v2568 = vsel %vm2565, %v2567, %v2563
        %v2569 = vmul.f32 1.0, %v2568
        %v2570 = vrcp.pop %v2117
        %v2571 = vmul.f32 %v2117, %v2570
        %v2572 = vsub.f32 1.0, %v2571
        %v2573 = vmul.f32 %v2570, %v2572
        %v2574 = vadd.f32 %v2570, %v2573
        %vm2575 = vweird.f32 %v2117
        %vm2576 = vweird.f32 %v2570
        %vm2577 = vmor %vm2575, %vm2576
        %v2578 = vsel %vm2577, %v2570, %v2574
        %v2579 = vand.u32 2147483647, %v2117
        %vm2580 = vcmp.eq.f32.partialorder %v2579, 8.507059e+37
        %v2581 = vand.u32 %v2117, 2147483648
        %v2582 = vor.u32 1.1754944e-38, %v2581
        %v2583 = vsel %vm2580, %v2582, %v2578
        %v2584 = vmul.f32 1.0, %v2583
        %v2585 = vrcp.pop %v2119
        %v2586 = vmul.f32 %v2119, %v2585
        %v2587 = vsub.f32 1.0, %v2586
        %v2588 = vmul.f32 %v2585, %v2587
        %v2589 = vadd.f32 %v2585, %v2588
        %vm2590 = vweird.f32 %v2119
        %vm2591 = vweird.f32 %v2585
        %vm2592 = vmor %vm2590, %vm2591
        %v2593 = vsel %vm2592, %v2585, %v2589
        %v2594 = vand.u32 2147483647, %v2119
        %vm2595 = vcmp.eq.f32.partialorder %v2594, 8.507059e+37
        %v2596 = vand.u32 %v2119, 2147483648
        %v2597 = vor.u32 1.1754944e-38, %v2596
        %v2598 = vsel %vm2595, %v2597, %v2593
        %v2599 = vmul.f32 1.0, %v2598
        %v2600 = vmul.f32 %v1993, %v2134
        %v2601 = vmul.f32 %v1995, %v2149
        %v2602 = vmul.f32 %v1997, %v2164
        %v2603 = vmul.f32 %v1999, %v2179
        %v2604 = vmul.f32 %v2001, %v2194
        %v2605 = vmul.f32 %v2003, %v2209
        %v2606 = vmul.f32 %v2005, %v2224
        %v2607 = vmul.f32 %v2007, %v2239
        %v2608 = vmul.f32 %v2009, %v2254
        %v2609 = vmul.f32 %v2011, %v2269
        %v2610 = vmul.f32 %v2013, %v2284
        %v2611 = vmul.f32 %v2015, %v2299
        %v2612 = vmul.f32 %v2017, %v2314
        %v2613 = vmul.f32 %v2019, %v2329
        %v2614 = vmul.f32 %v2021, %v2344
        %v2615 = vmul.f32 %v2023, %v2359
        %v2616 = vmul.f32 %v2025, %v2374
        %v2617 = vmul.f32 %v2027, %v2389
        %v2618 = vmul.f32 %v2029, %v2404
        %v2619 = vmul.f32 %v2031, %v2419
        %v2620 = vmul.f32 %v2033, %v2434
        %v2621 = vmul.f32 %v2035, %v2449
        %v2622 = vmul.f32 %v2037, %v2464
        %v2623 = vmul.f32 %v2039, %v2479
        %v2624 = vmul.f32 %v2041, %v2494
        %v2625 = vmul.f32 %v2043, %v2509
        %v2626 = vmul.f32 %v2045, %v2524
        %v2627 = vmul.f32 %v2047, %v2539
        %v2628 = vmul.f32 %v2049, %v2554
        %v2629 = vmul.f32 %v2051, %v2569
        %v2630 = vmul.f32 %v2053, %v2584
        %v2631 = vmul.f32 %v2055, %v2599
        %2632 = vmatpush.msra.mxu0 %v1569
        %2633 = vmatpush.msra.mxu0 %v1566
        %2634 = vmatpush.msra.mxu0 %v1563
        %2635 = vmatpush.msra.mxu0 %v1560
        %2636 = vmatpush.msra.mxu0 %v1557
        %2637 = vmatpush.msra.mxu0 %v1554
        %2638 = vmatpush.msra.mxu0 %v1551
        %2639 = vmatpush.msra.mxu0 %v1548
        %2640 = vmatpush.msra.mxu0 %v1545
        %2641 = vmatpush.msra.mxu0 %v1542
        %2642 = vmatpush.msra.mxu0 %v1539
        %2643 = vmatpush.msra.mxu0 %v1536
        %2644 = vmatpush.msra.mxu0 %v1533
        %2645 = vmatpush.msra.mxu0 %v1530
        %2646 = vmatpush.msra.mxu0 %v1527
        %2647 = vmatpush.msra.mxu0 %v1524
        %2648 = vmatmul.f32.gmra.mxu0 %v2600
        %v2649 = vpop.f32.mrf.mxu0
        %v2650 = vadd.f32 0.0, %v2649
        %2651 = vmatmul.f32.gmra.mxu0 %v2601
        %v2652 = vpop.f32.mrf.mxu0
        %v2653 = vadd.f32 0.0, %v2652
        %2654 = vmatmul.f32.gmra.mxu0 %v2602
        %v2655 = vpop.f32.mrf.mxu0
        %v2656 = vadd.f32 0.0, %v2655
        %2657 = vmatmul.f32.gmra.mxu0 %v2603
        %v2658 = vpop.f32.mrf.mxu0
        %v2659 = vadd.f32 0.0, %v2658
        %2660 = vmatmul.f32.gmra.mxu0 %v2604
        %v2661 = vpop.f32.mrf.mxu0
        %v2662 = vadd.f32 0.0, %v2661
        %2663 = vmatmul.f32.gmra.mxu0 %v2605
        %v2664 = vpop.f32.mrf.mxu0
        %v2665 = vadd.f32 0.0, %v2664
        %2666 = vmatmul.f32.gmra.mxu0 %v2606
        %v2667 = vpop.f32.mrf.mxu0
        %v2668 = vadd.f32 0.0, %v2667
        %2669 = vmatmul.f32.gmra.mxu0 %v2607
        %v2670 = vpop.f32.mrf.mxu0
        %v2671 = vadd.f32 0.0, %v2670
        %2672 = vmatmul.f32.gmra.mxu0 %v2608
        %v2673 = vpop.f32.mrf.mxu0
        %v2674 = vadd.f32 0.0, %v2673
        %2675 = vmatmul.f32.gmra.mxu0 %v2609
        %v2676 = vpop.f32.mrf.mxu0
        %v2677 = vadd.f32 0.0, %v2676
        %2678 = vmatmul.f32.gmra.mxu0 %v2610
        %v2679 = vpop.f32.mrf.mxu0
        %v2680 = vadd.f32 0.0, %v2679
        %2681 = vmatmul.f32.gmra.mxu0 %v2611
        %v2682 = vpop.f32.mrf.mxu0
        %v2683 = vadd.f32 0.0, %v2682
        %2684 = vmatmul.f32.gmra.mxu0 %v2612
        %v2685 = vpop.f32.mrf.mxu0
        %v2686 = vadd.f32 0.0, %v2685
        %2687 = vmatmul.f32.gmra.mxu0 %v2613
        %v2688 = vpop.f32.mrf.mxu0
        %v2689 = vadd.f32 0.0, %v2688
        %2690 = vmatmul.f32.gmra.mxu0 %v2614
        %v2691 = vpop.f32.mrf.mxu0
        %v2692 = vadd.f32 0.0, %v2691
        %2693 = vmatmul.f32.gmra.mxu0 %v2615
        %v2694 = vpop.f32.mrf.mxu0
        %v2695 = vadd.f32 0.0, %v2694
        %2696 = vdwg.mxu0
        %2697 = vmatpush.msra.mxu0 %v1764
        %2698 = vmatpush.msra.mxu0 %v1761
        %2699 = vmatpush.msra.mxu0 %v1758
        %2700 = vmatpush.msra.mxu0 %v1755
        %2701 = vmatpush.msra.mxu0 %v1752
        %2702 = vmatpush.msra.mxu0 %v1749
        %2703 = vmatpush.msra.mxu0 %v1746
        %2704 = vmatpush.msra.mxu0 %v1743
        %2705 = vmatpush.msra.mxu0 %v1740
        %2706 = vmatpush.msra.mxu0 %v1737
        %2707 = vmatpush.msra.mxu0 %v1734
        %2708 = vmatpush.msra.mxu0 %v1731
        %2709 = vmatpush.msra.mxu0 %v1728
        %2710 = vmatpush.msra.mxu0 %v1725
        %2711 = vmatpush.msra.mxu0 %v1722
        %2712 = vmatpush.msra.mxu0 %v1719
        %2713 = vmatmul.f32.gmra.mxu0 %v2616
        %v2714 = vpop.f32.mrf.mxu0
        %v2715 = vadd.f32 0.0, %v2714
        %2716 = vmatmul.f32.gmra.mxu0 %v2617
        %v2717 = vpop.f32.mrf.mxu0
        %v2718 = vadd.f32 0.0, %v2717
        %2719 = vmatmul.f32.gmra.mxu0 %v2618
        %v2720 = vpop.f32.mrf.mxu0
        %v2721 = vadd.f32 0.0, %v2720
        %2722 = vmatmul.f32.gmra.mxu0 %v2619
        %v2723 = vpop.f32.mrf.mxu0
        %v2724 = vadd.f32 0.0, %v2723
        %2725 = vmatmul.f32.gmra.mxu0 %v2620
        %v2726 = vpop.f32.mrf.mxu0
        %v2727 = vadd.f32 0.0, %v2726
        %2728 = vmatmul.f32.gmra.mxu0 %v2621
        %v2729 = vpop.f32.mrf.mxu0
        %v2730 = vadd.f32 0.0, %v2729
        %2731 = vmatmul.f32.gmra.mxu0 %v2622
        %v2732 = vpop.f32.mrf.mxu0
        %v2733 = vadd.f32 0.0, %v2732
        %2734 = vmatmul.f32.gmra.mxu0 %v2623
        %v2735 = vpop.f32.mrf.mxu0
        %v2736 = vadd.f32 0.0, %v2735
        %2737 = vmatmul.f32.gmra.mxu0 %v2624
        %v2738 = vpop.f32.mrf.mxu0
        %v2739 = vadd.f32 0.0, %v2738
        %2740 = vmatmul.f32.gmra.mxu0 %v2625
        %v2741 = vpop.f32.mrf.mxu0
        %v2742 = vadd.f32 0.0, %v2741
        %2743 = vmatmul.f32.gmra.mxu0 %v2626
        %v2744 = vpop.f32.mrf.mxu0
        %v2745 = vadd.f32 0.0, %v2744
        %2746 = vmatmul.f32.gmra.mxu0 %v2627
        %v2747 = vpop.f32.mrf.mxu0
        %v2748 = vadd.f32 0.0, %v2747
        %2749 = vmatmul.f32.gmra.mxu0 %v2628
        %v2750 = vpop.f32.mrf.mxu0
        %v2751 = vadd.f32 0.0, %v2750
        %2752 = vmatmul.f32.gmra.mxu0 %v2629
        %v2753 = vpop.f32.mrf.mxu0
        %v2754 = vadd.f32 0.0, %v2753
        %2755 = vmatmul.f32.gmra.mxu0 %v2630
        %v2756 = vpop.f32.mrf.mxu0
        %v2757 = vadd.f32 0.0, %v2756
        %2758 = vmatmul.f32.gmra.mxu0 %v2631
        %v2759 = vpop.f32.mrf.mxu0
        %v2760 = vadd.f32 0.0, %v2759
        %2761 = vdwg.mxu0
        %v2762 = vld [vmem:[%s856] sm:$0xff]
        %v2763 = vld [vmem:[%s856 + $0x8] sm:$0xff]
        %v2764 = vld [vmem:[%s856 + $0x10] sm:$0xff]
        %v2765 = vld [vmem:[%s856 + $0x18] sm:$0xff]
        %v2766 = vld [vmem:[%s856 + $0x20] sm:$0xff]
        %v2767 = vld [vmem:[%s856 + $0x28] sm:$0xff]
        %v2768 = vld [vmem:[%s856 + $0x30] sm:$0xff]
        %v2769 = vld [vmem:[%s856 + $0x38] sm:$0xff]
        %v2770 = vld [vmem:[%s856 + $0x40] sm:$0xff]
        %v2771 = vld [vmem:[%s856 + $0x48] sm:$0xff]
        %v2772 = vld [vmem:[%s856 + $0x50] sm:$0xff]
        %v2773 = vld [vmem:[%s856 + $0x58] sm:$0xff]
        %v2774 = vld [vmem:[%s856 + $0x60] sm:$0xff]
        %v2775 = vld [vmem:[%s856 + $0x68] sm:$0xff]
        %v2776 = vld [vmem:[%s856 + $0x70] sm:$0xff]
        %v2777 = vld [vmem:[%s856 + $0x78] sm:$0xff]
        %v2778 = vld [vmem:[%s856 + $0x80] sm:$0xff]
        %v2779 = vld [vmem:[%s856 + $0x88] sm:$0xff]
        %v2780 = vld [vmem:[%s856 + $0x90] sm:$0xff]
        %v2781 = vld [vmem:[%s856 + $0x98] sm:$0xff]
        %v2782 = vld [vmem:[%s856 + $0xa0] sm:$0xff]
        %v2783 = vld [vmem:[%s856 + $0xa8] sm:$0xff]
        %v2784 = vld [vmem:[%s856 + $0xb0] sm:$0xff]
        %v2785 = vld [vmem:[%s856 + $0xb8] sm:$0xff]
        %v2786 = vld [vmem:[%s856 + $0xc0] sm:$0xff]
        %v2787 = vld [vmem:[%s856 + $0xc8] sm:$0xff]
        %v2788 = vld [vmem:[%s856 + $0xd0] sm:$0xff]
        %v2789 = vld [vmem:[%s856 + $0xd8] sm:$0xff]
        %v2790 = vld [vmem:[%s856 + $0xe0] sm:$0xff]
        %v2791 = vld [vmem:[%s856 + $0xe8] sm:$0xff]
        %v2792 = vld [vmem:[%s856 + $0xf0] sm:$0xff]
        %v2793 = vld [vmem:[%s856 + $0xf8] sm:$0xff]
        %2794 = vmatpush.msra.mxu0 %v2777
        %2795 = vmatpush.msra.mxu0 %v2776
        %2796 = vmatpush.msra.mxu0 %v2775
        %2797 = vmatpush.msra.mxu0 %v2774
        %2798 = vmatpush.msra.mxu0 %v2773
        %2799 = vmatpush.msra.mxu0 %v2772
        %2800 = vmatpush.msra.mxu0 %v2771
        %2801 = vmatpush.msra.mxu0 %v2770
        %2802 = vmatpush.msra.mxu0 %v2769
        %2803 = vmatpush.msra.mxu0 %v2768
        %2804 = vmatpush.msra.mxu0 %v2767
        %2805 = vmatpush.msra.mxu0 %v2766
        %2806 = vmatpush.msra.mxu0 %v2765
        %2807 = vmatpush.msra.mxu0 %v2764
        %2808 = vmatpush.msra.mxu0 %v2763
        %2809 = vmatpush.msra.mxu0 %v2762
        %2810 = vmatmul.f32.gmra.mxu0 %v2650
        %v2811 = vpop.f32.mrf.mxu0
        %v2812 = vadd.f32 0.0, %v2811
        %2813 = vmatmul.f32.gmra.mxu0 %v2653
        %v2814 = vpop.f32.mrf.mxu0
        %v2815 = vadd.f32 0.0, %v2814
        %2816 = vmatmul.f32.gmra.mxu0 %v2656
        %v2817 = vpop.f32.mrf.mxu0
        %v2818 = vadd.f32 0.0, %v2817
        %2819 = vmatmul.f32.gmra.mxu0 %v2659
        %v2820 = vpop.f32.mrf.mxu0
        %v2821 = vadd.f32 0.0, %v2820
        %2822 = vmatmul.f32.gmra.mxu0 %v2662
        %v2823 = vpop.f32.mrf.mxu0
        %v2824 = vadd.f32 0.0, %v2823
        %2825 = vmatmul.f32.gmra.mxu0 %v2665
        %v2826 = vpop.f32.mrf.mxu0
        %v2827 = vadd.f32 0.0, %v2826
        %2828 = vmatmul.f32.gmra.mxu0 %v2668
        %v2829 = vpop.f32.mrf.mxu0
        %v2830 = vadd.f32 0.0, %v2829
        %2831 = vmatmul.f32.gmra.mxu0 %v2671
        %v2832 = vpop.f32.mrf.mxu0
        %v2833 = vadd.f32 0.0, %v2832
        %2834 = vmatmul.f32.gmra.mxu0 %v2674
        %v2835 = vpop.f32.mrf.mxu0
        %v2836 = vadd.f32 0.0, %v2835
        %2837 = vmatmul.f32.gmra.mxu0 %v2677
        %v2838 = vpop.f32.mrf.mxu0
        %v2839 = vadd.f32 0.0, %v2838
        %2840 = vmatmul.f32.gmra.mxu0 %v2680
        %v2841 = vpop.f32.mrf.mxu0
        %v2842 = vadd.f32 0.0, %v2841
        %2843 = vmatmul.f32.gmra.mxu0 %v2683
        %v2844 = vpop.f32.mrf.mxu0
        %v2845 = vadd.f32 0.0, %v2844
        %2846 = vmatmul.f32.gmra.mxu0 %v2686
        %v2847 = vpop.f32.mrf.mxu0
        %v2848 = vadd.f32 0.0, %v2847
        %2849 = vmatmul.f32.gmra.mxu0 %v2689
        %v2850 = vpop.f32.mrf.mxu0
        %v2851 = vadd.f32 0.0, %v2850
        %2852 = vmatmul.f32.gmra.mxu0 %v2692
        %v2853 = vpop.f32.mrf.mxu0
        %v2854 = vadd.f32 0.0, %v2853
        %2855 = vmatmul.f32.gmra.mxu0 %v2695
        %v2856 = vpop.f32.mrf.mxu0
        %v2857 = vadd.f32 0.0, %v2856
        %2858 = vdwg.mxu0
        %2859 = vmatpush.msra.mxu0 %v2793
        %2860 = vmatpush.msra.mxu0 %v2792
        %2861 = vmatpush.msra.mxu0 %v2791
        %2862 = vmatpush.msra.mxu0 %v2790
        %2863 = vmatpush.msra.mxu0 %v2789
        %2864 = vmatpush.msra.mxu0 %v2788
        %2865 = vmatpush.msra.mxu0 %v2787
        %2866 = vmatpush.msra.mxu0 %v2786
        %2867 = vmatpush.msra.mxu0 %v2785
        %2868 = vmatpush.msra.mxu0 %v2784
        %2869 = vmatpush.msra.mxu0 %v2783
        %2870 = vmatpush.msra.mxu0 %v2782
        %2871 = vmatpush.msra.mxu0 %v2781
        %2872 = vmatpush.msra.mxu0 %v2780
        %2873 = vmatpush.msra.mxu0 %v2779
        %2874 = vmatpush.msra.mxu0 %v2778
        %2875 = vmatmul.f32.gmra.mxu0 %v2715
        %v2876 = vpop.f32.mrf.mxu0
        %v2877 = vadd.f32 0.0, %v2876
        %2878 = vmatmul.f32.gmra.mxu0 %v2718
        %v2879 = vpop.f32.mrf.mxu0
        %v2880 = vadd.f32 0.0, %v2879
        %2881 = vmatmul.f32.gmra.mxu0 %v2721
        %v2882 = vpop.f32.mrf.mxu0
        %v2883 = vadd.f32 0.0, %v2882
        %2884 = vmatmul.f32.gmra.mxu0 %v2724
        %v2885 = vpop.f32.mrf.mxu0
        %v2886 = vadd.f32 0.0, %v2885
        %2887 = vmatmul.f32.gmra.mxu0 %v2727
        %v2888 = vpop.f32.mrf.mxu0
        %v2889 = vadd.f32 0.0, %v2888
        %2890 = vmatmul.f32.gmra.mxu0 %v2730
        %v2891 = vpop.f32.mrf.mxu0
        %v2892 = vadd.f32 0.0, %v2891
        %2893 = vmatmul.f32.gmra.mxu0 %v2733
        %v2894 = vpop.f32.mrf.mxu0
        %v2895 = vadd.f32 0.0, %v2894
        %2896 = vmatmul.f32.gmra.mxu0 %v2736
        %v2897 = vpop.f32.mrf.mxu0
        %v2898 = vadd.f32 0.0, %v2897
        %2899 = vmatmul.f32.gmra.mxu0 %v2739
        %v2900 = vpop.f32.mrf.mxu0
        %v2901 = vadd.f32 0.0, %v2900
        %2902 = vmatmul.f32.gmra.mxu0 %v2742
        %v2903 = vpop.f32.mrf.mxu0
        %v2904 = vadd.f32 0.0, %v2903
        %2905 = vmatmul.f32.gmra.mxu0 %v2745
        %v2906 = vpop.f32.mrf.mxu0
        %v2907 = vadd.f32 0.0, %v2906
        %2908 = vmatmul.f32.gmra.mxu0 %v2748
        %v2909 = vpop.f32.mrf.mxu0
        %v2910 = vadd.f32 0.0, %v2909
        %2911 = vmatmul.f32.gmra.mxu0 %v2751
        %v2912 = vpop.f32.mrf.mxu0
        %v2913 = vadd.f32 0.0, %v2912
        %2914 = vmatmul.f32.gmra.mxu0 %v2754
        %v2915 = vpop.f32.mrf.mxu0
        %v2916 = vadd.f32 0.0, %v2915
        %2917 = vmatmul.f32.gmra.mxu0 %v2757
        %v2918 = vpop.f32.mrf.mxu0
        %v2919 = vadd.f32 0.0, %v2918
        %2920 = vmatmul.f32.gmra.mxu0 %v2760
        %v2921 = vpop.f32.mrf.mxu0
        %v2922 = vadd.f32 0.0, %v2921
        %2923 = vdwg.mxu0
        %v2924 = vadd.f32 %v2812, %v2877
        %v2925 = vadd.f32 %v2815, %v2880
        %v2926 = vadd.f32 %v2818, %v2883
        %v2927 = vadd.f32 %v2821, %v2886
        %v2928 = vadd.f32 %v2824, %v2889
        %v2929 = vadd.f32 %v2827, %v2892
        %v2930 = vadd.f32 %v2830, %v2895
        %v2931 = vadd.f32 %v2833, %v2898
        %v2932 = vadd.f32 %v2836, %v2901
        %v2933 = vadd.f32 %v2839, %v2904
        %v2934 = vadd.f32 %v2842, %v2907
        %v2935 = vadd.f32 %v2845, %v2910
        %v2936 = vadd.f32 %v2848, %v2913
        %v2937 = vadd.f32 %v2851, %v2916
        %v2938 = vadd.f32 %v2854, %v2919
        %v2939 = vadd.f32 %v2857, %v2922
        %v2940 = vld [vmem:[%s711] sm:$0x1]
        %v2942 = vperm.slane %v2940, 0
        %v2944 = vadd.f32 %v2924, %v2942
        %v2945 = vadd.f32 %v2925, %v2942
        %v2946 = vadd.f32 %v2926, %v2942
        %v2947 = vadd.f32 %v2927, %v2942
        %v2948 = vadd.f32 %v2928, %v2942
        %v2949 = vadd.f32 %v2929, %v2942
        %v2950 = vadd.f32 %v2930, %v2942
        %v2951 = vadd.f32 %v2931, %v2942
        %v2952 = vadd.f32 %v2932, %v2942
        %v2953 = vadd.f32 %v2933, %v2942
        %v2954 = vadd.f32 %v2934, %v2942
        %v2955 = vadd.f32 %v2935, %v2942
        %v2956 = vadd.f32 %v2936, %v2942
        %v2957 = vadd.f32 %v2937, %v2942
        %v2958 = vadd.f32 %v2938, %v2942
        %v2959 = vadd.f32 %v2939, %v2942
        %v2960 = vadd.f32 %v2944, %v897
        %v2961 = vadd.f32 %v2945, %v898
        %v2962 = vadd.f32 %v2946, %v899
        %v2963 = vadd.f32 %v2947, %v900
        %v2964 = vadd.f32 %v2948, %v901
        %v2965 = vadd.f32 %v2949, %v902
        %v2966 = vadd.f32 %v2950, %v903
        %v2967 = vadd.f32 %v2951, %v904
        %v2968 = vadd.f32 %v2952, %v905
        %v2969 = vadd.f32 %v2953, %v906
        %v2970 = vadd.f32 %v2954, %v907
        %v2971 = vadd.f32 %v2955, %v908
        %v2972 = vadd.f32 %v2956, %v909
        %v2973 = vadd.f32 %v2957, %v910
        %v2974 = vadd.f32 %v2958, %v911
        %v2975 = vadd.f32 %v2959, %v912
        %v2976 = vld [vmem:[%s720] sm:$0x1]
        %v2977 = vld [vmem:[%s729] sm:$0x1]
        %2978 = vadd.xlane.f32.xlu0 %v2960
        %v2979 = vpop.xlane.xlu0 %2978
        %2980 = vadd.xlane.f32.xlu0 %v2961
        %v2981 = vpop.xlane.xlu0 %2980
        %2982 = vadd.xlane.f32.xlu0 %v2962
        %v2983 = vpop.xlane.xlu0 %2982
        %2984 = vadd.xlane.f32.xlu0 %v2963
        %v2985 = vpop.xlane.xlu0 %2984
        %2986 = vadd.xlane.f32.xlu0 %v2964
        %v2987 = vpop.xlane.xlu0 %2986
        %2988 = vadd.xlane.f32.xlu0 %v2965
        %v2989 = vpop.xlane.xlu0 %2988
        %2990 = vadd.xlane.f32.xlu0 %v2966
        %v2991 = vpop.xlane.xlu0 %2990
        %2992 = vadd.xlane.f32.xlu0 %v2967
        %v2993 = vpop.xlane.xlu0 %2992
        %2994 = vadd.xlane.f32.xlu0 %v2968
        %v2995 = vpop.xlane.xlu0 %2994
        %2996 = vadd.xlane.f32.xlu0 %v2969
        %v2997 = vpop.xlane.xlu0 %2996
        %2998 = vadd.xlane.f32.xlu0 %v2970
        %v2999 = vpop.xlane.xlu0 %2998
        %3000 = vadd.xlane.f32.xlu0 %v2971
        %v3001 = vpop.xlane.xlu0 %3000
        %3002 = vadd.xlane.f32.xlu0 %v2972
        %v3003 = vpop.xlane.xlu0 %3002
        %3004 = vadd.xlane.f32.xlu0 %v2973
        %v3005 = vpop.xlane.xlu0 %3004
        %3006 = vadd.xlane.f32.xlu0 %v2974
        %v3007 = vpop.xlane.xlu0 %3006
        %3008 = vadd.xlane.f32.xlu0 %v2975
        %v3009 = vpop.xlane.xlu0 %3008
        %v3010 = vmul.f32 %v2979, %v953
        %v3011 = vmul.f32 %v2981, %v953
        %v3012 = vmul.f32 %v2983, %v953
        %v3013 = vmul.f32 %v2985, %v953
        %v3014 = vmul.f32 %v2987, %v953
        %v3015 = vmul.f32 %v2989, %v953
        %v3016 = vmul.f32 %v2991, %v953
        %v3017 = vmul.f32 %v2993, %v953
        %v3018 = vmul.f32 %v2995, %v953
        %v3019 = vmul.f32 %v2997, %v953
        %v3020 = vmul.f32 %v2999, %v953
        %v3021 = vmul.f32 %v3001, %v953
        %v3022 = vmul.f32 %v3003, %v953
        %v3023 = vmul.f32 %v3005, %v953
        %v3024 = vmul.f32 %v3007, %v953
        %v3025 = vmul.f32 %v3009, %v953
        %v3026 = vsub.f32 %v2960, %v3010
        %v3027 = vsub.f32 %v2961, %v3011
        %v3028 = vsub.f32 %v2962, %v3012
        %v3029 = vsub.f32 %v2963, %v3013
        %v3030 = vsub.f32 %v2964, %v3014
        %v3031 = vsub.f32 %v2965, %v3015
        %v3032 = vsub.f32 %v2966, %v3016
        %v3033 = vsub.f32 %v2967, %v3017
        %v3034 = vsub.f32 %v2968, %v3018
        %v3035 = vsub.f32 %v2969, %v3019
        %v3036 = vsub.f32 %v2970, %v3020
        %v3037 = vsub.f32 %v2971, %v3021
        %v3038 = vsub.f32 %v2972, %v3022
        %v3039 = vsub.f32 %v2973, %v3023
        %v3040 = vsub.f32 %v2974, %v3024
        %v3041 = vsub.f32 %v2975, %v3025
        %v3042 = vmul.f32 %v3026, %v3026
        %v3043 = vmul.f32 %v3027, %v3027
        %v3044 = vmul.f32 %v3028, %v3028
        %v3045 = vmul.f32 %v3029, %v3029
        %v3046 = vmul.f32 %v3030, %v3030
        %v3047 = vmul.f32 %v3031, %v3031
        %v3048 = vmul.f32 %v3032, %v3032
        %v3049 = vmul.f32 %v3033, %v3033
        %v3050 = vmul.f32 %v3034, %v3034
        %v3051 = vmul.f32 %v3035, %v3035
        %v3052 = vmul.f32 %v3036, %v3036
        %v3053 = vmul.f32 %v3037, %v3037
        %v3054 = vmul.f32 %v3038, %v3038
        %v3055 = vmul.f32 %v3039, %v3039
        %v3056 = vmul.f32 %v3040, %v3040
        %v3057 = vmul.f32 %v3041, %v3041
        %3058 = vadd.xlane.f32.xlu0 %v3042
        %v3059 = vpop.xlane.xlu0 %3058
        %3060 = vadd.xlane.f32.xlu0 %v3043
        %v3061 = vpop.xlane.xlu0 %3060
        %3062 = vadd.xlane.f32.xlu0 %v3044
        %v3063 = vpop.xlane.xlu0 %3062
        %3064 = vadd.xlane.f32.xlu0 %v3045
        %v3065 = vpop.xlane.xlu0 %3064
        %3066 = vadd.xlane.f32.xlu0 %v3046
        %v3067 = vpop.xlane.xlu0 %3066
        %3068 = vadd.xlane.f32.xlu0 %v3047
        %v3069 = vpop.xlane.xlu0 %3068
        %3070 = vadd.xlane.f32.xlu0 %v3048
        %v3071 = vpop.xlane.xlu0 %3070
        %3072 = vadd.xlane.f32.xlu0 %v3049
        %v3073 = vpop.xlane.xlu0 %3072
        %3074 = vadd.xlane.f32.xlu0 %v3050
        %v3075 = vpop.xlane.xlu0 %3074
        %3076 = vadd.xlane.f32.xlu0 %v3051
        %v3077 = vpop.xlane.xlu0 %3076
        %3078 = vadd.xlane.f32.xlu0 %v3052
        %v3079 = vpop.xlane.xlu0 %3078
        %3080 = vadd.xlane.f32.xlu0 %v3053
        %v3081 = vpop.xlane.xlu0 %3080
        %3082 = vadd.xlane.f32.xlu0 %v3054
        %v3083 = vpop.xlane.xlu0 %3082
        %3084 = vadd.xlane.f32.xlu0 %v3055
        %v3085 = vpop.xlane.xlu0 %3084
        %3086 = vadd.xlane.f32.xlu0 %v3056
        %v3087 = vpop.xlane.xlu0 %3086
        %3088 = vadd.xlane.f32.xlu0 %v3057
        %v3089 = vpop.xlane.xlu0 %3088
        %v3090 = vmul.f32 %v3059, %v953
        %v3091 = vmul.f32 %v3061, %v953
        %v3092 = vmul.f32 %v3063, %v953
        %v3093 = vmul.f32 %v3065, %v953
        %v3094 = vmul.f32 %v3067, %v953
        %v3095 = vmul.f32 %v3069, %v953
        %v3096 = vmul.f32 %v3071, %v953
        %v3097 = vmul.f32 %v3073, %v953
        %v3098 = vmul.f32 %v3075, %v953
        %v3099 = vmul.f32 %v3077, %v953
        %v3100 = vmul.f32 %v3079, %v953
        %v3101 = vmul.f32 %v3081, %v953
        %v3102 = vmul.f32 %v3083, %v953
        %v3103 = vmul.f32 %v3085, %v953
        %v3104 = vmul.f32 %v3087, %v953
        %v3105 = vmul.f32 %v3089, %v953
        %v3106 = vadd.f32 %v3090, 1e-05
        %v3107 = vadd.f32 %v3091, 1e-05
        %v3108 = vadd.f32 %v3092, 1e-05
        %v3109 = vadd.f32 %v3093, 1e-05
        %v3110 = vadd.f32 %v3094, 1e-05
        %v3111 = vadd.f32 %v3095, 1e-05
        %v3112 = vadd.f32 %v3096, 1e-05
        %v3113 = vadd.f32 %v3097, 1e-05
        %v3114 = vadd.f32 %v3098, 1e-05
        %v3115 = vadd.f32 %v3099, 1e-05
        %v3116 = vadd.f32 %v3100, 1e-05
        %v3117 = vadd.f32 %v3101, 1e-05
        %v3118 = vadd.f32 %v3102, 1e-05
        %v3119 = vadd.f32 %v3103, 1e-05
        %v3120 = vadd.f32 %v3104, 1e-05
        %v3121 = vadd.f32 %v3105, 1e-05
        %v3122 = vrsqrt.pop %v3106
        %v3123 = vmul.f32 %v3122, %v3106
        %v3124 = vmul.f32 %v3123, %v3122
        %v3125 = vmul.f32 0.5, %v3124
        %v3126 = vsub.f32 1.5, %v3125
        %v3127 = vmul.f32 %v3122, %v3126
        %vm3128 = vweird.f32 %v3106
        %vm3129 = vweird.f32 %v3122
        %vm3130 = vmor %vm3128, %vm3129
        %v3131 = vsel %vm3130, %v3122, %v3127
        %v3132 = vrsqrt.pop %v3107
        %v3133 = vmul.f32 %v3132, %v3107
        %v3134 = vmul.f32 %v3133, %v3132
        %v3135 = vmul.f32 0.5, %v3134
        %v3136 = vsub.f32 1.5, %v3135
        %v3137 = vmul.f32 %v3132, %v3136
        %vm3138 = vweird.f32 %v3107
        %vm3139 = vweird.f32 %v3132
        %vm3140 = vmor %vm3138, %vm3139
        %v3141 = vsel %vm3140, %v3132, %v3137
        %v3142 = vrsqrt.pop %v3108
        %v3143 = vmul.f32 %v3142, %v3108
        %v3144 = vmul.f32 %v3143, %v3142
        %v3145 = vmul.f32 0.5, %v3144
        %v3146 = vsub.f32 1.5, %v3145
        %v3147 = vmul.f32 %v3142, %v3146
        %vm3148 = vweird.f32 %v3108
        %vm3149 = vweird.f32 %v3142
        %vm3150 = vmor %vm3148, %vm3149
        %v3151 = vsel %vm3150, %v3142, %v3147
        %v3152 = vrsqrt.pop %v3109
        %v3153 = vmul.f32 %v3152, %v3109
        %v3154 = vmul.f32 %v3153, %v3152
        %v3155 = vmul.f32 0.5, %v3154
        %v3156 = vsub.f32 1.5, %v3155
        %v3157 = vmul.f32 %v3152, %v3156
        %vm3158 = vweird.f32 %v3109
        %vm3159 = vweird.f32 %v3152
        %vm3160 = vmor %vm3158, %vm3159
        %v3161 = vsel %vm3160, %v3152, %v3157
        %v3162 = vrsqrt.pop %v3110
        %v3163 = vmul.f32 %v3162, %v3110
        %v3164 = vmul.f32 %v3163, %v3162
        %v3165 = vmul.f32 0.5, %v3164
        %v3166 = vsub.f32 1.5, %v3165
        %v3167 = vmul.f32 %v3162, %v3166
        %vm3168 = vweird.f32 %v3110
        %vm3169 = vweird.f32 %v3162
        %vm3170 = vmor %vm3168, %vm3169
        %v3171 = vsel %vm3170, %v3162, %v3167
        %v3172 = vrsqrt.pop %v3111
        %v3173 = vmul.f32 %v3172, %v3111
        %v3174 = vmul.f32 %v3173, %v3172
        %v3175 = vmul.f32 0.5, %v3174
        %v3176 = vsub.f32 1.5, %v3175
        %v3177 = vmul.f32 %v3172, %v3176
        %vm3178 = vweird.f32 %v3111
        %vm3179 = vweird.f32 %v3172
        %vm3180 = vmor %vm3178, %vm3179
        %v3181 = vsel %vm3180, %v3172, %v3177
        %v3182 = vrsqrt.pop %v3112
        %v3183 = vmul.f32 %v3182, %v3112
        %v3184 = vmul.f32 %v3183, %v3182
        %v3185 = vmul.f32 0.5, %v3184
        %v3186 = vsub.f32 1.5, %v3185
        %v3187 = vmul.f32 %v3182, %v3186
        %vm3188 = vweird.f32 %v3112
        %vm3189 = vweird.f32 %v3182
        %vm3190 = vmor %vm3188, %vm3189
        %v3191 = vsel %vm3190, %v3182, %v3187
        %v3192 = vrsqrt.pop %v3113
        %v3193 = vmul.f32 %v3192, %v3113
        %v3194 = vmul.f32 %v3193, %v3192
        %v3195 = vmul.f32 0.5, %v3194
        %v3196 = vsub.f32 1.5, %v3195
        %v3197 = vmul.f32 %v3192, %v3196
        %vm3198 = vweird.f32 %v3113
        %vm3199 = vweird.f32 %v3192
        %vm3200 = vmor %vm3198, %vm3199
        %v3201 = vsel %vm3200, %v3192, %v3197
        %v3202 = vrsqrt.pop %v3114
        %v3203 = vmul.f32 %v3202, %v3114
        %v3204 = vmul.f32 %v3203, %v3202
        %v3205 = vmul.f32 0.5, %v3204
        %v3206 = vsub.f32 1.5, %v3205
        %v3207 = vmul.f32 %v3202, %v3206
        %vm3208 = vweird.f32 %v3114
        %vm3209 = vweird.f32 %v3202
        %vm3210 = vmor %vm3208, %vm3209
        %v3211 = vsel %vm3210, %v3202, %v3207
        %v3212 = vrsqrt.pop %v3115
        %v3213 = vmul.f32 %v3212, %v3115
        %v3214 = vmul.f32 %v3213, %v3212
        %v3215 = vmul.f32 0.5, %v3214
        %v3216 = vsub.f32 1.5, %v3215
        %v3217 = vmul.f32 %v3212, %v3216
        %vm3218 = vweird.f32 %v3115
        %vm3219 = vweird.f32 %v3212
        %vm3220 = vmor %vm3218, %vm3219
        %v3221 = vsel %vm3220, %v3212, %v3217
        %v3222 = vrsqrt.pop %v3116
        %v3223 = vmul.f32 %v3222, %v3116
        %v3224 = vmul.f32 %v3223, %v3222
        %v3225 = vmul.f32 0.5, %v3224
        %v3226 = vsub.f32 1.5, %v3225
        %v3227 = vmul.f32 %v3222, %v3226
        %vm3228 = vweird.f32 %v3116
        %vm3229 = vweird.f32 %v3222
        %vm3230 = vmor %vm3228, %vm3229
        %v3231 = vsel %vm3230, %v3222, %v3227
        %v3232 = vrsqrt.pop %v3117
        %v3233 = vmul.f32 %v3232, %v3117
        %v3234 = vmul.f32 %v3233, %v3232
        %v3235 = vmul.f32 0.5, %v3234
        %v3236 = vsub.f32 1.5, %v3235
        %v3237 = vmul.f32 %v3232, %v3236
        %vm3238 = vweird.f32 %v3117
        %vm3239 = vweird.f32 %v3232
        %vm3240 = vmor %vm3238, %vm3239
        %v3241 = vsel %vm3240, %v3232, %v3237
        %v3242 = vrsqrt.pop %v3118
        %v3243 = vmul.f32 %v3242, %v3118
        %v3244 = vmul.f32 %v3243, %v3242
        %v3245 = vmul.f32 0.5, %v3244
        %v3246 = vsub.f32 1.5, %v3245
        %v3247 = vmul.f32 %v3242, %v3246
        %vm3248 = vweird.f32 %v3118
        %vm3249 = vweird.f32 %v3242
        %vm3250 = vmor %vm3248, %vm3249
        %v3251 = vsel %vm3250, %v3242, %v3247
        %v3252 = vrsqrt.pop %v3119
        %v3253 = vmul.f32 %v3252, %v3119
        %v3254 = vmul.f32 %v3253, %v3252
        %v3255 = vmul.f32 0.5, %v3254
        %v3256 = vsub.f32 1.5, %v3255
        %v3257 = vmul.f32 %v3252, %v3256
        %vm3258 = vweird.f32 %v3119
        %vm3259 = vweird.f32 %v3252
        %vm3260 = vmor %vm3258, %vm3259
        %v3261 = vsel %vm3260, %v3252, %v3257
        %v3262 = vrsqrt.pop %v3120
        %v3263 = vmul.f32 %v3262, %v3120
        %v3264 = vmul.f32 %v3263, %v3262
        %v3265 = vmul.f32 0.5, %v3264
        %v3266 = vsub.f32 1.5, %v3265
        %v3267 = vmul.f32 %v3262, %v3266
        %vm3268 = vweird.f32 %v3120
        %vm3269 = vweird.f32 %v3262
        %vm3270 = vmor %vm3268, %vm3269
        %v3271 = vsel %vm3270, %v3262, %v3267
        %v3272 = vrsqrt.pop %v3121
        %v3273 = vmul.f32 %v3272, %v3121
        %v3274 = vmul.f32 %v3273, %v3272
        %v3275 = vmul.f32 0.5, %v3274
        %v3276 = vsub.f32 1.5, %v3275
        %v3277 = vmul.f32 %v3272, %v3276
        %vm3278 = vweird.f32 %v3121
        %vm3279 = vweird.f32 %v3272
        %vm3280 = vmor %vm3278, %vm3279
        %v3281 = vsel %vm3280, %v3272, %v3277
        %v3282 = vmul.f32 %v3026, %v3131
        %v3283 = vmul.f32 %v3027, %v3141
        %v3284 = vmul.f32 %v3028, %v3151
        %v3285 = vmul.f32 %v3029, %v3161
        %v3286 = vmul.f32 %v3030, %v3171
        %v3287 = vmul.f32 %v3031, %v3181
        %v3288 = vmul.f32 %v3032, %v3191
        %v3289 = vmul.f32 %v3033, %v3201
        %v3290 = vmul.f32 %v3034, %v3211
        %v3291 = vmul.f32 %v3035, %v3221
        %v3292 = vmul.f32 %v3036, %v3231
        %v3293 = vmul.f32 %v3037, %v3241
        %v3294 = vmul.f32 %v3038, %v3251
        %v3295 = vmul.f32 %v3039, %v3261
        %v3296 = vmul.f32 %v3040, %v3271
        %v3297 = vmul.f32 %v3041, %v3281
        %v3299 = vperm.slane %v2976, 0
        %v3301 = vmul.f32 %v3282, %v3299
        %v3302 = vmul.f32 %v3283, %v3299
        %v3303 = vmul.f32 %v3284, %v3299
        %v3304 = vmul.f32 %v3285, %v3299
        %v3305 = vmul.f32 %v3286, %v3299
        %v3306 = vmul.f32 %v3287, %v3299
        %v3307 = vmul.f32 %v3288, %v3299
        %v3308 = vmul.f32 %v3289, %v3299
        %v3309 = vmul.f32 %v3290, %v3299
        %v3310 = vmul.f32 %v3291, %v3299
        %v3311 = vmul.f32 %v3292, %v3299
        %v3312 = vmul.f32 %v3293, %v3299
        %v3313 = vmul.f32 %v3294, %v3299
        %v3314 = vmul.f32 %v3295, %v3299
        %v3315 = vmul.f32 %v3296, %v3299
        %v3316 = vmul.f32 %v3297, %v3299
        %v3318 = vperm.slane %v2977, 0
        %v3320 = vadd.f32 %v3301, %v3318
        %v3321 = vadd.f32 %v3302, %v3318
        %v3322 = vadd.f32 %v3303, %v3318
        %v3323 = vadd.f32 %v3304, %v3318
        %v3324 = vadd.f32 %v3305, %v3318
        %v3325 = vadd.f32 %v3306, %v3318
        %v3326 = vadd.f32 %v3307, %v3318
        %v3327 = vadd.f32 %v3308, %v3318
        %v3328 = vadd.f32 %v3309, %v3318
        %v3329 = vadd.f32 %v3310, %v3318
        %v3330 = vadd.f32 %v3311, %v3318
        %v3331 = vadd.f32 %v3312, %v3318
        %v3332 = vadd.f32 %v3313, %v3318
        %v3333 = vadd.f32 %v3314, %v3318
        %v3334 = vadd.f32 %v3315, %v3318
        %v3335 = vadd.f32 %v3316, %v3318
        %v3336 = vld [vmem:[%s739] sm:$0xff]
        %v3337 = vld [vmem:[%s739 + $0x8] sm:$0xff]
        %v3338 = vld [vmem:[%s739 + $0x10] sm:$0xff]
        %v3339 = vld [vmem:[%s739 + $0x18] sm:$0xff]
        %v3340 = vld [vmem:[%s739 + $0x20] sm:$0xff]
        %v3341 = vld [vmem:[%s739 + $0x28] sm:$0xff]
        %v3342 = vld [vmem:[%s739 + $0x30] sm:$0xff]
        %v3343 = vld [vmem:[%s739 + $0x38] sm:$0xff]
        %v3344 = vld [vmem:[%s739 + $0x40] sm:$0xff]
        %v3345 = vld [vmem:[%s739 + $0x48] sm:$0xff]
        %v3346 = vld [vmem:[%s739 + $0x50] sm:$0xff]
        %v3347 = vld [vmem:[%s739 + $0x58] sm:$0xff]
        %v3348 = vld [vmem:[%s739 + $0x60] sm:$0xff]
        %v3349 = vld [vmem:[%s739 + $0x68] sm:$0xff]
        %v3350 = vld [vmem:[%s739 + $0x70] sm:$0xff]
        %v3351 = vld [vmem:[%s739 + $0x78] sm:$0xff]
        %v3352 = vld [vmem:[%s739 + $0x80] sm:$0xff]
        %v3353 = vld [vmem:[%s739 + $0x88] sm:$0xff]
        %v3354 = vld [vmem:[%s739 + $0x90] sm:$0xff]
        %v3355 = vld [vmem:[%s739 + $0x98] sm:$0xff]
        %v3356 = vld [vmem:[%s739 + $0xa0] sm:$0xff]
        %v3357 = vld [vmem:[%s739 + $0xa8] sm:$0xff]
        %v3358 = vld [vmem:[%s739 + $0xb0] sm:$0xff]
        %v3359 = vld [vmem:[%s739 + $0xb8] sm:$0xff]
        %v3360 = vld [vmem:[%s739 + $0xc0] sm:$0xff]
        %v3361 = vld [vmem:[%s739 + $0xc8] sm:$0xff]
        %v3362 = vld [vmem:[%s739 + $0xd0] sm:$0xff]
        %v3363 = vld [vmem:[%s739 + $0xd8] sm:$0xff]
        %v3364 = vld [vmem:[%s739 + $0xe0] sm:$0xff]
        %v3365 = vld [vmem:[%s739 + $0xe8] sm:$0xff]
        %v3366 = vld [vmem:[%s739 + $0xf0] sm:$0xff]
        %v3367 = vld [vmem:[%s739 + $0xf8] sm:$0xff]
        %v3368 = vld [vmem:[%s860] sm:$0x3]
        %v3370 = vperm.slane %v3368, 0
        %v3371 = vperm.slane %v3368, 1
        %3374 = vmatpush.msra.mxu0 %v3366
        %3375 = vmatpush.msra.mxu0 %v3364
        %3376 = vmatpush.msra.mxu0 %v3362
        %3377 = vmatpush.msra.mxu0 %v3360
        %3378 = vmatpush.msra.mxu0 %v3358
        %3379 = vmatpush.msra.mxu0 %v3356
        %3380 = vmatpush.msra.mxu0 %v3354
        %3381 = vmatpush.msra.mxu0 %v3352
        %3382 = vmatpush.msra.mxu0 %v3350
        %3383 = vmatpush.msra.mxu0 %v3348
        %3384 = vmatpush.msra.mxu0 %v3346
        %3385 = vmatpush.msra.mxu0 %v3344
        %3386 = vmatpush.msra.mxu0 %v3342
        %3387 = vmatpush.msra.mxu0 %v3340
        %3388 = vmatpush.msra.mxu0 %v3338
        %3389 = vmatpush.msra.mxu0 %v3336
        %3390 = vmatmul.f32.gmra.mxu0 %v3320
        %v3391 = vpop.f32.mrf.mxu0
        %v3392 = vadd.f32 %v3370, %v3391
        %3393 = vmatmul.f32.gmra.mxu0 %v3321
        %v3394 = vpop.f32.mrf.mxu0
        %v3395 = vadd.f32 %v3370, %v3394
        %3396 = vmatmul.f32.gmra.mxu0 %v3322
        %v3397 = vpop.f32.mrf.mxu0
        %v3398 = vadd.f32 %v3370, %v3397
        %3399 = vmatmul.f32.gmra.mxu0 %v3323
        %v3400 = vpop.f32.mrf.mxu0
        %v3401 = vadd.f32 %v3370, %v3400
        %3402 = vmatmul.f32.gmra.mxu0 %v3324
        %v3403 = vpop.f32.mrf.mxu0
        %v3404 = vadd.f32 %v3370, %v3403
        %3405 = vmatmul.f32.gmra.mxu0 %v3325
        %v3406 = vpop.f32.mrf.mxu0
        %v3407 = vadd.f32 %v3370, %v3406
        %3408 = vmatmul.f32.gmra.mxu0 %v3326
        %v3409 = vpop.f32.mrf.mxu0
        %v3410 = vadd.f32 %v3370, %v3409
        %3411 = vmatmul.f32.gmra.mxu0 %v3327
        %v3412 = vpop.f32.mrf.mxu0
        %v3413 = vadd.f32 %v3370, %v3412
        %3414 = vmatmul.f32.gmra.mxu0 %v3328
        %v3415 = vpop.f32.mrf.mxu0
        %v3416 = vadd.f32 %v3370, %v3415
        %3417 = vmatmul.f32.gmra.mxu0 %v3329
        %v3418 = vpop.f32.mrf.mxu0
        %v3419 = vadd.f32 %v3370, %v3418
        %3420 = vmatmul.f32.gmra.mxu0 %v3330
        %v3421 = vpop.f32.mrf.mxu0
        %v3422 = vadd.f32 %v3370, %v3421
        %3423 = vmatmul.f32.gmra.mxu0 %v3331
        %v3424 = vpop.f32.mrf.mxu0
        %v3425 = vadd.f32 %v3370, %v3424
        %3426 = vmatmul.f32.gmra.mxu0 %v3332
        %v3427 = vpop.f32.mrf.mxu0
        %v3428 = vadd.f32 %v3370, %v3427
        %3429 = vmatmul.f32.gmra.mxu0 %v3333
        %v3430 = vpop.f32.mrf.mxu0
        %v3431 = vadd.f32 %v3370, %v3430
        %3432 = vmatmul.f32.gmra.mxu0 %v3334
        %v3433 = vpop.f32.mrf.mxu0
        %v3434 = vadd.f32 %v3370, %v3433
        %3435 = vmatmul.f32.gmra.mxu0 %v3335
        %v3436 = vpop.f32.mrf.mxu0
        %v3437 = vadd.f32 %v3370, %v3436
        %3438 = vdwg.mxu0
        %3439 = vmatpush.msra.mxu0 %v3367
        %3440 = vmatpush.msra.mxu0 %v3365
        %3441 = vmatpush.msra.mxu0 %v3363
        %3442 = vmatpush.msra.mxu0 %v3361
        %3443 = vmatpush.msra.mxu0 %v3359
        %3444 = vmatpush.msra.mxu0 %v3357
        %3445 = vmatpush.msra.mxu0 %v3355
        %3446 = vmatpush.msra.mxu0 %v3353
        %3447 = vmatpush.msra.mxu0 %v3351
        %3448 = vmatpush.msra.mxu0 %v3349
        %3449 = vmatpush.msra.mxu0 %v3347
        %3450 = vmatpush.msra.mxu0 %v3345
        %3451 = vmatpush.msra.mxu0 %v3343
        %3452 = vmatpush.msra.mxu0 %v3341
        %3453 = vmatpush.msra.mxu0 %v3339
        %3454 = vmatpush.msra.mxu0 %v3337
        %3455 = vmatmul.f32.gmra.mxu0 %v3320
        %v3456 = vpop.f32.mrf.mxu0
        %v3457 = vadd.f32 %v3371, %v3456
        %3458 = vmatmul.f32.gmra.mxu0 %v3321
        %v3459 = vpop.f32.mrf.mxu0
        %v3460 = vadd.f32 %v3371, %v3459
        %3461 = vmatmul.f32.gmra.mxu0 %v3322
        %v3462 = vpop.f32.mrf.mxu0
        %v3463 = vadd.f32 %v3371, %v3462
        %3464 = vmatmul.f32.gmra.mxu0 %v3323
        %v3465 = vpop.f32.mrf.mxu0
        %v3466 = vadd.f32 %v3371, %v3465
        %3467 = vmatmul.f32.gmra.mxu0 %v3324
        %v3468 = vpop.f32.mrf.mxu0
        %v3469 = vadd.f32 %v3371, %v3468
        %3470 = vmatmul.f32.gmra.mxu0 %v3325
        %v3471 = vpop.f32.mrf.mxu0
        %v3472 = vadd.f32 %v3371, %v3471
        %3473 = vmatmul.f32.gmra.mxu0 %v3326
        %v3474 = vpop.f32.mrf.mxu0
        %v3475 = vadd.f32 %v3371, %v3474
        %3476 = vmatmul.f32.gmra.mxu0 %v3327
        %v3477 = vpop.f32.mrf.mxu0
        %v3478 = vadd.f32 %v3371, %v3477
        %3479 = vmatmul.f32.gmra.mxu0 %v3328
        %v3480 = vpop.f32.mrf.mxu0
        %v3481 = vadd.f32 %v3371, %v3480
        %3482 = vmatmul.f32.gmra.mxu0 %v3329
        %v3483 = vpop.f32.mrf.mxu0
        %v3484 = vadd.f32 %v3371, %v3483
        %3485 = vmatmul.f32.gmra.mxu0 %v3330
        %v3486 = vpop.f32.mrf.mxu0
        %v3487 = vadd.f32 %v3371, %v3486
        %3488 = vmatmul.f32.gmra.mxu0 %v3331
        %v3489 = vpop.f32.mrf.mxu0
        %v3490 = vadd.f32 %v3371, %v3489
        %3491 = vmatmul.f32.gmra.mxu0 %v3332
        %v3492 = vpop.f32.mrf.mxu0
        %v3493 = vadd.f32 %v3371, %v3492
        %3494 = vmatmul.f32.gmra.mxu0 %v3333
        %v3495 = vpop.f32.mrf.mxu0
        %v3496 = vadd.f32 %v3371, %v3495
        %3497 = vmatmul.f32.gmra.mxu0 %v3334
        %v3498 = vpop.f32.mrf.mxu0
        %v3499 = vadd.f32 %v3371, %v3498
        %3500 = vmatmul.f32.gmra.mxu0 %v3335
        %v3501 = vpop.f32.mrf.mxu0
        %v3502 = vadd.f32 %v3371, %v3501
        %3503 = vdwg.mxu0
        %v3504 = vmul.f32 %v3392, 0.5
        %v3505 = vmul.f32 %v3457, 0.5
        %v3506 = vmul.f32 %v3395, 0.5
        %v3507 = vmul.f32 %v3460, 0.5
        %v3508 = vmul.f32 %v3398, 0.5
        %v3509 = vmul.f32 %v3463, 0.5
        %v3510 = vmul.f32 %v3401, 0.5
        %v3511 = vmul.f32 %v3466, 0.5
        %v3512 = vmul.f32 %v3404, 0.5
        %v3513 = vmul.f32 %v3469, 0.5
        %v3514 = vmul.f32 %v3407, 0.5
        %v3515 = vmul.f32 %v3472, 0.5
        %v3516 = vmul.f32 %v3410, 0.5
        %v3517 = vmul.f32 %v3475, 0.5
        %v3518 = vmul.f32 %v3413, 0.5
        %v3519 = vmul.f32 %v3478, 0.5
        %v3520 = vmul.f32 %v3416, 0.5
        %v3521 = vmul.f32 %v3481, 0.5
        %v3522 = vmul.f32 %v3419, 0.5
        %v3523 = vmul.f32 %v3484, 0.5
        %v3524 = vmul.f32 %v3422, 0.5
        %v3525 = vmul.f32 %v3487, 0.5
        %v3526 = vmul.f32 %v3425, 0.5
        %v3527 = vmul.f32 %v3490, 0.5
        %v3528 = vmul.f32 %v3428, 0.5
        %v3529 = vmul.f32 %v3493, 0.5
        %v3530 = vmul.f32 %v3431, 0.5
        %v3531 = vmul.f32 %v3496, 0.5
        %v3532 = vmul.f32 %v3434, 0.5
        %v3533 = vmul.f32 %v3499, 0.5
        %v3534 = vmul.f32 %v3437, 0.5
        %v3535 = vmul.f32 %v3502, 0.5
        %v3536 = vmul.f32 %v3392, 0.70710677
        %v3537 = vmul.f32 %v3457, 0.70710677
        %v3538 = vmul.f32 %v3395, 0.70710677
        %v3539 = vmul.f32 %v3460, 0.70710677
        %v3540 = vmul.f32 %v3398, 0.70710677
        %v3541 = vmul.f32 %v3463, 0.70710677
        %v3542 = vmul.f32 %v3401, 0.70710677
        %v3543 = vmul.f32 %v3466, 0.70710677
        %v3544 = vmul.f32 %v3404, 0.70710677
        %v3545 = vmul.f32 %v3469, 0.70710677
        %v3546 = vmul.f32 %v3407, 0.70710677
        %v3547 = vmul.f32 %v3472, 0.70710677
        %v3548 = vmul.f32 %v3410, 0.70710677
        %v3549 = vmul.f32 %v3475, 0.70710677
        %v3550 = vmul.f32 %v3413, 0.70710677
        %v3551 = vmul.f32 %v3478, 0.70710677
        %v3552 = vmul.f32 %v3416, 0.70710677
        %v3553 = vmul.f32 %v3481, 0.70710677
        %v3554 = vmul.f32 %v3419, 0.70710677
        %v3555 = vmul.f32 %v3484, 0.70710677
        %v3556 = vmul.f32 %v3422, 0.70710677
        %v3557 = vmul.f32 %v3487, 0.70710677
        %v3558 = vmul.f32 %v3425, 0.70710677
        %v3559 = vmul.f32 %v3490, 0.70710677
        %v3560 = vmul.f32 %v3428, 0.70710677
        %v3561 = vmul.f32 %v3493, 0.70710677
        %v3562 = vmul.f32 %v3431, 0.70710677
        %v3563 = vmul.f32 %v3496, 0.70710677
        %v3564 = vmul.f32 %v3434, 0.70710677
        %v3565 = vmul.f32 %v3499, 0.70710677
        %v3566 = vmul.f32 %v3437, 0.70710677
        %v3567 = vmul.f32 %v3502, 0.70710677
        %vm3568 = vcmp.ge.f32.partialorder %v3536, 0.0
        %vm3569 = vcmp.ge.f32.partialorder %v3537, 0.0
        %vm3570 = vcmp.ge.f32.partialorder %v3538, 0.0
        %vm3571 = vcmp.ge.f32.partialorder %v3539, 0.0
        %vm3572 = vcmp.ge.f32.partialorder %v3540, 0.0
        %vm3573 = vcmp.ge.f32.partialorder %v3541, 0.0
        %vm3574 = vcmp.ge.f32.partialorder %v3542, 0.0
        %vm3575 = vcmp.ge.f32.partialorder %v3543, 0.0
        %vm3576 = vcmp.ge.f32.partialorder %v3544, 0.0
        %vm3577 = vcmp.ge.f32.partialorder %v3545, 0.0
        %vm3578 = vcmp.ge.f32.partialorder %v3546, 0.0
        %vm3579 = vcmp.ge.f32.partialorder %v3547, 0.0
        %vm3580 = vcmp.ge.f32.partialorder %v3548, 0.0
        %vm3581 = vcmp.ge.f32.partialorder %v3549, 0.0
        %vm3582 = vcmp.ge.f32.partialorder %v3550, 0.0
        %vm3583 = vcmp.ge.f32.partialorder %v3551, 0.0
        %vm3584 = vcmp.ge.f32.partialorder %v3552, 0.0
        %vm3585 = vcmp.ge.f32.partialorder %v3553, 0.0
        %vm3586 = vcmp.ge.f32.partialorder %v3554, 0.0
        %vm3587 = vcmp.ge.f32.partialorder %v3555, 0.0
        %vm3588 = vcmp.ge.f32.partialorder %v3556, 0.0
        %vm3589 = vcmp.ge.f32.partialorder %v3557, 0.0
        %vm3590 = vcmp.ge.f32.partialorder %v3558, 0.0
        %vm3591 = vcmp.ge.f32.partialorder %v3559, 0.0
        %vm3592 = vcmp.ge.f32.partialorder %v3560, 0.0
        %vm3593 = vcmp.ge.f32.partialorder %v3561, 0.0
        %vm3594 = vcmp.ge.f32.partialorder %v3562, 0.0
        %vm3595 = vcmp.ge.f32.partialorder %v3563, 0.0
        %vm3596 = vcmp.ge.f32.partialorder %v3564, 0.0
        %vm3597 = vcmp.ge.f32.partialorder %v3565, 0.0
        %vm3598 = vcmp.ge.f32.partialorder %v3566, 0.0
        %vm3599 = vcmp.ge.f32.partialorder %v3567, 0.0
        %v3600 = vsel %vm3568, 1.0, -1.0
        %v3601 = vsel %vm3569, 1.0, -1.0
        %v3602 = vsel %vm3570, 1.0, -1.0
        %v3603 = vsel %vm3571, 1.0, -1.0
        %v3604 = vsel %vm3572, 1.0, -1.0
        %v3605 = vsel %vm3573, 1.0, -1.0
        %v3606 = vsel %vm3574, 1.0, -1.0
        %v3607 = vsel %vm3575, 1.0, -1.0
        %v3608 = vsel %vm3576, 1.0, -1.0
        %v3609 = vsel %vm3577, 1.0, -1.0
        %v3610 = vsel %vm3578, 1.0, -1.0
        %v3611 = vsel %vm3579, 1.0, -1.0
        %v3612 = vsel %vm3580, 1.0, -1.0
        %v3613 = vsel %vm3581, 1.0, -1.0
        %v3614 = vsel %vm3582, 1.0, -1.0
        %v3615 = vsel %vm3583, 1.0, -1.0
        %v3616 = vsel %vm3584, 1.0, -1.0
        %v3617 = vsel %vm3585, 1.0, -1.0
        %v3618 = vsel %vm3586, 1.0, -1.0
        %v3619 = vsel %vm3587, 1.0, -1.0
        %v3620 = vsel %vm3588, 1.0, -1.0
        %v3621 = vsel %vm3589, 1.0, -1.0
        %v3622 = vsel %vm3590, 1.0, -1.0
        %v3623 = vsel %vm3591, 1.0, -1.0
        %v3624 = vsel %vm3592, 1.0, -1.0
        %v3625 = vsel %vm3593, 1.0, -1.0
        %v3626 = vsel %vm3594, 1.0, -1.0
        %v3627 = vsel %vm3595, 1.0, -1.0
        %v3628 = vsel %vm3596, 1.0, -1.0
        %v3629 = vsel %vm3597, 1.0, -1.0
        %v3630 = vsel %vm3598, 1.0, -1.0
        %v3631 = vsel %vm3599, 1.0, -1.0
        %v3632 = vand.u32 2147483647, %v3536
        %v3633 = vand.u32 2147483647, %v3537
        %v3634 = vand.u32 2147483647, %v3538
        %v3635 = vand.u32 2147483647, %v3539
        %v3636 = vand.u32 2147483647, %v3540
        %v3637 = vand.u32 2147483647, %v3541
        %v3638 = vand.u32 2147483647, %v3542
        %v3639 = vand.u32 2147483647, %v3543
        %v3640 = vand.u32 2147483647, %v3544
        %v3641 = vand.u32 2147483647, %v3545
        %v3642 = vand.u32 2147483647, %v3546
        %v3643 = vand.u32 2147483647, %v3547
        %v3644 = vand.u32 2147483647, %v3548
        %v3645 = vand.u32 2147483647, %v3549
        %v3646 = vand.u32 2147483647, %v3550
        %v3647 = vand.u32 2147483647, %v3551
        %v3648 = vand.u32 2147483647, %v3552
        %v3649 = vand.u32 2147483647, %v3553
        %v3650 = vand.u32 2147483647, %v3554
        %v3651 = vand.u32 2147483647, %v3555
        %v3652 = vand.u32 2147483647, %v3556
        %v3653 = vand.u32 2147483647, %v3557
        %v3654 = vand.u32 2147483647, %v3558
        %v3655 = vand.u32 2147483647, %v3559
        %v3656 = vand.u32 2147483647, %v3560
        %v3657 = vand.u32 2147483647, %v3561
        %v3658 = vand.u32 2147483647, %v3562
        %v3659 = vand.u32 2147483647, %v3563
        %v3660 = vand.u32 2147483647, %v3564
        %v3661 = vand.u32 2147483647, %v3565
        %v3662 = vand.u32 2147483647, %v3566
        %v3663 = vand.u32 2147483647, %v3567
        %v3664 = vmul.f32 %v3632, 0.3275911
        %v3665 = vmul.f32 %v3633, 0.3275911
        %v3666 = vmul.f32 %v3634, 0.3275911
        %v3667 = vmul.f32 %v3635, 0.3275911
        %v3668 = vmul.f32 %v3636, 0.3275911
        %v3669 = vmul.f32 %v3637, 0.3275911
        %v3670 = vmul.f32 %v3638, 0.3275911
        %v3671 = vmul.f32 %v3639, 0.3275911
        %v3672 = vmul.f32 %v3640, 0.3275911
        %v3673 = vmul.f32 %v3641, 0.3275911
        %v3674 = vmul.f32 %v3642, 0.3275911
        %v3675 = vmul.f32 %v3643, 0.3275911
        %v3676 = vmul.f32 %v3644, 0.3275911
        %v3677 = vmul.f32 %v3645, 0.3275911
        %v3678 = vmul.f32 %v3646, 0.3275911
        %v3679 = vmul.f32 %v3647, 0.3275911
        %v3680 = vmul.f32 %v3648, 0.3275911
        %v3681 = vmul.f32 %v3649, 0.3275911
        %v3682 = vmul.f32 %v3650, 0.3275911
        %v3683 = vmul.f32 %v3651, 0.3275911
        %v3684 = vmul.f32 %v3652, 0.3275911
        %v3685 = vmul.f32 %v3653, 0.3275911
        %v3686 = vmul.f32 %v3654, 0.3275911
        %v3687 = vmul.f32 %v3655, 0.3275911
        %v3688 = vmul.f32 %v3656, 0.3275911
        %v3689 = vmul.f32 %v3657, 0.3275911
        %v3690 = vmul.f32 %v3658, 0.3275911
        %v3691 = vmul.f32 %v3659, 0.3275911
        %v3692 = vmul.f32 %v3660, 0.3275911
        %v3693 = vmul.f32 %v3661, 0.3275911
        %v3694 = vmul.f32 %v3662, 0.3275911
        %v3695 = vmul.f32 %v3663, 0.3275911
        %v3696 = vadd.f32 %v3664, 1.0
        %v3697 = vadd.f32 %v3665, 1.0
        %v3698 = vadd.f32 %v3666, 1.0
        %v3699 = vadd.f32 %v3667, 1.0
        %v3700 = vadd.f32 %v3668, 1.0
        %v3701 = vadd.f32 %v3669, 1.0
        %v3702 = vadd.f32 %v3670, 1.0
        %v3703 = vadd.f32 %v3671, 1.0
        %v3704 = vadd.f32 %v3672, 1.0
        %v3705 = vadd.f32 %v3673, 1.0
        %v3706 = vadd.f32 %v3674, 1.0
        %v3707 = vadd.f32 %v3675, 1.0
        %v3708 = vadd.f32 %v3676, 1.0
        %v3709 = vadd.f32 %v3677, 1.0
        %v3710 = vadd.f32 %v3678, 1.0
        %v3711 = vadd.f32 %v3679, 1.0
        %v3712 = vadd.f32 %v3680, 1.0
        %v3713 = vadd.f32 %v3681, 1.0
        %v3714 = vadd.f32 %v3682, 1.0
        %v3715 = vadd.f32 %v3683, 1.0
        %v3716 = vadd.f32 %v3684, 1.0
        %v3717 = vadd.f32 %v3685, 1.0
        %v3718 = vadd.f32 %v3686, 1.0
        %v3719 = vadd.f32 %v3687, 1.0
        %v3720 = vadd.f32 %v3688, 1.0
        %v3721 = vadd.f32 %v3689, 1.0
        %v3722 = vadd.f32 %v3690, 1.0
        %v3723 = vadd.f32 %v3691, 1.0
        %v3724 = vadd.f32 %v3692, 1.0
        %v3725 = vadd.f32 %v3693, 1.0
        %v3726 = vadd.f32 %v3694, 1.0
        %v3727 = vadd.f32 %v3695, 1.0
        %v3728 = vrcp.pop %v3696
        %v3729 = vmul.f32 %v3696, %v3728
        %v3730 = vsub.f32 1.0, %v3729
        %v3731 = vmul.f32 %v3728, %v3730
        %v3732 = vadd.f32 %v3728, %v3731
        %vm3733 = vweird.f32 %v3696
        %vm3734 = vweird.f32 %v3728
        %vm3735 = vmor %vm3733, %vm3734
        %v3736 = vsel %vm3735, %v3728, %v3732
        %v3737 = vand.u32 2147483647, %v3696
        %vm3738 = vcmp.eq.f32.partialorder %v3737, 8.507059e+37
        %v3739 = vand.u32 %v3696, 2147483648
        %v3740 = vor.u32 1.1754944e-38, %v3739
        %v3741 = vsel %vm3738, %v3740, %v3736
        %v3742 = vmul.f32 1.0, %v3741
        %v3743 = vrcp.pop %v3697
        %v3744 = vmul.f32 %v3697, %v3743
        %v3745 = vsub.f32 1.0, %v3744
        %v3746 = vmul.f32 %v3743, %v3745
        %v3747 = vadd.f32 %v3743, %v3746
        %vm3748 = vweird.f32 %v3697
        %vm3749 = vweird.f32 %v3743
        %vm3750 = vmor %vm3748, %vm3749
        %v3751 = vsel %vm3750, %v3743, %v3747
        %v3752 = vand.u32 2147483647, %v3697
        %vm3753 = vcmp.eq.f32.partialorder %v3752, 8.507059e+37
        %v3754 = vand.u32 %v3697, 2147483648
        %v3755 = vor.u32 1.1754944e-38, %v3754
        %v3756 = vsel %vm3753, %v3755, %v3751
        %v3757 = vmul.f32 1.0, %v3756
        %v3758 = vrcp.pop %v3698
        %v3759 = vmul.f32 %v3698, %v3758
        %v3760 = vsub.f32 1.0, %v3759
        %v3761 = vmul.f32 %v3758, %v3760
        %v3762 = vadd.f32 %v3758, %v3761
        %vm3763 = vweird.f32 %v3698
        %vm3764 = vweird.f32 %v3758
        %vm3765 = vmor %vm3763, %vm3764
        %v3766 = vsel %vm3765, %v3758, %v3762
        %v3767 = vand.u32 2147483647, %v3698
        %vm3768 = vcmp.eq.f32.partialorder %v3767, 8.507059e+37
        %v3769 = vand.u32 %v3698, 2147483648
        %v3770 = vor.u32 1.1754944e-38, %v3769
        %v3771 = vsel %vm3768, %v3770, %v3766
        %v3772 = vmul.f32 1.0, %v3771
        %v3773 = vrcp.pop %v3699
        %v3774 = vmul.f32 %v3699, %v3773
        %v3775 = vsub.f32 1.0, %v3774
        %v3776 = vmul.f32 %v3773, %v3775
        %v3777 = vadd.f32 %v3773, %v3776
        %vm3778 = vweird.f32 %v3699
        %vm3779 = vweird.f32 %v3773
        %vm3780 = vmor %vm3778, %vm3779
        %v3781 = vsel %vm3780, %v3773, %v3777
        %v3782 = vand.u32 2147483647, %v3699
        %vm3783 = vcmp.eq.f32.partialorder %v3782, 8.507059e+37
        %v3784 = vand.u32 %v3699, 2147483648
        %v3785 = vor.u32 1.1754944e-38, %v3784
        %v3786 = vsel %vm3783, %v3785, %v3781
        %v3787 = vmul.f32 1.0, %v3786
        %v3788 = vrcp.pop %v3700
        %v3789 = vmul.f32 %v3700, %v3788
        %v3790 = vsub.f32 1.0, %v3789
        %v3791 = vmul.f32 %v3788, %v3790
        %v3792 = vadd.f32 %v3788, %v3791
        %vm3793 = vweird.f32 %v3700
        %vm3794 = vweird.f32 %v3788
        %vm3795 = vmor %vm3793, %vm3794
        %v3796 = vsel %vm3795, %v3788, %v3792
        %v3797 = vand.u32 2147483647, %v3700
        %vm3798 = vcmp.eq.f32.partialorder %v3797, 8.507059e+37
        %v3799 = vand.u32 %v3700, 2147483648
        %v3800 = vor.u32 1.1754944e-38, %v3799
        %v3801 = vsel %vm3798, %v3800, %v3796
        %v3802 = vmul.f32 1.0, %v3801
        %v3803 = vrcp.pop %v3701
        %v3804 = vmul.f32 %v3701, %v3803
        %v3805 = vsub.f32 1.0, %v3804
        %v3806 = vmul.f32 %v3803, %v3805
        %v3807 = vadd.f32 %v3803, %v3806
        %vm3808 = vweird.f32 %v3701
        %vm3809 = vweird.f32 %v3803
        %vm3810 = vmor %vm3808, %vm3809
        %v3811 = vsel %vm3810, %v3803, %v3807
        %v3812 = vand.u32 2147483647, %v3701
        %vm3813 = vcmp.eq.f32.partialorder %v3812, 8.507059e+37
        %v3814 = vand.u32 %v3701, 2147483648
        %v3815 = vor.u32 1.1754944e-38, %v3814
        %v3816 = vsel %vm3813, %v3815, %v3811
        %v3817 = vmul.f32 1.0, %v3816
        %v3818 = vrcp.pop %v3702
        %v3819 = vmul.f32 %v3702, %v3818
        %v3820 = vsub.f32 1.0, %v3819
        %v3821 = vmul.f32 %v3818, %v3820
        %v3822 = vadd.f32 %v3818, %v3821
        %vm3823 = vweird.f32 %v3702
        %vm3824 = vweird.f32 %v3818
        %vm3825 = vmor %vm3823, %vm3824
        %v3826 = vsel %vm3825, %v3818, %v3822
        %v3827 = vand.u32 2147483647, %v3702
        %vm3828 = vcmp.eq.f32.partialorder %v3827, 8.507059e+37
        %v3829 = vand.u32 %v3702, 2147483648
        %v3830 = vor.u32 1.1754944e-38, %v3829
        %v3831 = vsel %vm3828, %v3830, %v3826
        %v3832 = vmul.f32 1.0, %v3831
        %v3833 = vrcp.pop %v3703
        %v3834 = vmul.f32 %v3703, %v3833
        %v3835 = vsub.f32 1.0, %v3834
        %v3836 = vmul.f32 %v3833, %v3835
        %v3837 = vadd.f32 %v3833, %v3836
        %vm3838 = vweird.f32 %v3703
        %vm3839 = vweird.f32 %v3833
        %vm3840 = vmor %vm3838, %vm3839
        %v3841 = vsel %vm3840, %v3833, %v3837
        %v3842 = vand.u32 2147483647, %v3703
        %vm3843 = vcmp.eq.f32.partialorder %v3842, 8.507059e+37
        %v3844 = vand.u32 %v3703, 2147483648
        %v3845 = vor.u32 1.1754944e-38, %v3844
        %v3846 = vsel %vm3843, %v3845, %v3841
        %v3847 = vmul.f32 1.0, %v3846
        %v3848 = vrcp.pop %v3704
        %v3849 = vmul.f32 %v3704, %v3848
        %v3850 = vsub.f32 1.0, %v3849
        %v3851 = vmul.f32 %v3848, %v3850
        %v3852 = vadd.f32 %v3848, %v3851
        %vm3853 = vweird.f32 %v3704
        %vm3854 = vweird.f32 %v3848
        %vm3855 = vmor %vm3853, %vm3854
        %v3856 = vsel %vm3855, %v3848, %v3852
        %v3857 = vand.u32 2147483647, %v3704
        %vm3858 = vcmp.eq.f32.partialorder %v3857, 8.507059e+37
        %v3859 = vand.u32 %v3704, 2147483648
        %v3860 = vor.u32 1.1754944e-38, %v3859
        %v3861 = vsel %vm3858, %v3860, %v3856
        %v3862 = vmul.f32 1.0, %v3861
        %v3863 = vrcp.pop %v3705
        %v3864 = vmul.f32 %v3705, %v3863
        %v3865 = vsub.f32 1.0, %v3864
        %v3866 = vmul.f32 %v3863, %v3865
        %v3867 = vadd.f32 %v3863, %v3866
        %vm3868 = vweird.f32 %v3705
        %vm3869 = vweird.f32 %v3863
        %vm3870 = vmor %vm3868, %vm3869
        %v3871 = vsel %vm3870, %v3863, %v3867
        %v3872 = vand.u32 2147483647, %v3705
        %vm3873 = vcmp.eq.f32.partialorder %v3872, 8.507059e+37
        %v3874 = vand.u32 %v3705, 2147483648
        %v3875 = vor.u32 1.1754944e-38, %v3874
        %v3876 = vsel %vm3873, %v3875, %v3871
        %v3877 = vmul.f32 1.0, %v3876
        %v3878 = vrcp.pop %v3706
        %v3879 = vmul.f32 %v3706, %v3878
        %v3880 = vsub.f32 1.0, %v3879
        %v3881 = vmul.f32 %v3878, %v3880
        %v3882 = vadd.f32 %v3878, %v3881
        %vm3883 = vweird.f32 %v3706
        %vm3884 = vweird.f32 %v3878
        %vm3885 = vmor %vm3883, %vm3884
        %v3886 = vsel %vm3885, %v3878, %v3882
        %v3887 = vand.u32 2147483647, %v3706
        %vm3888 = vcmp.eq.f32.partialorder %v3887, 8.507059e+37
        %v3889 = vand.u32 %v3706, 2147483648
        %v3890 = vor.u32 1.1754944e-38, %v3889
        %v3891 = vsel %vm3888, %v3890, %v3886
        %v3892 = vmul.f32 1.0, %v3891
        %v3893 = vrcp.pop %v3707
        %v3894 = vmul.f32 %v3707, %v3893
        %v3895 = vsub.f32 1.0, %v3894
        %v3896 = vmul.f32 %v3893, %v3895
        %v3897 = vadd.f32 %v3893, %v3896
        %vm3898 = vweird.f32 %v3707
        %vm3899 = vweird.f32 %v3893
        %vm3900 = vmor %vm3898, %vm3899
        %v3901 = vsel %vm3900, %v3893, %v3897
        %v3902 = vand.u32 2147483647, %v3707
        %vm3903 = vcmp.eq.f32.partialorder %v3902, 8.507059e+37
        %v3904 = vand.u32 %v3707, 2147483648
        %v3905 = vor.u32 1.1754944e-38, %v3904
        %v3906 = vsel %vm3903, %v3905, %v3901
        %v3907 = vmul.f32 1.0, %v3906
        %v3908 = vrcp.pop %v3708
        %v3909 = vmul.f32 %v3708, %v3908
        %v3910 = vsub.f32 1.0, %v3909
        %v3911 = vmul.f32 %v3908, %v3910
        %v3912 = vadd.f32 %v3908, %v3911
        %vm3913 = vweird.f32 %v3708
        %vm3914 = vweird.f32 %v3908
        %vm3915 = vmor %vm3913, %vm3914
        %v3916 = vsel %vm3915, %v3908, %v3912
        %v3917 = vand.u32 2147483647, %v3708
        %vm3918 = vcmp.eq.f32.partialorder %v3917, 8.507059e+37
        %v3919 = vand.u32 %v3708, 2147483648
        %v3920 = vor.u32 1.1754944e-38, %v3919
        %v3921 = vsel %vm3918, %v3920, %v3916
        %v3922 = vmul.f32 1.0, %v3921
        %v3923 = vrcp.pop %v3709
        %v3924 = vmul.f32 %v3709, %v3923
        %v3925 = vsub.f32 1.0, %v3924
        %v3926 = vmul.f32 %v3923, %v3925
        %v3927 = vadd.f32 %v3923, %v3926
        %vm3928 = vweird.f32 %v3709
        %vm3929 = vweird.f32 %v3923
        %vm3930 = vmor %vm3928, %vm3929
        %v3931 = vsel %vm3930, %v3923, %v3927
        %v3932 = vand.u32 2147483647, %v3709
        %vm3933 = vcmp.eq.f32.partialorder %v3932, 8.507059e+37
        %v3934 = vand.u32 %v3709, 2147483648
        %v3935 = vor.u32 1.1754944e-38, %v3934
        %v3936 = vsel %vm3933, %v3935, %v3931
        %v3937 = vmul.f32 1.0, %v3936
        %v3938 = vrcp.pop %v3710
        %v3939 = vmul.f32 %v3710, %v3938
        %v3940 = vsub.f32 1.0, %v3939
        %v3941 = vmul.f32 %v3938, %v3940
        %v3942 = vadd.f32 %v3938, %v3941
        %vm3943 = vweird.f32 %v3710
        %vm3944 = vweird.f32 %v3938
        %vm3945 = vmor %vm3943, %vm3944
        %v3946 = vsel %vm3945, %v3938, %v3942
        %v3947 = vand.u32 2147483647, %v3710
        %vm3948 = vcmp.eq.f32.partialorder %v3947, 8.507059e+37
        %v3949 = vand.u32 %v3710, 2147483648
        %v3950 = vor.u32 1.1754944e-38, %v3949
        %v3951 = vsel %vm3948, %v3950, %v3946
        %v3952 = vmul.f32 1.0, %v3951
        %v3953 = vrcp.pop %v3711
        %v3954 = vmul.f32 %v3711, %v3953
        %v3955 = vsub.f32 1.0, %v3954
        %v3956 = vmul.f32 %v3953, %v3955
        %v3957 = vadd.f32 %v3953, %v3956
        %vm3958 = vweird.f32 %v3711
        %vm3959 = vweird.f32 %v3953
        %vm3960 = vmor %vm3958, %vm3959
        %v3961 = vsel %vm3960, %v3953, %v3957
        %v3962 = vand.u32 2147483647, %v3711
        %vm3963 = vcmp.eq.f32.partialorder %v3962, 8.507059e+37
        %v3964 = vand.u32 %v3711, 2147483648
        %v3965 = vor.u32 1.1754944e-38, %v3964
        %v3966 = vsel %vm3963, %v3965, %v3961
        %v3967 = vmul.f32 1.0, %v3966
        %v3968 = vrcp.pop %v3712
        %v3969 = vmul.f32 %v3712, %v3968
        %v3970 = vsub.f32 1.0, %v3969
        %v3971 = vmul.f32 %v3968, %v3970
        %v3972 = vadd.f32 %v3968, %v3971
        %vm3973 = vweird.f32 %v3712
        %vm3974 = vweird.f32 %v3968
        %vm3975 = vmor %vm3973, %vm3974
        %v3976 = vsel %vm3975, %v3968, %v3972
        %v3977 = vand.u32 2147483647, %v3712
        %vm3978 = vcmp.eq.f32.partialorder %v3977, 8.507059e+37
        %v3979 = vand.u32 %v3712, 2147483648
        %v3980 = vor.u32 1.1754944e-38, %v3979
        %v3981 = vsel %vm3978, %v3980, %v3976
        %v3982 = vmul.f32 1.0, %v3981
        %v3983 = vrcp.pop %v3713
        %v3984 = vmul.f32 %v3713, %v3983
        %v3985 = vsub.f32 1.0, %v3984
        %v3986 = vmul.f32 %v3983, %v3985
        %v3987 = vadd.f32 %v3983, %v3986
        %vm3988 = vweird.f32 %v3713
        %vm3989 = vweird.f32 %v3983
        %vm3990 = vmor %vm3988, %vm3989
        %v3991 = vsel %vm3990, %v3983, %v3987
        %v3992 = vand.u32 2147483647, %v3713
        %vm3993 = vcmp.eq.f32.partialorder %v3992, 8.507059e+37
        %v3994 = vand.u32 %v3713, 2147483648
        %v3995 = vor.u32 1.1754944e-38, %v3994
        %v3996 = vsel %vm3993, %v3995, %v3991
        %v3997 = vmul.f32 1.0, %v3996
        %v3998 = vrcp.pop %v3714
        %v3999 = vmul.f32 %v3714, %v3998
        %v4000 = vsub.f32 1.0, %v3999
        %v4001 = vmul.f32 %v3998, %v4000
        %v4002 = vadd.f32 %v3998, %v4001
        %vm4003 = vweird.f32 %v3714
        %vm4004 = vweird.f32 %v3998
        %vm4005 = vmor %vm4003, %vm4004
        %v4006 = vsel %vm4005, %v3998, %v4002
        %v4007 = vand.u32 2147483647, %v3714
        %vm4008 = vcmp.eq.f32.partialorder %v4007, 8.507059e+37
        %v4009 = vand.u32 %v3714, 2147483648
        %v4010 = vor.u32 1.1754944e-38, %v4009
        %v4011 = vsel %vm4008, %v4010, %v4006
        %v4012 = vmul.f32 1.0, %v4011
        %v4013 = vrcp.pop %v3715
        %v4014 = vmul.f32 %v3715, %v4013
        %v4015 = vsub.f32 1.0, %v4014
        %v4016 = vmul.f32 %v4013, %v4015
        %v4017 = vadd.f32 %v4013, %v4016
        %vm4018 = vweird.f32 %v3715
        %vm4019 = vweird.f32 %v4013
        %vm4020 = vmor %vm4018, %vm4019
        %v4021 = vsel %vm4020, %v4013, %v4017
        %v4022 = vand.u32 2147483647, %v3715
        %vm4023 = vcmp.eq.f32.partialorder %v4022, 8.507059e+37
        %v4024 = vand.u32 %v3715, 2147483648
        %v4025 = vor.u32 1.1754944e-38, %v4024
        %v4026 = vsel %vm4023, %v4025, %v4021
        %v4027 = vmul.f32 1.0, %v4026
        %v4028 = vrcp.pop %v3716
        %v4029 = vmul.f32 %v3716, %v4028
        %v4030 = vsub.f32 1.0, %v4029
        %v4031 = vmul.f32 %v4028, %v4030
        %v4032 = vadd.f32 %v4028, %v4031
        %vm4033 = vweird.f32 %v3716
        %vm4034 = vweird.f32 %v4028
        %vm4035 = vmor %vm4033, %vm4034
        %v4036 = vsel %vm4035, %v4028, %v4032
        %v4037 = vand.u32 2147483647, %v3716
        %vm4038 = vcmp.eq.f32.partialorder %v4037, 8.507059e+37
        %v4039 = vand.u32 %v3716, 2147483648
        %v4040 = vor.u32 1.1754944e-38, %v4039
        %v4041 = vsel %vm4038, %v4040, %v4036
        %v4042 = vmul.f32 1.0, %v4041
        %v4043 = vrcp.pop %v3717
        %v4044 = vmul.f32 %v3717, %v4043
        %v4045 = vsub.f32 1.0, %v4044
        %v4046 = vmul.f32 %v4043, %v4045
        %v4047 = vadd.f32 %v4043, %v4046
        %vm4048 = vweird.f32 %v3717
        %vm4049 = vweird.f32 %v4043
        %vm4050 = vmor %vm4048, %vm4049
        %v4051 = vsel %vm4050, %v4043, %v4047
        %v4052 = vand.u32 2147483647, %v3717
        %vm4053 = vcmp.eq.f32.partialorder %v4052, 8.507059e+37
        %v4054 = vand.u32 %v3717, 2147483648
        %v4055 = vor.u32 1.1754944e-38, %v4054
        %v4056 = vsel %vm4053, %v4055, %v4051
        %v4057 = vmul.f32 1.0, %v4056
        %v4058 = vrcp.pop %v3718
        %v4059 = vmul.f32 %v3718, %v4058
        %v4060 = vsub.f32 1.0, %v4059
        %v4061 = vmul.f32 %v4058, %v4060
        %v4062 = vadd.f32 %v4058, %v4061
        %vm4063 = vweird.f32 %v3718
        %vm4064 = vweird.f32 %v4058
        %vm4065 = vmor %vm4063, %vm4064
        %v4066 = vsel %vm4065, %v4058, %v4062
        %v4067 = vand.u32 2147483647, %v3718
        %vm4068 = vcmp.eq.f32.partialorder %v4067, 8.507059e+37
        %v4069 = vand.u32 %v3718, 2147483648
        %v4070 = vor.u32 1.1754944e-38, %v4069
        %v4071 = vsel %vm4068, %v4070, %v4066
        %v4072 = vmul.f32 1.0, %v4071
        %v4073 = vrcp.pop %v3719
        %v4074 = vmul.f32 %v3719, %v4073
        %v4075 = vsub.f32 1.0, %v4074
        %v4076 = vmul.f32 %v4073, %v4075
        %v4077 = vadd.f32 %v4073, %v4076
        %vm4078 = vweird.f32 %v3719
        %vm4079 = vweird.f32 %v4073
        %vm4080 = vmor %vm4078, %vm4079
        %v4081 = vsel %vm4080, %v4073, %v4077
        %v4082 = vand.u32 2147483647, %v3719
        %vm4083 = vcmp.eq.f32.partialorder %v4082, 8.507059e+37
        %v4084 = vand.u32 %v3719, 2147483648
        %v4085 = vor.u32 1.1754944e-38, %v4084
        %v4086 = vsel %vm4083, %v4085, %v4081
        %v4087 = vmul.f32 1.0, %v4086
        %v4088 = vrcp.pop %v3720
        %v4089 = vmul.f32 %v3720, %v4088
        %v4090 = vsub.f32 1.0, %v4089
        %v4091 = vmul.f32 %v4088, %v4090
        %v4092 = vadd.f32 %v4088, %v4091
        %vm4093 = vweird.f32 %v3720
        %vm4094 = vweird.f32 %v4088
        %vm4095 = vmor %vm4093, %vm4094
        %v4096 = vsel %vm4095, %v4088, %v4092
        %v4097 = vand.u32 2147483647, %v3720
        %vm4098 = vcmp.eq.f32.partialorder %v4097, 8.507059e+37
        %v4099 = vand.u32 %v3720, 2147483648
        %v4100 = vor.u32 1.1754944e-38, %v4099
        %v4101 = vsel %vm4098, %v4100, %v4096
        %v4102 = vmul.f32 1.0, %v4101
        %v4103 = vrcp.pop %v3721
        %v4104 = vmul.f32 %v3721, %v4103
        %v4105 = vsub.f32 1.0, %v4104
        %v4106 = vmul.f32 %v4103, %v4105
        %v4107 = vadd.f32 %v4103, %v4106
        %vm4108 = vweird.f32 %v3721
        %vm4109 = vweird.f32 %v4103
        %vm4110 = vmor %vm4108, %vm4109
        %v4111 = vsel %vm4110, %v4103, %v4107
        %v4112 = vand.u32 2147483647, %v3721
        %vm4113 = vcmp.eq.f32.partialorder %v4112, 8.507059e+37
        %v4114 = vand.u32 %v3721, 2147483648
        %v4115 = vor.u32 1.1754944e-38, %v4114
        %v4116 = vsel %vm4113, %v4115, %v4111
        %v4117 = vmul.f32 1.0, %v4116
        %v4118 = vrcp.pop %v3722
        %v4119 = vmul.f32 %v3722, %v4118
        %v4120 = vsub.f32 1.0, %v4119
        %v4121 = vmul.f32 %v4118, %v4120
        %v4122 = vadd.f32 %v4118, %v4121
        %vm4123 = vweird.f32 %v3722
        %vm4124 = vweird.f32 %v4118
        %vm4125 = vmor %vm4123, %vm4124
        %v4126 = vsel %vm4125, %v4118, %v4122
        %v4127 = vand.u32 2147483647, %v3722
        %vm4128 = vcmp.eq.f32.partialorder %v4127, 8.507059e+37
        %v4129 = vand.u32 %v3722, 2147483648
        %v4130 = vor.u32 1.1754944e-38, %v4129
        %v4131 = vsel %vm4128, %v4130, %v4126
        %v4132 = vmul.f32 1.0, %v4131
        %v4133 = vrcp.pop %v3723
        %v4134 = vmul.f32 %v3723, %v4133
        %v4135 = vsub.f32 1.0, %v4134
        %v4136 = vmul.f32 %v4133, %v4135
        %v4137 = vadd.f32 %v4133, %v4136
        %vm4138 = vweird.f32 %v3723
        %vm4139 = vweird.f32 %v4133
        %vm4140 = vmor %vm4138, %vm4139
        %v4141 = vsel %vm4140, %v4133, %v4137
        %v4142 = vand.u32 2147483647, %v3723
        %vm4143 = vcmp.eq.f32.partialorder %v4142, 8.507059e+37
        %v4144 = vand.u32 %v3723, 2147483648
        %v4145 = vor.u32 1.1754944e-38, %v4144
        %v4146 = vsel %vm4143, %v4145, %v4141
        %v4147 = vmul.f32 1.0, %v4146
        %v4148 = vrcp.pop %v3724
        %v4149 = vmul.f32 %v3724, %v4148
        %v4150 = vsub.f32 1.0, %v4149
        %v4151 = vmul.f32 %v4148, %v4150
        %v4152 = vadd.f32 %v4148, %v4151
        %vm4153 = vweird.f32 %v3724
        %vm4154 = vweird.f32 %v4148
        %vm4155 = vmor %vm4153, %vm4154
        %v4156 = vsel %vm4155, %v4148, %v4152
        %v4157 = vand.u32 2147483647, %v3724
        %vm4158 = vcmp.eq.f32.partialorder %v4157, 8.507059e+37
        %v4159 = vand.u32 %v3724, 2147483648
        %v4160 = vor.u32 1.1754944e-38, %v4159
        %v4161 = vsel %vm4158, %v4160, %v4156
        %v4162 = vmul.f32 1.0, %v4161
        %v4163 = vrcp.pop %v3725
        %v4164 = vmul.f32 %v3725, %v4163
        %v4165 = vsub.f32 1.0, %v4164
        %v4166 = vmul.f32 %v4163, %v4165
        %v4167 = vadd.f32 %v4163, %v4166
        %vm4168 = vweird.f32 %v3725
        %vm4169 = vweird.f32 %v4163
        %vm4170 = vmor %vm4168, %vm4169
        %v4171 = vsel %vm4170, %v4163, %v4167
        %v4172 = vand.u32 2147483647, %v3725
        %vm4173 = vcmp.eq.f32.partialorder %v4172, 8.507059e+37
        %v4174 = vand.u32 %v3725, 2147483648
        %v4175 = vor.u32 1.1754944e-38, %v4174
        %v4176 = vsel %vm4173, %v4175, %v4171
        %v4177 = vmul.f32 1.0, %v4176
        %v4178 = vrcp.pop %v3726
        %v4179 = vmul.f32 %v3726, %v4178
        %v4180 = vsub.f32 1.0, %v4179
        %v4181 = vmul.f32 %v4178, %v4180
        %v4182 = vadd.f32 %v4178, %v4181
        %vm4183 = vweird.f32 %v3726
        %vm4184 = vweird.f32 %v4178
        %vm4185 = vmor %vm4183, %vm4184
        %v4186 = vsel %vm4185, %v4178, %v4182
        %v4187 = vand.u32 2147483647, %v3726
        %vm4188 = vcmp.eq.f32.partialorder %v4187, 8.507059e+37
        %v4189 = vand.u32 %v3726, 2147483648
        %v4190 = vor.u32 1.1754944e-38, %v4189
        %v4191 = vsel %vm4188, %v4190, %v4186
        %v4192 = vmul.f32 1.0, %v4191
        %v4193 = vrcp.pop %v3727
        %v4194 = vmul.f32 %v3727, %v4193
        %v4195 = vsub.f32 1.0, %v4194
        %v4196 = vmul.f32 %v4193, %v4195
        %v4197 = vadd.f32 %v4193, %v4196
        %vm4198 = vweird.f32 %v3727
        %vm4199 = vweird.f32 %v4193
        %vm4200 = vmor %vm4198, %vm4199
        %v4201 = vsel %vm4200, %v4193, %v4197
        %v4202 = vand.u32 2147483647, %v3727
        %vm4203 = vcmp.eq.f32.partialorder %v4202, 8.507059e+37
        %v4204 = vand.u32 %v3727, 2147483648
        %v4205 = vor.u32 1.1754944e-38, %v4204
        %v4206 = vsel %vm4203, %v4205, %v4201
        %v4207 = vmul.f32 1.0, %v4206
        %v4208 = vmul.f32 %v3742, 1.0614054
        %v4209 = vmul.f32 %v3757, 1.0614054
        %v4210 = vmul.f32 %v3772, 1.0614054
        %v4211 = vmul.f32 %v3787, 1.0614054
        %v4212 = vmul.f32 %v3802, 1.0614054
        %v4213 = vmul.f32 %v3817, 1.0614054
        %v4214 = vmul.f32 %v3832, 1.0614054
        %v4215 = vmul.f32 %v3847, 1.0614054
        %v4216 = vmul.f32 %v3862, 1.0614054
        %v4217 = vmul.f32 %v3877, 1.0614054
        %v4218 = vmul.f32 %v3892, 1.0614054
        %v4219 = vmul.f32 %v3907, 1.0614054
        %v4220 = vmul.f32 %v3922, 1.0614054
        %v4221 = vmul.f32 %v3937, 1.0614054
        %v4222 = vmul.f32 %v3952, 1.0614054
        %v4223 = vmul.f32 %v3967, 1.0614054
        %v4224 = vmul.f32 %v3982, 1.0614054
        %v4225 = vmul.f32 %v3997, 1.0614054
        %v4226 = vmul.f32 %v4012, 1.0614054
        %v4227 = vmul.f32 %v4027, 1.0614054
        %v4228 = vmul.f32 %v4042, 1.0614054
        %v4229 = vmul.f32 %v4057, 1.0614054
        %v4230 = vmul.f32 %v4072, 1.0614054
        %v4231 = vmul.f32 %v4087, 1.0614054
        %v4232 = vmul.f32 %v4102, 1.0614054
        %v4233 = vmul.f32 %v4117, 1.0614054
        %v4234 = vmul.f32 %v4132, 1.0614054
        %v4235 = vmul.f32 %v4147, 1.0614054
        %v4236 = vmul.f32 %v4162, 1.0614054
        %v4237 = vmul.f32 %v4177, 1.0614054
        %v4238 = vmul.f32 %v4192, 1.0614054
        %v4239 = vmul.f32 %v4207, 1.0614054
        %v4240 = vadd.f32 %v4208, -1.4531521
        %v4241 = vadd.f32 %v4209, -1.4531521
        %v4242 = vadd.f32 %v4210, -1.4531521
        %v4243 = vadd.f32 %v4211, -1.4531521
        %v4244 = vadd.f32 %v4212, -1.4531521
        %v4245 = vadd.f32 %v4213, -1.4531521
        %v4246 = vadd.f32 %v4214, -1.4531521
        %v4247 = vadd.f32 %v4215, -1.4531521
        %v4248 = vadd.f32 %v4216, -1.4531521
        %v4249 = vadd.f32 %v4217, -1.4531521
        %v4250 = vadd.f32 %v4218, -1.4531521
        %v4251 = vadd.f32 %v4219, -1.4531521
        %v4252 = vadd.f32 %v4220, -1.4531521
        %v4253 = vadd.f32 %v4221, -1.4531521
        %v4254 = vadd.f32 %v4222, -1.4531521
        %v4255 = vadd.f32 %v4223, -1.4531521
        %v4256 = vadd.f32 %v4224, -1.4531521
        %v4257 = vadd.f32 %v4225, -1.4531521
        %v4258 = vadd.f32 %v4226, -1.4531521
        %v4259 = vadd.f32 %v4227, -1.4531521
        %v4260 = vadd.f32 %v4228, -1.4531521
        %v4261 = vadd.f32 %v4229, -1.4531521
        %v4262 = vadd.f32 %v4230, -1.4531521
        %v4263 = vadd.f32 %v4231, -1.4531521
        %v4264 = vadd.f32 %v4232, -1.4531521
        %v4265 = vadd.f32 %v4233, -1.4531521
        %v4266 = vadd.f32 %v4234, -1.4531521
        %v4267 = vadd.f32 %v4235, -1.4531521
        %v4268 = vadd.f32 %v4236, -1.4531521
        %v4269 = vadd.f32 %v4237, -1.4531521
        %v4270 = vadd.f32 %v4238, -1.4531521
        %v4271 = vadd.f32 %v4239, -1.4531521
        %v4272 = vmul.f32 %v4240, %v3742
        %v4273 = vmul.f32 %v4241, %v3757
        %v4274 = vmul.f32 %v4242, %v3772
        %v4275 = vmul.f32 %v4243, %v3787
        %v4276 = vmul.f32 %v4244, %v3802
        %v4277 = vmul.f32 %v4245, %v3817
        %v4278 = vmul.f32 %v4246, %v3832
        %v4279 = vmul.f32 %v4247, %v3847
        %v4280 = vmul.f32 %v4248, %v3862
        %v4281 = vmul.f32 %v4249, %v3877
        %v4282 = vmul.f32 %v4250, %v3892
        %v4283 = vmul.f32 %v4251, %v3907
        %v4284 = vmul.f32 %v4252, %v3922
        %v4285 = vmul.f32 %v4253, %v3937
        %v4286 = vmul.f32 %v4254, %v3952
        %v4287 = vmul.f32 %v4255, %v3967
        %v4288 = vmul.f32 %v4256, %v3982
        %v4289 = vmul.f32 %v4257, %v3997
        %v4290 = vmul.f32 %v4258, %v4012
        %v4291 = vmul.f32 %v4259, %v4027
        %v4292 = vmul.f32 %v4260, %v4042
        %v4293 = vmul.f32 %v4261, %v4057
        %v4294 = vmul.f32 %v4262, %v4072
        %v4295 = vmul.f32 %v4263, %v4087
        %v4296 = vmul.f32 %v4264, %v4102
        %v4297 = vmul.f32 %v4265, %v4117
        %v4298 = vmul.f32 %v4266, %v4132
        %v4299 = vmul.f32 %v4267, %v4147
        %v4300 = vmul.f32 %v4268, %v4162
        %v4301 = vmul.f32 %v4269, %v4177
        %v4302 = vmul.f32 %v4270, %v4192
        %v4303 = vmul.f32 %v4271, %v4207
        %v4304 = vadd.f32 %v4272, 1.4214138
        %v4305 = vadd.f32 %v4273, 1.4214138
        %v4306 = vadd.f32 %v4274, 1.4214138
        %v4307 = vadd.f32 %v4275, 1.4214138
        %v4308 = vadd.f32 %v4276, 1.4214138
        %v4309 = vadd.f32 %v4277, 1.4214138
        %v4310 = vadd.f32 %v4278, 1.4214138
        %v4311 = vadd.f32 %v4279, 1.4214138
        %v4312 = vadd.f32 %v4280, 1.4214138
        %v4313 = vadd.f32 %v4281, 1.4214138
        %v4314 = vadd.f32 %v4282, 1.4214138
        %v4315 = vadd.f32 %v4283, 1.4214138
        %v4316 = vadd.f32 %v4284, 1.4214138
        %v4317 = vadd.f32 %v4285, 1.4214138
        %v4318 = vadd.f32 %v4286, 1.4214138
        %v4319 = vadd.f32 %v4287, 1.4214138
        %v4320 = vadd.f32 %v4288, 1.4214138
        %v4321 = vadd.f32 %v4289, 1.4214138
        %v4322 = vadd.f32 %v4290, 1.4214138
        %v4323 = vadd.f32 %v4291, 1.4214138
        %v4324 = vadd.f32 %v4292, 1.4214138
        %v4325 = vadd.f32 %v4293, 1.4214138
        %v4326 = vadd.f32 %v4294, 1.4214138
        %v4327 = vadd.f32 %v4295, 1.4214138
        %v4328 = vadd.f32 %v4296, 1.4214138
        %v4329 = vadd.f32 %v4297, 1.4214138
        %v4330 = vadd.f32 %v4298, 1.4214138
        %v4331 = vadd.f32 %v4299, 1.4214138
        %v4332 = vadd.f32 %v4300, 1.4214138
        %v4333 = vadd.f32 %v4301, 1.4214138
        %v4334 = vadd.f32 %v4302, 1.4214138
        %v4335 = vadd.f32 %v4303, 1.4214138
        %v4336 = vmul.f32 %v4304, %v3742
        %v4337 = vmul.f32 %v4305, %v3757
        %v4338 = vmul.f32 %v4306, %v3772
        %v4339 = vmul.f32 %v4307, %v3787
        %v4340 = vmul.f32 %v4308, %v3802
        %v4341 = vmul.f32 %v4309, %v3817
        %v4342 = vmul.f32 %v4310, %v3832
        %v4343 = vmul.f32 %v4311, %v3847
        %v4344 = vmul.f32 %v4312, %v3862
        %v4345 = vmul.f32 %v4313, %v3877
        %v4346 = vmul.f32 %v4314, %v3892
        %v4347 = vmul.f32 %v4315, %v3907
        %v4348 = vmul.f32 %v4316, %v3922
        %v4349 = vmul.f32 %v4317, %v3937
        %v4350 = vmul.f32 %v4318, %v3952
        %v4351 = vmul.f32 %v4319, %v3967
        %v4352 = vmul.f32 %v4320, %v3982
        %v4353 = vmul.f32 %v4321, %v3997
        %v4354 = vmul.f32 %v4322, %v4012
        %v4355 = vmul.f32 %v4323, %v4027
        %v4356 = vmul.f32 %v4324, %v4042
        %v4357 = vmul.f32 %v4325, %v4057
        %v4358 = vmul.f32 %v4326, %v4072
        %v4359 = vmul.f32 %v4327, %v4087
        %v4360 = vmul.f32 %v4328, %v4102
        %v4361 = vmul.f32 %v4329, %v4117
        %v4362 = vmul.f32 %v4330, %v4132
        %v4363 = vmul.f32 %v4331, %v4147
        %v4364 = vmul.f32 %v4332, %v4162
        %v4365 = vmul.f32 %v4333, %v4177
        %v4366 = vmul.f32 %v4334, %v4192
        %v4367 = vmul.f32 %v4335, %v4207
        %v4368 = vadd.f32 %v4336, -0.28449672
        %v4369 = vadd.f32 %v4337, -0.28449672
        %v4370 = vadd.f32 %v4338, -0.28449672
        %v4371 = vadd.f32 %v4339, -0.28449672
        %v4372 = vadd.f32 %v4340, -0.28449672
        %v4373 = vadd.f32 %v4341, -0.28449672
        %v4374 = vadd.f32 %v4342, -0.28449672
        %v4375 = vadd.f32 %v4343, -0.28449672
        %v4376 = vadd.f32 %v4344, -0.28449672
        %v4377 = vadd.f32 %v4345, -0.28449672
        %v4378 = vadd.f32 %v4346, -0.28449672
        %v4379 = vadd.f32 %v4347, -0.28449672
        %v4380 = vadd.f32 %v4348, -0.28449672
        %v4381 = vadd.f32 %v4349, -0.28449672
        %v4382 = vadd.f32 %v4350, -0.28449672
        %v4383 = vadd.f32 %v4351, -0.28449672
        %v4384 = vadd.f32 %v4352, -0.28449672
        %v4385 = vadd.f32 %v4353, -0.28449672
        %v4386 = vadd.f32 %v4354, -0.28449672
        %v4387 = vadd.f32 %v4355, -0.28449672
        %v4388 = vadd.f32 %v4356, -0.28449672
        %v4389 = vadd.f32 %v4357, -0.28449672
        %v4390 = vadd.f32 %v4358, -0.28449672
        %v4391 = vadd.f32 %v4359, -0.28449672
        %v4392 = vadd.f32 %v4360, -0.28449672
        %v4393 = vadd.f32 %v4361, -0.28449672
        %v4394 = vadd.f32 %v4362, -0.28449672
        %v4395 = vadd.f32 %v4363, -0.28449672
        %v4396 = vadd.f32 %v4364, -0.28449672
        %v4397 = vadd.f32 %v4365, -0.28449672
        %v4398 = vadd.f32 %v4366, -0.28449672
        %v4399 = vadd.f32 %v4367, -0.28449672
        %v4400 = vmul.f32 %v4368, %v3742
        %v4401 = vmul.f32 %v4369, %v3757
        %v4402 = vmul.f32 %v4370, %v3772
        %v4403 = vmul.f32 %v4371, %v3787
        %v4404 = vmul.f32 %v4372, %v3802
        %v4405 = vmul.f32 %v4373, %v3817
        %v4406 = vmul.f32 %v4374, %v3832
        %v4407 = vmul.f32 %v4375, %v3847
        %v4408 = vmul.f32 %v4376, %v3862
        %v4409 = vmul.f32 %v4377, %v3877
        %v4410 = vmul.f32 %v4378, %v3892
        %v4411 = vmul.f32 %v4379, %v3907
        %v4412 = vmul.f32 %v4380, %v3922
        %v4413 = vmul.f32 %v4381, %v3937
        %v4414 = vmul.f32 %v4382, %v3952
        %v4415 = vmul.f32 %v4383, %v3967
        %v4416 = vmul.f32 %v4384, %v3982
        %v4417 = vmul.f32 %v4385, %v3997
        %v4418 = vmul.f32 %v4386, %v4012
        %v4419 = vmul.f32 %v4387, %v4027
        %v4420 = vmul.f32 %v4388, %v4042
        %v4421 = vmul.f32 %v4389, %v4057
        %v4422 = vmul.f32 %v4390, %v4072
        %v4423 = vmul.f32 %v4391, %v4087
        %v4424 = vmul.f32 %v4392, %v4102
        %v4425 = vmul.f32 %v4393, %v4117
        %v4426 = vmul.f32 %v4394, %v4132
        %v4427 = vmul.f32 %v4395, %v4147
        %v4428 = vmul.f32 %v4396, %v4162
        %v4429 = vmul.f32 %v4397, %v4177
        %v4430 = vmul.f32 %v4398, %v4192
        %v4431 = vmul.f32 %v4399, %v4207
        %v4432 = vadd.f32 %v4400, 0.2548296
        %v4433 = vadd.f32 %v4401, 0.2548296
        %v4434 = vadd.f32 %v4402, 0.2548296
        %v4435 = vadd.f32 %v4403, 0.2548296
        %v4436 = vadd.f32 %v4404, 0.2548296
        %v4437 = vadd.f32 %v4405, 0.2548296
        %v4438 = vadd.f32 %v4406, 0.2548296
        %v4439 = vadd.f32 %v4407, 0.2548296
        %v4440 = vadd.f32 %v4408, 0.2548296
        %v4441 = vadd.f32 %v4409, 0.2548296
        %v4442 = vadd.f32 %v4410, 0.2548296
        %v4443 = vadd.f32 %v4411, 0.2548296
        %v4444 = vadd.f32 %v4412, 0.2548296
        %v4445 = vadd.f32 %v4413, 0.2548296
        %v4446 = vadd.f32 %v4414, 0.2548296
        %v4447 = vadd.f32 %v4415, 0.2548296
        %v4448 = vadd.f32 %v4416, 0.2548296
        %v4449 = vadd.f32 %v4417, 0.2548296
        %v4450 = vadd.f32 %v4418, 0.2548296
        %v4451 = vadd.f32 %v4419, 0.2548296
        %v4452 = vadd.f32 %v4420, 0.2548296
        %v4453 = vadd.f32 %v4421, 0.2548296
        %v4454 = vadd.f32 %v4422, 0.2548296
        %v4455 = vadd.f32 %v4423, 0.2548296
        %v4456 = vadd.f32 %v4424, 0.2548296
        %v4457 = vadd.f32 %v4425, 0.2548296
        %v4458 = vadd.f32 %v4426, 0.2548296
        %v4459 = vadd.f32 %v4427, 0.2548296
        %v4460 = vadd.f32 %v4428, 0.2548296
        %v4461 = vadd.f32 %v4429, 0.2548296
        %v4462 = vadd.f32 %v4430, 0.2548296
        %v4463 = vadd.f32 %v4431, 0.2548296
        %v4464 = vmul.f32 %v4432, %v3742
        %v4465 = vmul.f32 %v4433, %v3757
        %v4466 = vmul.f32 %v4434, %v3772
        %v4467 = vmul.f32 %v4435, %v3787
        %v4468 = vmul.f32 %v4436, %v3802
        %v4469 = vmul.f32 %v4437, %v3817
        %v4470 = vmul.f32 %v4438, %v3832
        %v4471 = vmul.f32 %v4439, %v3847
        %v4472 = vmul.f32 %v4440, %v3862
        %v4473 = vmul.f32 %v4441, %v3877
        %v4474 = vmul.f32 %v4442, %v3892
        %v4475 = vmul.f32 %v4443, %v3907
        %v4476 = vmul.f32 %v4444, %v3922
        %v4477 = vmul.f32 %v4445, %v3937
        %v4478 = vmul.f32 %v4446, %v3952
        %v4479 = vmul.f32 %v4447, %v3967
        %v4480 = vmul.f32 %v4448, %v3982
        %v4481 = vmul.f32 %v4449, %v3997
        %v4482 = vmul.f32 %v4450, %v4012
        %v4483 = vmul.f32 %v4451, %v4027
        %v4484 = vmul.f32 %v4452, %v4042
        %v4485 = vmul.f32 %v4453, %v4057
        %v4486 = vmul.f32 %v4454, %v4072
        %v4487 = vmul.f32 %v4455, %v4087
        %v4488 = vmul.f32 %v4456, %v4102
        %v4489 = vmul.f32 %v4457, %v4117
        %v4490 = vmul.f32 %v4458, %v4132
        %v4491 = vmul.f32 %v4459, %v4147
        %v4492 = vmul.f32 %v4460, %v4162
        %v4493 = vmul.f32 %v4461, %v4177
        %v4494 = vmul.f32 %v4462, %v4192
        %v4495 = vmul.f32 %v4463, %v4207
        %v4496 = vsub.f32 0.0, %v3632
        %v4497 = vsub.f32 0.0, %v3633
        %v4498 = vsub.f32 0.0, %v3634
        %v4499 = vsub.f32 0.0, %v3635
        %v4500 = vsub.f32 0.0, %v3636
        %v4501 = vsub.f32 0.0, %v3637
        %v4502 = vsub.f32 0.0, %v3638
        %v4503 = vsub.f32 0.0, %v3639
        %v4504 = vsub.f32 0.0, %v3640
        %v4505 = vsub.f32 0.0, %v3641
        %v4506 = vsub.f32 0.0, %v3642
        %v4507 = vsub.f32 0.0, %v3643
        %v4508 = vsub.f32 0.0, %v3644
        %v4509 = vsub.f32 0.0, %v3645
        %v4510 = vsub.f32 0.0, %v3646
        %v4511 = vsub.f32 0.0, %v3647
        %v4512 = vsub.f32 0.0, %v3648
        %v4513 = vsub.f32 0.0, %v3649
        %v4514 = vsub.f32 0.0, %v3650
        %v4515 = vsub.f32 0.0, %v3651
        %v4516 = vsub.f32 0.0, %v3652
        %v4517 = vsub.f32 0.0, %v3653
        %v4518 = vsub.f32 0.0, %v3654
        %v4519 = vsub.f32 0.0, %v3655
        %v4520 = vsub.f32 0.0, %v3656
        %v4521 = vsub.f32 0.0, %v3657
        %v4522 = vsub.f32 0.0, %v3658
        %v4523 = vsub.f32 0.0, %v3659
        %v4524 = vsub.f32 0.0, %v3660
        %v4525 = vsub.f32 0.0, %v3661
        %v4526 = vsub.f32 0.0, %v3662
        %v4527 = vsub.f32 0.0, %v3663
        %v4528 = vmul.f32 %v4496, %v3632
        %v4529 = vmul.f32 %v4497, %v3633
        %v4530 = vmul.f32 %v4498, %v3634
        %v4531 = vmul.f32 %v4499, %v3635
        %v4532 = vmul.f32 %v4500, %v3636
        %v4533 = vmul.f32 %v4501, %v3637
        %v4534 = vmul.f32 %v4502, %v3638
        %v4535 = vmul.f32 %v4503, %v3639
        %v4536 = vmul.f32 %v4504, %v3640
        %v4537 = vmul.f32 %v4505, %v3641
        %v4538 = vmul.f32 %v4506, %v3642
        %v4539 = vmul.f32 %v4507, %v3643
        %v4540 = vmul.f32 %v4508, %v3644
        %v4541 = vmul.f32 %v4509, %v3645
        %v4542 = vmul.f32 %v4510, %v3646
        %v4543 = vmul.f32 %v4511, %v3647
        %v4544 = vmul.f32 %v4512, %v3648
        %v4545 = vmul.f32 %v4513, %v3649
        %v4546 = vmul.f32 %v4514, %v3650
        %v4547 = vmul.f32 %v4515, %v3651
        %v4548 = vmul.f32 %v4516, %v3652
        %v4549 = vmul.f32 %v4517, %v3653
        %v4550 = vmul.f32 %v4518, %v3654
        %v4551 = vmul.f32 %v4519, %v3655
        %v4552 = vmul.f32 %v4520, %v3656
        %v4553 = vmul.f32 %v4521, %v3657
        %v4554 = vmul.f32 %v4522, %v3658
        %v4555 = vmul.f32 %v4523, %v3659
        %v4556 = vmul.f32 %v4524, %v3660
        %v4557 = vmul.f32 %v4525, %v3661
        %v4558 = vmul.f32 %v4526, %v3662
        %v4559 = vmul.f32 %v4527, %v3663
        %v4560 = vmul.f32 %v4528, 1.442695
        %v4561 = vpow.pop %v4560
        %v4562 = vmul.f32 %v4529, 1.442695
        %v4563 = vpow.pop %v4562
        %v4564 = vmul.f32 %v4530, 1.442695
        %v4565 = vpow.pop %v4564
        %v4566 = vmul.f32 %v4531, 1.442695
        %v4567 = vpow.pop %v4566
        %v4568 = vmul.f32 %v4532, 1.442695
        %v4569 = vpow.pop %v4568
        %v4570 = vmul.f32 %v4533, 1.442695
        %v4571 = vpow.pop %v4570
        %v4572 = vmul.f32 %v4534, 1.442695
        %v4573 = vpow.pop %v4572
        %v4574 = vmul.f32 %v4535, 1.442695
        %v4575 = vpow.pop %v4574
        %v4576 = vmul.f32 %v4536, 1.442695
        %v4577 = vpow.pop %v4576
        %v4578 = vmul.f32 %v4537, 1.442695
        %v4579 = vpow.pop %v4578
        %v4580 = vmul.f32 %v4538, 1.442695
        %v4581 = vpow.pop %v4580
        %v4582 = vmul.f32 %v4539, 1.442695
        %v4583 = vpow.pop %v4582
        %v4584 = vmul.f32 %v4540, 1.442695
        %v4585 = vpow.pop %v4584
        %v4586 = vmul.f32 %v4541, 1.442695
        %v4587 = vpow.pop %v4586
        %v4588 = vmul.f32 %v4542, 1.442695
        %v4589 = vpow.pop %v4588
        %v4590 = vmul.f32 %v4543, 1.442695
        %v4591 = vpow.pop %v4590
        %v4592 = vmul.f32 %v4544, 1.442695
        %v4593 = vpow.pop %v4592
        %v4594 = vmul.f32 %v4545, 1.442695
        %v4595 = vpow.pop %v4594
        %v4596 = vmul.f32 %v4546, 1.442695
        %v4597 = vpow.pop %v4596
        %v4598 = vmul.f32 %v4547, 1.442695
        %v4599 = vpow.pop %v4598
        %v4600 = vmul.f32 %v4548, 1.442695
        %v4601 = vpow.pop %v4600
        %v4602 = vmul.f32 %v4549, 1.442695
        %v4603 = vpow.pop %v4602
        %v4604 = vmul.f32 %v4550, 1.442695
        %v4605 = vpow.pop %v4604
        %v4606 = vmul.f32 %v4551, 1.442695
        %v4607 = vpow.pop %v4606
        %v4608 = vmul.f32 %v4552, 1.442695
        %v4609 = vpow.pop %v4608
        %v4610 = vmul.f32 %v4553, 1.442695
        %v4611 = vpow.pop %v4610
        %v4612 = vmul.f32 %v4554, 1.442695
        %v4613 = vpow.pop %v4612
        %v4614 = vmul.f32 %v4555, 1.442695
        %v4615 = vpow.pop %v4614
        %v4616 = vmul.f32 %v4556, 1.442695
        %v4617 = vpow.pop %v4616
        %v4618 = vmul.f32 %v4557, 1.442695
        %v4619 = vpow.pop %v4618
        %v4620 = vmul.f32 %v4558, 1.442695
        %v4621 = vpow.pop %v4620
        %v4622 = vmul.f32 %v4559, 1.442695
        %v4623 = vpow.pop %v4622
        %v4624 = vmul.f32 %v4464, %v4561
        %v4625 = vmul.f32 %v4465, %v4563
        %v4626 = vmul.f32 %v4466, %v4565
        %v4627 = vmul.f32 %v4467, %v4567
        %v4628 = vmul.f32 %v4468, %v4569
        %v4629 = vmul.f32 %v4469, %v4571
        %v4630 = vmul.f32 %v4470, %v4573
        %v4631 = vmul.f32 %v4471, %v4575
        %v4632 = vmul.f32 %v4472, %v4577
        %v4633 = vmul.f32 %v4473, %v4579
        %v4634 = vmul.f32 %v4474, %v4581
        %v4635 = vmul.f32 %v4475, %v4583
        %v4636 = vmul.f32 %v4476, %v4585
        %v4637 = vmul.f32 %v4477, %v4587
        %v4638 = vmul.f32 %v4478, %v4589
        %v4639 = vmul.f32 %v4479, %v4591
        %v4640 = vmul.f32 %v4480, %v4593
        %v4641 = vmul.f32 %v4481, %v4595
        %v4642 = vmul.f32 %v4482, %v4597
        %v4643 = vmul.f32 %v4483, %v4599
        %v4644 = vmul.f32 %v4484, %v4601
        %v4645 = vmul.f32 %v4485, %v4603
        %v4646 = vmul.f32 %v4486, %v4605
        %v4647 = vmul.f32 %v4487, %v4607
        %v4648 = vmul.f32 %v4488, %v4609
        %v4649 = vmul.f32 %v4489, %v4611
        %v4650 = vmul.f32 %v4490, %v4613
        %v4651 = vmul.f32 %v4491, %v4615
        %v4652 = vmul.f32 %v4492, %v4617
        %v4653 = vmul.f32 %v4493, %v4619
        %v4654 = vmul.f32 %v4494, %v4621
        %v4655 = vmul.f32 %v4495, %v4623
        %v4656 = vsub.f32 1.0, %v4624
        %v4657 = vsub.f32 1.0, %v4625
        %v4658 = vsub.f32 1.0, %v4626
        %v4659 = vsub.f32 1.0, %v4627
        %v4660 = vsub.f32 1.0, %v4628
        %v4661 = vsub.f32 1.0, %v4629
        %v4662 = vsub.f32 1.0, %v4630
        %v4663 = vsub.f32 1.0, %v4631
        %v4664 = vsub.f32 1.0, %v4632
        %v4665 = vsub.f32 1.0, %v4633
        %v4666 = vsub.f32 1.0, %v4634
        %v4667 = vsub.f32 1.0, %v4635
        %v4668 = vsub.f32 1.0, %v4636
        %v4669 = vsub.f32 1.0, %v4637
        %v4670 = vsub.f32 1.0, %v4638
        %v4671 = vsub.f32 1.0, %v4639
        %v4672 = vsub.f32 1.0, %v4640
        %v4673 = vsub.f32 1.0, %v4641
        %v4674 = vsub.f32 1.0, %v4642
        %v4675 = vsub.f32 1.0, %v4643
        %v4676 = vsub.f32 1.0, %v4644
        %v4677 = vsub.f32 1.0, %v4645
        %v4678 = vsub.f32 1.0, %v4646
        %v4679 = vsub.f32 1.0, %v4647
        %v4680 = vsub.f32 1.0, %v4648
        %v4681 = vsub.f32 1.0, %v4649
        %v4682 = vsub.f32 1.0, %v4650
        %v4683 = vsub.f32 1.0, %v4651
        %v4684 = vsub.f32 1.0, %v4652
        %v4685 = vsub.f32 1.0, %v4653
        %v4686 = vsub.f32 1.0, %v4654
        %v4687 = vsub.f32 1.0, %v4655
        %v4688 = vmul.f32 %v3600, %v4656
        %v4689 = vmul.f32 %v3601, %v4657
        %v4690 = vmul.f32 %v3602, %v4658
        %v4691 = vmul.f32 %v3603, %v4659
        %v4692 = vmul.f32 %v3604, %v4660
        %v4693 = vmul.f32 %v3605, %v4661
        %v4694 = vmul.f32 %v3606, %v4662
        %v4695 = vmul.f32 %v3607, %v4663
        %v4696 = vmul.f32 %v3608, %v4664
        %v4697 = vmul.f32 %v3609, %v4665
        %v4698 = vmul.f32 %v3610, %v4666
        %v4699 = vmul.f32 %v3611, %v4667
        %v4700 = vmul.f32 %v3612, %v4668
        %v4701 = vmul.f32 %v3613, %v4669
        %v4702 = vmul.f32 %v3614, %v4670
        %v4703 = vmul.f32 %v3615, %v4671
        %v4704 = vmul.f32 %v3616, %v4672
        %v4705 = vmul.f32 %v3617, %v4673
        %v4706 = vmul.f32 %v3618, %v4674
        %v4707 = vmul.f32 %v3619, %v4675
        %v4708 = vmul.f32 %v3620, %v4676
        %v4709 = vmul.f32 %v3621, %v4677
        %v4710 = vmul.f32 %v3622, %v4678
        %v4711 = vmul.f32 %v3623, %v4679
        %v4712 = vmul.f32 %v3624, %v4680
        %v4713 = vmul.f32 %v3625, %v4681
        %v4714 = vmul.f32 %v3626, %v4682
        %v4715 = vmul.f32 %v3627, %v4683
        %v4716 = vmul.f32 %v3628, %v4684
        %v4717 = vmul.f32 %v3629, %v4685
        %v4718 = vmul.f32 %v3630, %v4686
        %v4719 = vmul.f32 %v3631, %v4687
        %v4720 = vadd.f32 %v4688, 1.0
        %v4721 = vadd.f32 %v4689, 1.0
        %v4722 = vadd.f32 %v4690, 1.0
        %v4723 = vadd.f32 %v4691, 1.0
        %v4724 = vadd.f32 %v4692, 1.0
        %v4725 = vadd.f32 %v4693, 1.0
        %v4726 = vadd.f32 %v4694, 1.0
        %v4727 = vadd.f32 %v4695, 1.0
        %v4728 = vadd.f32 %v4696, 1.0
        %v4729 = vadd.f32 %v4697, 1.0
        %v4730 = vadd.f32 %v4698, 1.0
        %v4731 = vadd.f32 %v4699, 1.0
        %v4732 = vadd.f32 %v4700, 1.0
        %v4733 = vadd.f32 %v4701, 1.0
        %v4734 = vadd.f32 %v4702, 1.0
        %v4735 = vadd.f32 %v4703, 1.0
        %v4736 = vadd.f32 %v4704, 1.0
        %v4737 = vadd.f32 %v4705, 1.0
        %v4738 = vadd.f32 %v4706, 1.0
        %v4739 = vadd.f32 %v4707, 1.0
        %v4740 = vadd.f32 %v4708, 1.0
        %v4741 = vadd.f32 %v4709, 1.0
        %v4742 = vadd.f32 %v4710, 1.0
        %v4743 = vadd.f32 %v4711, 1.0
        %v4744 = vadd.f32 %v4712, 1.0
        %v4745 = vadd.f32 %v4713, 1.0
        %v4746 = vadd.f32 %v4714, 1.0
        %v4747 = vadd.f32 %v4715, 1.0
        %v4748 = vadd.f32 %v4716, 1.0
        %v4749 = vadd.f32 %v4717, 1.0
        %v4750 = vadd.f32 %v4718, 1.0
        %v4751 = vadd.f32 %v4719, 1.0
        %v4752 = vmul.f32 %v3504, %v4720
        %v4753 = vmul.f32 %v3505, %v4721
        %v4754 = vmul.f32 %v3506, %v4722
        %v4755 = vmul.f32 %v3507, %v4723
        %v4756 = vmul.f32 %v3508, %v4724
        %v4757 = vmul.f32 %v3509, %v4725
        %v4758 = vmul.f32 %v3510, %v4726
        %v4759 = vmul.f32 %v3511, %v4727
        %v4760 = vmul.f32 %v3512, %v4728
        %v4761 = vmul.f32 %v3513, %v4729
        %v4762 = vmul.f32 %v3514, %v4730
        %v4763 = vmul.f32 %v3515, %v4731
        %v4764 = vmul.f32 %v3516, %v4732
        %v4765 = vmul.f32 %v3517, %v4733
        %v4766 = vmul.f32 %v3518, %v4734
        %v4767 = vmul.f32 %v3519, %v4735
        %v4768 = vmul.f32 %v3520, %v4736
        %v4769 = vmul.f32 %v3521, %v4737
        %v4770 = vmul.f32 %v3522, %v4738
        %v4771 = vmul.f32 %v3523, %v4739
        %v4772 = vmul.f32 %v3524, %v4740
        %v4773 = vmul.f32 %v3525, %v4741
        %v4774 = vmul.f32 %v3526, %v4742
        %v4775 = vmul.f32 %v3527, %v4743
        %v4776 = vmul.f32 %v3528, %v4744
        %v4777 = vmul.f32 %v3529, %v4745
        %v4778 = vmul.f32 %v3530, %v4746
        %v4779 = vmul.f32 %v3531, %v4747
        %v4780 = vmul.f32 %v3532, %v4748
        %v4781 = vmul.f32 %v3533, %v4749
        %v4782 = vmul.f32 %v3534, %v4750
        %v4783 = vmul.f32 %v3535, %v4751
        %v4784 = vld [vmem:[%s749] sm:$0xff]
        %v4785 = vld [vmem:[%s749 + $0x8] sm:$0xff]
        %v4786 = vld [vmem:[%s749 + $0x10] sm:$0xff]
        %v4787 = vld [vmem:[%s749 + $0x18] sm:$0xff]
        %v4788 = vld [vmem:[%s749 + $0x20] sm:$0xff]
        %v4789 = vld [vmem:[%s749 + $0x28] sm:$0xff]
        %v4790 = vld [vmem:[%s749 + $0x30] sm:$0xff]
        %v4791 = vld [vmem:[%s749 + $0x38] sm:$0xff]
        %v4792 = vld [vmem:[%s749 + $0x40] sm:$0xff]
        %v4793 = vld [vmem:[%s749 + $0x48] sm:$0xff]
        %v4794 = vld [vmem:[%s749 + $0x50] sm:$0xff]
        %v4795 = vld [vmem:[%s749 + $0x58] sm:$0xff]
        %v4796 = vld [vmem:[%s749 + $0x60] sm:$0xff]
        %v4797 = vld [vmem:[%s749 + $0x68] sm:$0xff]
        %v4798 = vld [vmem:[%s749 + $0x70] sm:$0xff]
        %v4799 = vld [vmem:[%s749 + $0x78] sm:$0xff]
        %v4800 = vld [vmem:[%s749 + $0x80] sm:$0xff]
        %v4801 = vld [vmem:[%s749 + $0x88] sm:$0xff]
        %v4802 = vld [vmem:[%s749 + $0x90] sm:$0xff]
        %v4803 = vld [vmem:[%s749 + $0x98] sm:$0xff]
        %v4804 = vld [vmem:[%s749 + $0xa0] sm:$0xff]
        %v4805 = vld [vmem:[%s749 + $0xa8] sm:$0xff]
        %v4806 = vld [vmem:[%s749 + $0xb0] sm:$0xff]
        %v4807 = vld [vmem:[%s749 + $0xb8] sm:$0xff]
        %v4808 = vld [vmem:[%s749 + $0xc0] sm:$0xff]
        %v4809 = vld [vmem:[%s749 + $0xc8] sm:$0xff]
        %v4810 = vld [vmem:[%s749 + $0xd0] sm:$0xff]
        %v4811 = vld [vmem:[%s749 + $0xd8] sm:$0xff]
        %v4812 = vld [vmem:[%s749 + $0xe0] sm:$0xff]
        %v4813 = vld [vmem:[%s749 + $0xe8] sm:$0xff]
        %v4814 = vld [vmem:[%s749 + $0xf0] sm:$0xff]
        %v4815 = vld [vmem:[%s749 + $0xf8] sm:$0xff]
        %v4816 = vld [vmem:[%s758] sm:$0x1]
        %v4818 = vperm.slane %v4816, 0
        %4820 = vmatpush.msra.mxu0 %v4799
        %4821 = vmatpush.msra.mxu0 %v4798
        %4822 = vmatpush.msra.mxu0 %v4797
        %4823 = vmatpush.msra.mxu0 %v4796
        %4824 = vmatpush.msra.mxu0 %v4795
        %4825 = vmatpush.msra.mxu0 %v4794
        %4826 = vmatpush.msra.mxu0 %v4793
        %4827 = vmatpush.msra.mxu0 %v4792
        %4828 = vmatpush.msra.mxu0 %v4791
        %4829 = vmatpush.msra.mxu0 %v4790
        %4830 = vmatpush.msra.mxu0 %v4789
        %4831 = vmatpush.msra.mxu0 %v4788
        %4832 = vmatpush.msra.mxu0 %v4787
        %4833 = vmatpush.msra.mxu0 %v4786
        %4834 = vmatpush.msra.mxu0 %v4785
        %4835 = vmatpush.msra.mxu0 %v4784
        %4836 = vmatmul.f32.gmra.mxu0 %v4752
        %v4837 = vpop.f32.mrf.mxu0
        %v4838 = vadd.f32 %v4818, %v4837
        %4839 = vmatmul.f32.gmra.mxu0 %v4754
        %v4840 = vpop.f32.mrf.mxu0
        %v4841 = vadd.f32 %v4818, %v4840
        %4842 = vmatmul.f32.gmra.mxu0 %v4756
        %v4843 = vpop.f32.mrf.mxu0
        %v4844 = vadd.f32 %v4818, %v4843
        %4845 = vmatmul.f32.gmra.mxu0 %v4758
        %v4846 = vpop.f32.mrf.mxu0
        %v4847 = vadd.f32 %v4818, %v4846
        %4848 = vmatmul.f32.gmra.mxu0 %v4760
        %v4849 = vpop.f32.mrf.mxu0
        %v4850 = vadd.f32 %v4818, %v4849
        %4851 = vmatmul.f32.gmra.mxu0 %v4762
        %v4852 = vpop.f32.mrf.mxu0
        %v4853 = vadd.f32 %v4818, %v4852
        %4854 = vmatmul.f32.gmra.mxu0 %v4764
        %v4855 = vpop.f32.mrf.mxu0
        %v4856 = vadd.f32 %v4818, %v4855
        %4857 = vmatmul.f32.gmra.mxu0 %v4766
        %v4858 = vpop.f32.mrf.mxu0
        %v4859 = vadd.f32 %v4818, %v4858
        %4860 = vmatmul.f32.gmra.mxu0 %v4768
        %v4861 = vpop.f32.mrf.mxu0
        %v4862 = vadd.f32 %v4818, %v4861
        %4863 = vmatmul.f32.gmra.mxu0 %v4770
        %v4864 = vpop.f32.mrf.mxu0
        %v4865 = vadd.f32 %v4818, %v4864
        %4866 = vmatmul.f32.gmra.mxu0 %v4772
        %v4867 = vpop.f32.mrf.mxu0
        %v4868 = vadd.f32 %v4818, %v4867
        %4869 = vmatmul.f32.gmra.mxu0 %v4774
        %v4870 = vpop.f32.mrf.mxu0
        %v4871 = vadd.f32 %v4818, %v4870
        %4872 = vmatmul.f32.gmra.mxu0 %v4776
        %v4873 = vpop.f32.mrf.mxu0
        %v4874 = vadd.f32 %v4818, %v4873
        %4875 = vmatmul.f32.gmra.mxu0 %v4778
        %v4876 = vpop.f32.mrf.mxu0
        %v4877 = vadd.f32 %v4818, %v4876
        %4878 = vmatmul.f32.gmra.mxu0 %v4780
        %v4879 = vpop.f32.mrf.mxu0
        %v4880 = vadd.f32 %v4818, %v4879
        %4881 = vmatmul.f32.gmra.mxu0 %v4782
        %v4882 = vpop.f32.mrf.mxu0
        %v4883 = vadd.f32 %v4818, %v4882
        %4884 = vdwg.mxu0
        %4885 = vmatpush.msra.mxu0 %v4815
        %4886 = vmatpush.msra.mxu0 %v4814
        %4887 = vmatpush.msra.mxu0 %v4813
        %4888 = vmatpush.msra.mxu0 %v4812
        %4889 = vmatpush.msra.mxu0 %v4811
        %4890 = vmatpush.msra.mxu0 %v4810
        %4891 = vmatpush.msra.mxu0 %v4809
        %4892 = vmatpush.msra.mxu0 %v4808
        %4893 = vmatpush.msra.mxu0 %v4807
        %4894 = vmatpush.msra.mxu0 %v4806
        %4895 = vmatpush.msra.mxu0 %v4805
        %4896 = vmatpush.msra.mxu0 %v4804
        %4897 = vmatpush.msra.mxu0 %v4803
        %4898 = vmatpush.msra.mxu0 %v4802
        %4899 = vmatpush.msra.mxu0 %v4801
        %4900 = vmatpush.msra.mxu0 %v4800
        %4901 = vmatmul.f32.gmra.mxu0 %v4753
        %v4902 = vpop.f32.mrf.mxu0
        %v4903 = vadd.f32 %v4838, %v4902
        %4904 = vmatmul.f32.gmra.mxu0 %v4755
        %v4905 = vpop.f32.mrf.mxu0
        %v4906 = vadd.f32 %v4841, %v4905
        %4907 = vmatmul.f32.gmra.mxu0 %v4757
        %v4908 = vpop.f32.mrf.mxu0
        %v4909 = vadd.f32 %v4844, %v4908
        %4910 = vmatmul.f32.gmra.mxu0 %v4759
        %v4911 = vpop.f32.mrf.mxu0
        %v4912 = vadd.f32 %v4847, %v4911
        %4913 = vmatmul.f32.gmra.mxu0 %v4761
        %v4914 = vpop.f32.mrf.mxu0
        %v4915 = vadd.f32 %v4850, %v4914
        %4916 = vmatmul.f32.gmra.mxu0 %v4763
        %v4917 = vpop.f32.mrf.mxu0
        %v4918 = vadd.f32 %v4853, %v4917
        %4919 = vmatmul.f32.gmra.mxu0 %v4765
        %v4920 = vpop.f32.mrf.mxu0
        %v4921 = vadd.f32 %v4856, %v4920
        %4922 = vmatmul.f32.gmra.mxu0 %v4767
        %v4923 = vpop.f32.mrf.mxu0
        %v4924 = vadd.f32 %v4859, %v4923
        %4925 = vmatmul.f32.gmra.mxu0 %v4769
        %v4926 = vpop.f32.mrf.mxu0
        %v4927 = vadd.f32 %v4862, %v4926
        %4928 = vmatmul.f32.gmra.mxu0 %v4771
        %v4929 = vpop.f32.mrf.mxu0
        %v4930 = vadd.f32 %v4865, %v4929
        %4931 = vmatmul.f32.gmra.mxu0 %v4773
        %v4932 = vpop.f32.mrf.mxu0
        %v4933 = vadd.f32 %v4868, %v4932
        %4934 = vmatmul.f32.gmra.mxu0 %v4775
        %v4935 = vpop.f32.mrf.mxu0
        %v4936 = vadd.f32 %v4871, %v4935
        %4937 = vmatmul.f32.gmra.mxu0 %v4777
        %v4938 = vpop.f32.mrf.mxu0
        %v4939 = vadd.f32 %v4874, %v4938
        %4940 = vmatmul.f32.gmra.mxu0 %v4779
        %v4941 = vpop.f32.mrf.mxu0
        %v4942 = vadd.f32 %v4877, %v4941
        %4943 = vmatmul.f32.gmra.mxu0 %v4781
        %v4944 = vpop.f32.mrf.mxu0
        %v4945 = vadd.f32 %v4880, %v4944
        %4946 = vmatmul.f32.gmra.mxu0 %v4783
        %v4947 = vpop.f32.mrf.mxu0
        %v4948 = vadd.f32 %v4883, %v4947
        %4949 = vdwg.mxu0
        %v4950 = vadd.f32 %v4903, %v2960
        %v4951 = vadd.f32 %v4906, %v2961
        %v4952 = vadd.f32 %v4909, %v2962
        %v4953 = vadd.f32 %v4912, %v2963
        %v4954 = vadd.f32 %v4915, %v2964
        %v4955 = vadd.f32 %v4918, %v2965
        %v4956 = vadd.f32 %v4921, %v2966
        %v4957 = vadd.f32 %v4924, %v2967
        %v4958 = vadd.f32 %v4927, %v2968
        %v4959 = vadd.f32 %v4930, %v2969
        %v4960 = vadd.f32 %v4933, %v2970
        %v4961 = vadd.f32 %v4936, %v2971
        %v4962 = vadd.f32 %v4939, %v2972
        %v4963 = vadd.f32 %v4942, %v2973
        %v4964 = vadd.f32 %v4945, %v2974
        %v4965 = vadd.f32 %v4948, %v2975
        %4966 = vst [vmem:[%s851] sm:$0xff] %v4950
        %4967 = vst [vmem:[%s851 + $0x8] sm:$0xff] %v4951
        %4968 = vst [vmem:[%s851 + $0x10] sm:$0xff] %v4952
        %4969 = vst [vmem:[%s851 + $0x18] sm:$0xff] %v4953
        %4970 = vst [vmem:[%s851 + $0x20] sm:$0xff] %v4954
        %4971 = vst [vmem:[%s851 + $0x28] sm:$0xff] %v4955
        %4972 = vst [vmem:[%s851 + $0x30] sm:$0xff] %v4956
        %4973 = vst [vmem:[%s851 + $0x38] sm:$0xff] %v4957
        %4974 = vst [vmem:[%s851 + $0x40] sm:$0xff] %v4958
        %4975 = vst [vmem:[%s851 + $0x48] sm:$0xff] %v4959
        %4976 = vst [vmem:[%s851 + $0x50] sm:$0xff] %v4960
        %4977 = vst [vmem:[%s851 + $0x58] sm:$0xff] %v4961
        %4978 = vst [vmem:[%s851 + $0x60] sm:$0xff] %v4962
        %4979 = vst [vmem:[%s851 + $0x68] sm:$0xff] %v4963
        %4980 = vst [vmem:[%s851 + $0x70] sm:$0xff] %v4964
        %4981 = vst [vmem:[%s851 + $0x78] sm:$0xff] %v4965
        %p4982 = scmp.eq.s32.totalorder %s51, 1
        // Predicated region
        $region121: #{tpu_custom_call.1} parent=75 // pred_check
          %p4983 = pneg %p4982
        $region122: #{tpu_custom_call.1} parent=75 // pred_check_branch
          %4985 = sbr.rel (%p4983) target = $region124
        $region123: #{tpu_custom_call.1} parent=75 // pred_region
          %v4986 = vld [vmem:[%s12] sm:$0x1]
          %v4987 = vld [vmem:[%s13] sm:$0x1]
          %4988 = vadd.xlane.f32.xlu0 %v4950
          %v4989 = vpop.xlane.xlu0 %4988
          %4990 = vadd.xlane.f32.xlu0 %v4951
          %v4991 = vpop.xlane.xlu0 %4990
          %4992 = vadd.xlane.f32.xlu0 %v4952
          %v4993 = vpop.xlane.xlu0 %4992
          %4994 = vadd.xlane.f32.xlu0 %v4953
          %v4995 = vpop.xlane.xlu0 %4994
          %4996 = vadd.xlane.f32.xlu0 %v4954
          %v4997 = vpop.xlane.xlu0 %4996
          %4998 = vadd.xlane.f32.xlu0 %v4955
          %v4999 = vpop.xlane.xlu0 %4998
          %5000 = vadd.xlane.f32.xlu0 %v4956
          %v5001 = vpop.xlane.xlu0 %5000
          %5002 = vadd.xlane.f32.xlu0 %v4957
          %v5003 = vpop.xlane.xlu0 %5002
          %5004 = vadd.xlane.f32.xlu0 %v4958
          %v5005 = vpop.xlane.xlu0 %5004
          %5006 = vadd.xlane.f32.xlu0 %v4959
          %v5007 = vpop.xlane.xlu0 %5006
          %5008 = vadd.xlane.f32.xlu0 %v4960
          %v5009 = vpop.xlane.xlu0 %5008
          %5010 = vadd.xlane.f32.xlu0 %v4961
          %v5011 = vpop.xlane.xlu0 %5010
          %5012 = vadd.xlane.f32.xlu0 %v4962
          %v5013 = vpop.xlane.xlu0 %5012
          %5014 = vadd.xlane.f32.xlu0 %v4963
          %v5015 = vpop.xlane.xlu0 %5014
          %5016 = vadd.xlane.f32.xlu0 %v4964
          %v5017 = vpop.xlane.xlu0 %5016
          %5018 = vadd.xlane.f32.xlu0 %v4965
          %v5019 = vpop.xlane.xlu0 %5018
          %v5020 = vmul.f32 %v4989, %v953
          %v5021 = vmul.f32 %v4991, %v953
          %v5022 = vmul.f32 %v4993, %v953
          %v5023 = vmul.f32 %v4995, %v953
          %v5024 = vmul.f32 %v4997, %v953
          %v5025 = vmul.f32 %v4999, %v953
          %v5026 = vmul.f32 %v5001, %v953
          %v5027 = vmul.f32 %v5003, %v953
          %v5028 = vmul.f32 %v5005, %v953
          %v5029 = vmul.f32 %v5007, %v953
          %v5030 = vmul.f32 %v5009, %v953
          %v5031 = vmul.f32 %v5011, %v953
          %v5032 = vmul.f32 %v5013, %v953
          %v5033 = vmul.f32 %v5015, %v953
          %v5034 = vmul.f32 %v5017, %v953
          %v5035 = vmul.f32 %v5019, %v953
          %v5036 = vsub.f32 %v4950, %v5020
          %v5037 = vsub.f32 %v4951, %v5021
          %v5038 = vsub.f32 %v4952, %v5022
          %v5039 = vsub.f32 %v4953, %v5023
          %v5040 = vsub.f32 %v4954, %v5024
          %v5041 = vsub.f32 %v4955, %v5025
          %v5042 = vsub.f32 %v4956, %v5026
          %v5043 = vsub.f32 %v4957, %v5027
          %v5044 = vsub.f32 %v4958, %v5028
          %v5045 = vsub.f32 %v4959, %v5029
          %v5046 = vsub.f32 %v4960, %v5030
          %v5047 = vsub.f32 %v4961, %v5031
          %v5048 = vsub.f32 %v4962, %v5032
          %v5049 = vsub.f32 %v4963, %v5033
          %v5050 = vsub.f32 %v4964, %v5034
          %v5051 = vsub.f32 %v4965, %v5035
          %v5052 = vmul.f32 %v5036, %v5036
          %v5053 = vmul.f32 %v5037, %v5037
          %v5054 = vmul.f32 %v5038, %v5038
          %v5055 = vmul.f32 %v5039, %v5039
          %v5056 = vmul.f32 %v5040, %v5040
          %v5057 = vmul.f32 %v5041, %v5041
          %v5058 = vmul.f32 %v5042, %v5042
          %v5059 = vmul.f32 %v5043, %v5043
          %v5060 = vmul.f32 %v5044, %v5044
          %v5061 = vmul.f32 %v5045, %v5045
          %v5062 = vmul.f32 %v5046, %v5046
          %v5063 = vmul.f32 %v5047, %v5047
          %v5064 = vmul.f32 %v5048, %v5048
          %v5065 = vmul.f32 %v5049, %v5049
          %v5066 = vmul.f32 %v5050, %v5050
          %v5067 = vmul.f32 %v5051, %v5051
          %5068 = vadd.xlane.f32.xlu0 %v5052
          %v5069 = vpop.xlane.xlu0 %5068
          %5070 = vadd.xlane.f32.xlu0 %v5053
          %v5071 = vpop.xlane.xlu0 %5070
          %5072 = vadd.xlane.f32.xlu0 %v5054
          %v5073 = vpop.xlane.xlu0 %5072
          %5074 = vadd.xlane.f32.xlu0 %v5055
          %v5075 = vpop.xlane.xlu0 %5074
          %5076 = vadd.xlane.f32.xlu0 %v5056
          %v5077 = vpop.xlane.xlu0 %5076
          %5078 = vadd.xlane.f32.xlu0 %v5057
          %v5079 = vpop.xlane.xlu0 %5078
          %5080 = vadd.xlane.f32.xlu0 %v5058
          %v5081 = vpop.xlane.xlu0 %5080
          %5082 = vadd.xlane.f32.xlu0 %v5059
          %v5083 = vpop.xlane.xlu0 %5082
          %5084 = vadd.xlane.f32.xlu0 %v5060
          %v5085 = vpop.xlane.xlu0 %5084
          %5086 = vadd.xlane.f32.xlu0 %v5061
          %v5087 = vpop.xlane.xlu0 %5086
          %5088 = vadd.xlane.f32.xlu0 %v5062
          %v5089 = vpop.xlane.xlu0 %5088
          %5090 = vadd.xlane.f32.xlu0 %v5063
          %v5091 = vpop.xlane.xlu0 %5090
          %5092 = vadd.xlane.f32.xlu0 %v5064
          %v5093 = vpop.xlane.xlu0 %5092
          %5094 = vadd.xlane.f32.xlu0 %v5065
          %v5095 = vpop.xlane.xlu0 %5094
          %5096 = vadd.xlane.f32.xlu0 %v5066
          %v5097 = vpop.xlane.xlu0 %5096
          %5098 = vadd.xlane.f32.xlu0 %v5067
          %v5099 = vpop.xlane.xlu0 %5098
          %v5100 = vmul.f32 %v5069, %v953
          %v5101 = vmul.f32 %v5071, %v953
          %v5102 = vmul.f32 %v5073, %v953
          %v5103 = vmul.f32 %v5075, %v953
          %v5104 = vmul.f32 %v5077, %v953
          %v5105 = vmul.f32 %v5079, %v953
          %v5106 = vmul.f32 %v5081, %v953
          %v5107 = vmul.f32 %v5083, %v953
          %v5108 = vmul.f32 %v5085, %v953
          %v5109 = vmul.f32 %v5087, %v953
          %v5110 = vmul.f32 %v5089, %v953
          %v5111 = vmul.f32 %v5091, %v953
          %v5112 = vmul.f32 %v5093, %v953
          %v5113 = vmul.f32 %v5095, %v953
          %v5114 = vmul.f32 %v5097, %v953
          %v5115 = vmul.f32 %v5099, %v953
          %v5116 = vadd.f32 %v5100, 1e-05
          %v5117 = vadd.f32 %v5101, 1e-05
          %v5118 = vadd.f32 %v5102, 1e-05
          %v5119 = vadd.f32 %v5103, 1e-05
          %v5120 = vadd.f32 %v5104, 1e-05
          %v5121 = vadd.f32 %v5105, 1e-05
          %v5122 = vadd.f32 %v5106, 1e-05
          %v5123 = vadd.f32 %v5107, 1e-05
          %v5124 = vadd.f32 %v5108, 1e-05
          %v5125 = vadd.f32 %v5109, 1e-05
          %v5126 = vadd.f32 %v5110, 1e-05
          %v5127 = vadd.f32 %v5111, 1e-05
          %v5128 = vadd.f32 %v5112, 1e-05
          %v5129 = vadd.f32 %v5113, 1e-05
          %v5130 = vadd.f32 %v5114, 1e-05
          %v5131 = vadd.f32 %v5115, 1e-05
          %v5132 = vrsqrt.pop %v5116
          %v5133 = vmul.f32 %v5132, %v5116
          %v5134 = vmul.f32 %v5133, %v5132
          %v5135 = vmul.f32 0.5, %v5134
          %v5136 = vsub.f32 1.5, %v5135
          %v5137 = vmul.f32 %v5132, %v5136
          %vm5138 = vweird.f32 %v5116
          %vm5139 = vweird.f32 %v5132
          %vm5140 = vmor %vm5138, %vm5139
          %v5141 = vsel %vm5140, %v5132, %v5137
          %v5142 = vrsqrt.pop %v5117
          %v5143 = vmul.f32 %v5142, %v5117
          %v5144 = vmul.f32 %v5143, %v5142
          %v5145 = vmul.f32 0.5, %v5144
          %v5146 = vsub.f32 1.5, %v5145
          %v5147 = vmul.f32 %v5142, %v5146
          %vm5148 = vweird.f32 %v5117
          %vm5149 = vweird.f32 %v5142
          %vm5150 = vmor %vm5148, %vm5149
          %v5151 = vsel %vm5150, %v5142, %v5147
          %v5152 = vrsqrt.pop %v5118
          %v5153 = vmul.f32 %v5152, %v5118
          %v5154 = vmul.f32 %v5153, %v5152
          %v5155 = vmul.f32 0.5, %v5154
          %v5156 = vsub.f32 1.5, %v5155
          %v5157 = vmul.f32 %v5152, %v5156
          %vm5158 = vweird.f32 %v5118
          %vm5159 = vweird.f32 %v5152
          %vm5160 = vmor %vm5158, %vm5159
          %v5161 = vsel %vm5160, %v5152, %v5157
          %v5162 = vrsqrt.pop %v5119
          %v5163 = vmul.f32 %v5162, %v5119
          %v5164 = vmul.f32 %v5163, %v5162
          %v5165 = vmul.f32 0.5, %v5164
          %v5166 = vsub.f32 1.5, %v5165
          %v5167 = vmul.f32 %v5162, %v5166
          %vm5168 = vweird.f32 %v5119
          %vm5169 = vweird.f32 %v5162
          %vm5170 = vmor %vm5168, %vm5169
          %v5171 = vsel %vm5170, %v5162, %v5167
          %v5172 = vrsqrt.pop %v5120
          %v5173 = vmul.f32 %v5172, %v5120
          %v5174 = vmul.f32 %v5173, %v5172
          %v5175 = vmul.f32 0.5, %v5174
          %v5176 = vsub.f32 1.5, %v5175
          %v5177 = vmul.f32 %v5172, %v5176
          %vm5178 = vweird.f32 %v5120
          %vm5179 = vweird.f32 %v5172
          %vm5180 = vmor %vm5178, %vm5179
          %v5181 = vsel %vm5180, %v5172, %v5177
          %v5182 = vrsqrt.pop %v5121
          %v5183 = vmul.f32 %v5182, %v5121
          %v5184 = vmul.f32 %v5183, %v5182
          %v5185 = vmul.f32 0.5, %v5184
          %v5186 = vsub.f32 1.5, %v5185
          %v5187 = vmul.f32 %v5182, %v5186
          %vm5188 = vweird.f32 %v5121
          %vm5189 = vweird.f32 %v5182
          %vm5190 = vmor %vm5188, %vm5189
          %v5191 = vsel %vm5190, %v5182, %v5187
          %v5192 = vrsqrt.pop %v5122
          %v5193 = vmul.f32 %v5192, %v5122
          %v5194 = vmul.f32 %v5193, %v5192
          %v5195 = vmul.f32 0.5, %v5194
          %v5196 = vsub.f32 1.5, %v5195
          %v5197 = vmul.f32 %v5192, %v5196
          %vm5198 = vweird.f32 %v5122
          %vm5199 = vweird.f32 %v5192
          %vm5200 = vmor %vm5198, %vm5199
          %v5201 = vsel %vm5200, %v5192, %v5197
          %v5202 = vrsqrt.pop %v5123
          %v5203 = vmul.f32 %v5202, %v5123
          %v5204 = vmul.f32 %v5203, %v5202
          %v5205 = vmul.f32 0.5, %v5204
          %v5206 = vsub.f32 1.5, %v5205
          %v5207 = vmul.f32 %v5202, %v5206
          %vm5208 = vweird.f32 %v5123
          %vm5209 = vweird.f32 %v5202
          %vm5210 = vmor %vm5208, %vm5209
          %v5211 = vsel %vm5210, %v5202, %v5207
          %v5212 = vrsqrt.pop %v5124
          %v5213 = vmul.f32 %v5212, %v5124
          %v5214 = vmul.f32 %v5213, %v5212
          %v5215 = vmul.f32 0.5, %v5214
          %v5216 = vsub.f32 1.5, %v5215
          %v5217 = vmul.f32 %v5212, %v5216
          %vm5218 = vweird.f32 %v5124
          %vm5219 = vweird.f32 %v5212
          %vm5220 = vmor %vm5218, %vm5219
          %v5221 = vsel %vm5220, %v5212, %v5217
          %v5222 = vrsqrt.pop %v5125
          %v5223 = vmul.f32 %v5222, %v5125
          %v5224 = vmul.f32 %v5223, %v5222
          %v5225 = vmul.f32 0.5, %v5224
          %v5226 = vsub.f32 1.5, %v5225
          %v5227 = vmul.f32 %v5222, %v5226
          %vm5228 = vweird.f32 %v5125
          %vm5229 = vweird.f32 %v5222
          %vm5230 = vmor %vm5228, %vm5229
          %v5231 = vsel %vm5230, %v5222, %v5227
          %v5232 = vrsqrt.pop %v5126
          %v5233 = vmul.f32 %v5232, %v5126
          %v5234 = vmul.f32 %v5233, %v5232
          %v5235 = vmul.f32 0.5, %v5234
          %v5236 = vsub.f32 1.5, %v5235
          %v5237 = vmul.f32 %v5232, %v5236
          %vm5238 = vweird.f32 %v5126
          %vm5239 = vweird.f32 %v5232
          %vm5240 = vmor %vm5238, %vm5239
          %v5241 = vsel %vm5240, %v5232, %v5237
          %v5242 = vrsqrt.pop %v5127
          %v5243 = vmul.f32 %v5242, %v5127
          %v5244 = vmul.f32 %v5243, %v5242
          %v5245 = vmul.f32 0.5, %v5244
          %v5246 = vsub.f32 1.5, %v5245
          %v5247 = vmul.f32 %v5242, %v5246
          %vm5248 = vweird.f32 %v5127
          %vm5249 = vweird.f32 %v5242
          %vm5250 = vmor %vm5248, %vm5249
          %v5251 = vsel %vm5250, %v5242, %v5247
          %v5252 = vrsqrt.pop %v5128
          %v5253 = vmul.f32 %v5252, %v5128
          %v5254 = vmul.f32 %v5253, %v5252
          %v5255 = vmul.f32 0.5, %v5254
          %v5256 = vsub.f32 1.5, %v5255
          %v5257 = vmul.f32 %v5252, %v5256
          %vm5258 = vweird.f32 %v5128
          %vm5259 = vweird.f32 %v5252
          %vm5260 = vmor %vm5258, %vm5259
          %v5261 = vsel %vm5260, %v5252, %v5257
          %v5262 = vrsqrt.pop %v5129
          %v5263 = vmul.f32 %v5262, %v5129
          %v5264 = vmul.f32 %v5263, %v5262
          %v5265 = vmul.f32 0.5, %v5264
          %v5266 = vsub.f32 1.5, %v5265
          %v5267 = vmul.f32 %v5262, %v5266
          %vm5268 = vweird.f32 %v5129
          %vm5269 = vweird.f32 %v5262
          %vm5270 = vmor %vm5268, %vm5269
          %v5271 = vsel %vm5270, %v5262, %v5267
          %v5272 = vrsqrt.pop %v5130
          %v5273 = vmul.f32 %v5272, %v5130
          %v5274 = vmul.f32 %v5273, %v5272
          %v5275 = vmul.f32 0.5, %v5274
          %v5276 = vsub.f32 1.5, %v5275
          %v5277 = vmul.f32 %v5272, %v5276
          %vm5278 = vweird.f32 %v5130
          %vm5279 = vweird.f32 %v5272
          %vm5280 = vmor %vm5278, %vm5279
          %v5281 = vsel %vm5280, %v5272, %v5277
          %v5282 = vrsqrt.pop %v5131
          %v5283 = vmul.f32 %v5282, %v5131
          %v5284 = vmul.f32 %v5283, %v5282
          %v5285 = vmul.f32 0.5, %v5284
          %v5286 = vsub.f32 1.5, %v5285
          %v5287 = vmul.f32 %v5282, %v5286
          %vm5288 = vweird.f32 %v5131
          %vm5289 = vweird.f32 %v5282
          %vm5290 = vmor %vm5288, %vm5289
          %v5291 = vsel %vm5290, %v5282, %v5287
          %v5292 = vmul.f32 %v5036, %v5141
          %v5293 = vmul.f32 %v5037, %v5151
          %v5294 = vmul.f32 %v5038, %v5161
          %v5295 = vmul.f32 %v5039, %v5171
          %v5296 = vmul.f32 %v5040, %v5181
          %v5297 = vmul.f32 %v5041, %v5191
          %v5298 = vmul.f32 %v5042, %v5201
          %v5299 = vmul.f32 %v5043, %v5211
          %v5300 = vmul.f32 %v5044, %v5221
          %v5301 = vmul.f32 %v5045, %v5231
          %v5302 = vmul.f32 %v5046, %v5241
          %v5303 = vmul.f32 %v5047, %v5251
          %v5304 = vmul.f32 %v5048, %v5261
          %v5305 = vmul.f32 %v5049, %v5271
          %v5306 = vmul.f32 %v5050, %v5281
          %v5307 = vmul.f32 %v5051, %v5291
          %v5309 = vperm.slane %v4986, 0
          %v5311 = vmul.f32 %v5292, %v5309
          %v5312 = vmul.f32 %v5293, %v5309
          %v5313 = vmul.f32 %v5294, %v5309
          %v5314 = vmul.f32 %v5295, %v5309
          %v5315 = vmul.f32 %v5296, %v5309
          %v5316 = vmul.f32 %v5297, %v5309
          %v5317 = vmul.f32 %v5298, %v5309
          %v5318 = vmul.f32 %v5299, %v5309
          %v5319 = vmul.f32 %v5300, %v5309
          %v5320 = vmul.f32 %v5301, %v5309
          %v5321 = vmul.f32 %v5302, %v5309
          %v5322 = vmul.f32 %v5303, %v5309
          %v5323 = vmul.f32 %v5304, %v5309
          %v5324 = vmul.f32 %v5305, %v5309
          %v5325 = vmul.f32 %v5306, %v5309
          %v5326 = vmul.f32 %v5307, %v5309
          %v5328 = vperm.slane %v4987, 0
          %v5330 = vadd.f32 %v5311, %v5328
          %v5331 = vadd.f32 %v5312, %v5328
          %v5332 = vadd.f32 %v5313, %v5328
          %v5333 = vadd.f32 %v5314, %v5328
          %v5334 = vadd.f32 %v5315, %v5328
          %v5335 = vadd.f32 %v5316, %v5328
          %v5336 = vadd.f32 %v5317, %v5328
          %v5337 = vadd.f32 %v5318, %v5328
          %v5338 = vadd.f32 %v5319, %v5328
          %v5339 = vadd.f32 %v5320, %v5328
          %v5340 = vadd.f32 %v5321, %v5328
          %v5341 = vadd.f32 %v5322, %v5328
          %v5342 = vadd.f32 %v5323, %v5328
          %v5343 = vadd.f32 %v5324, %v5328
          %v5344 = vadd.f32 %v5325, %v5328
          %v5345 = vadd.f32 %v5326, %v5328
          %5346 = vst [vmem:[%s851] sm:$0xff] %v5330
          %5347 = vst [vmem:[%s851 + $0x8] sm:$0xff] %v5331
          %5348 = vst [vmem:[%s851 + $0x10] sm:$0xff] %v5332
          %5349 = vst [vmem:[%s851 + $0x18] sm:$0xff] %v5333
          %5350 = vst [vmem:[%s851 + $0x20] sm:$0xff] %v5334
          %5351 = vst [vmem:[%s851 + $0x28] sm:$0xff] %v5335
          %5352 = vst [vmem:[%s851 + $0x30] sm:$0xff] %v5336
          %5353 = vst [vmem:[%s851 + $0x38] sm:$0xff] %v5337
          %5354 = vst [vmem:[%s851 + $0x40] sm:$0xff] %v5338
          %5355 = vst [vmem:[%s851 + $0x48] sm:$0xff] %v5339
          %5356 = vst [vmem:[%s851 + $0x50] sm:$0xff] %v5340
          %5357 = vst [vmem:[%s851 + $0x58] sm:$0xff] %v5341
          %5358 = vst [vmem:[%s851 + $0x60] sm:$0xff] %v5342
          %5359 = vst [vmem:[%s851 + $0x68] sm:$0xff] %v5343
          %5360 = vst [vmem:[%s851 + $0x70] sm:$0xff] %v5344
          %5361 = vst [vmem:[%s851 + $0x78] sm:$0xff] %v5345
        $region124: #{tpu_custom_call.1} parent=75 // pred_fallthru
          _
        %s5362 = sand.u32 %s420, 1
        %s5363 = scalar_lea.sflag [#allocation4], %s5362
        %s5364 = sand.u32 %s420, 1
        %s5365 = smul.addr %s5364, 128
        %s5366 = scalar_lea.vmem [#allocation19], %s5365
        // Predicated region
        $region125: #{tpu_custom_call.1} parent=75 // pred_check
          %p5367 = pneg %p430
        $region126: #{tpu_custom_call.1} parent=75 // pred_check_branch
          %5369 = sbr.rel (%p5367) target = $region128
        $region127: #{tpu_custom_call.1} parent=75 // pred_region
          %5371 = vsyncadd %s5363, 0
          %s5372 = smul.addr %s50, 16
          %s5373 = smul.addr %s5372, 8
          %s5374 = scalar_lea.hbm %s14, %s5373
          %s5375 = sshll.u32 %s5366, 4
          %s5376 = int_to_ptr.vmem [resolvable:$true] %s5375
          %s5377 = sshll.u32 %s5374, 4
          %s5378 = int_to_ptr.hbm [resolvable:$true] %s5377
          %5383 = dma.vmem_to_hbm [thread:$0]  %s5376, 2048, %s5378, %s5363, 128, 128, 8
        $region128: #{tpu_custom_call.1} parent=75 // pred_fallthru
          _
      $region76: #{tpu_custom_call.1} parent=5 // pred_fallthru
        _
      %p5384 = scmp.le.s32.totalorder 2, %s41
      // Predicated region
      $region129: #{tpu_custom_call.1} parent=5 // pred_check
        %p5385 = pneg %p5384
      $region130: #{tpu_custom_call.1} parent=5 // pred_check_branch
        %5387 = sbr.rel (%p5385) target = $region132
      $region131: #{tpu_custom_call.1} parent=5 // pred_region
        %s5388 = ssub.s32 %s41, 2
        // Predicated region
        $region133: #{tpu_custom_call.1} parent=131 // pred_check
          %p5389 = pneg %p436
        $region134: #{tpu_custom_call.1} parent=131 // pred_check_branch
          %5391 = sbr.rel (%p5389) target = $region136
        $region135: #{tpu_custom_call.1} parent=131 // pred_region
          %s5392 = sand.u32 %s421, 1
          %s5393 = scalar_lea.sflag [#allocation4], %s5392
          %s5394 = sand.u32 %s421, 1
          %s5395 = smul.addr %s5394, 128
          %s5396 = scalar_lea.vmem [#allocation19], %s5395
          %5398 = dma.done %s5393, 2048
        $region136: #{tpu_custom_call.1} parent=131 // pred_fallthru
          _
      $region132: #{tpu_custom_call.1} parent=5 // pred_fallthru
        _
    $region6: #{tpu_custom_call.1} parent=1 // loop_footer
      %s45 = sadd.s32 1, %s41
    $region7: #{tpu_custom_call.1} parent=1 // loop_footer_branch
      %40 = sbr.rel target = $region3
    $region8: #{tpu_custom_call.1} parent=1 // loop_exit
      _
    %5399 = vsyncpa [#allocation3], 1
    %s5400 = scalar_lea.sflag [#allocation3], 1
    %5401 = vsyncpa %s5400, 1
    %5402 = vsyncpa [#allocation6], 1
    %s5403 = scalar_lea.sflag [#allocation6], 1
    %5404 = vsyncpa %s5403, 1
    %5405 = vsyncpa [#allocation9], 1
    %s5406 = scalar_lea.sflag [#allocation9], 1
    %5407 = vsyncpa %s5406, 1
    %5408 = vsyncpa [#allocation12], 1
    %s5409 = scalar_lea.sflag [#allocation12], 1
    %5410 = vsyncpa %s5409, 1
    %5411 = vsyncpa [#allocation15], 1
    %s5412 = scalar_lea.sflag [#allocation15], 1
    %5413 = vsyncpa %s5412, 1
    %5414 = vsyncpa [#allocation18], 1
    %s5415 = scalar_lea.sflag [#allocation18], 1
    %5416 = vsyncpa %s5415, 1
    %5417 = vsyncpa [#allocation4], 1
    %s5418 = scalar_lea.sflag [#allocation4], 1
    %5419 = vsyncpa %s5418, 1

</llo_original>
